<compile_context>
chip_gen: v7x
topology: tpu7x:2x2x1
jax: 0.10.0
libtpu: 0.0.40
codegen_flags: <defaults>
</compile_context>

<pallas_src>
import jax
import jax.numpy as jnp
import numpy as np
from jax.experimental import pallas as pl
from jax.experimental.pallas import tpu as pltpu

ACT_SCALE = 1.7159
ACT_SLOPE = 2.0 / 3.0


def _act(y):
    # LeNet-5 activation: 1.7159 * tanh(2/3 * x), kept in f32 (EUP).
    return ACT_SCALE * jnp.tanh(ACT_SLOPE * y)


# --------------------------------------------------------------------------
# Fused kernel.  Row layouts:
#   stage 0 (input x):   r = n*32 + h                      (h = image row)
#   stage 1 (p1 = s2):   q = n*16 + i, i in 0..13 valid    (compact, stride-1)
#   stage 2 (4*s4):      p = n*8  + u, u in 0..4  valid    (compact, stride-1)
#   stage 3+ (c5/f6/rbf): one row per image (M = tb)
# Column layout of conv outputs is parity-split: col = parity*128 + chan*W + j,
# so the 2x2 pool over w is a max/add of two lane-aligned 128-wide halves.
# Garbage rows are finite and never feed a valid output row (no row mixing).
# --------------------------------------------------------------------------
def _lenet_kernel(x_ref, t1_ref, b1_ref, t3_ref, b3_ref, t5_ref, b5_ref,
                  w6_ref, b6_ref, ct_ref, cc_ref, out_ref,
                  tmp_ref, v1c_ref, v2c_ref):
    f32 = jnp.float32
    bf16 = jnp.bfloat16
    R = x_ref.shape[0]            # tb * 32
    tb = out_ref.shape[0]         # images per grid step

    # The only tmp rows never written by stage 1 are the last 4; zero an aligned
    # 8-row tail once so every later read is of written (finite) data.
    tmp_ref[pl.ds(R - 8, 8), :] = jnp.zeros((8, 128), f32)

    # ---- C1: 5x5 conv (1->6) + act + 2x2 max pool, compacted ----------------
    L1 = R - 4
    u = jnp.dot(x_ref[pl.ds(0, L1), :].astype(bf16), t1_ref[0],
                preferred_element_type=f32)
    for di in range(1, 5):
        u += jnp.dot(x_ref[pl.ds(di, L1), :].astype(bf16), t1_ref[di],
                     preferred_element_type=f32)
    h1 = _act(u + b1_ref[...])                               # (L1, 256) f32
    tmp_ref[pl.ds(0, L1), :] = jnp.maximum(h1[:, :128], h1[:, 128:])  # w-pool
    even = tmp_ref[pl.ds(0, R // 2, stride=2), :]            # rows 2q
    odd = tmp_ref[pl.ds(1, R // 2, stride=2), :]             # rows 2q+1
    v1c_ref[...] = jnp.maximum(even, odd)                    # h-pool + compact

    # ---- C3: 5x5 conv (6->16) + act + 2x2 avg pool (0.25 folded into t5) ----
    M3 = tb * 16 - 4
    u3 = jnp.dot(v1c_ref[pl.ds(0, M3), :].astype(bf16), t3_ref[0],
                 preferred_element_type=f32)
    for di in range(1, 5):
        u3 += jnp.dot(v1c_ref[pl.ds(di, M3), :].astype(bf16), t3_ref[di],
                      preferred_element_type=f32)
    h3 = _act(u3 + b3_ref[...])                              # (M3, 256) f32
    tmp_ref[pl.ds(0, M3), :] = h3[:, :128] + h3[:, 128:]     # w sum
    even2 = tmp_ref[pl.ds(0, tb * 8, stride=2), :]
    odd2 = tmp_ref[pl.ds(1, tb * 8, stride=2), :]
    v2c_ref[...] = even2 + odd2                              # h sum + compact

    # ---- C5: 5x5 conv (16->120), 1x1 output, + act; M = tb ------------------
    u5 = jnp.dot(v2c_ref[pl.ds(0, tb, stride=8), :].astype(bf16), t5_ref[0],
                 preferred_element_type=f32)
    for di in range(1, 5):
        u5 += jnp.dot(v2c_ref[pl.ds(di, tb, stride=8), :].astype(bf16),
                      t5_ref[di], preferred_element_type=f32)
    h5 = _act(u5 + b5_ref[...])                              # (tb, 120)

    # ---- F6 linear + act -----------------------------------------------------
    h6 = _act(jnp.dot(h5.astype(bf16), w6_ref[...],
                      preferred_element_type=f32) + b6_ref[...])   # (tb, 84)

    # ---- RBF output: squared distances to class centers ----------------------
    cross = jnp.dot(h6, ct_ref[...], preferred_element_type=f32)   # (tb, 10)
    hh = jnp.sum(h6 * h6, axis=-1, keepdims=True)                  # (tb, 1)
    out_ref[...] = hh - 2.0 * cross + cc_ref[...]                  # (tb, 10)


# --------------------------------------------------------------------------
# One-time weight repacking (outside the jitted hot path).
# Banded ("Toeplitz") matrices: col = parity*128 + channel*W + j, where the
# conv output column is w_out = 2*j + parity.  Matmul weights are bf16; biases,
# RBF centers and norms stay f32.
# --------------------------------------------------------------------------
def pack_params(p):
    w1 = np.asarray(p["c1_w"], np.float32); b1 = np.asarray(p["c1_b"], np.float32)
    w3 = np.asarray(p["c3_w"], np.float32); b3 = np.asarray(p["c3_b"], np.float32)
    w5 = np.asarray(p["c5_w"], np.float32); b5 = np.asarray(p["c5_b"], np.float32)
    w6 = np.asarray(p["f6_w"], np.float32); b6 = np.asarray(p["f6_b"], np.float32)
    cen = np.asarray(p["centers"], np.float32)

    # c1: input cols = w_in (32), output cols = (parity, co, j), j in 0..13
    t1 = np.zeros((5, 32, 256), np.float32)
    b1r = np.zeros((1, 256), np.float32)
    for par in range(2):
        for co in range(6):
            for j in range(14):
                col = par * 128 + co * 14 + j
                b1r[0, col] = b1[co]
                w0 = 2 * j + par
                for di in range(5):
                    for dj in range(5):
                        t1[di, w0 + dj, col] = w1[co, 0, di, dj]

    # c3: input cols = ci*14 + w_in (84 of 128), output cols = (parity, k, j), j in 0..4
    t3 = np.zeros((5, 128, 256), np.float32)
    b3r = np.zeros((1, 256), np.float32)
    for par in range(2):
        for k in range(16):
            for j in range(5):
                col = par * 128 + k * 5 + j
                b3r[0, col] = b3[k]
                w0 = 2 * j + par
                for di in range(5):
                    for ci in range(6):
                        for dj in range(5):
                            t3[di, ci * 14 + w0 + dj, col] = w3[k, ci, di, dj]

    # c5 (1x1 output): input cols = ci*5 + dj (80 of 128), output cols = m (120)
    # The 0.25 average-pool scaling (two 0.5 factors) is folded in here.
    t5 = np.zeros((5, 128, 120), np.float32)
    t5[:, :80, :] = 0.25 * np.transpose(w5, (2, 1, 3, 0)).reshape(5, 80, 120)

    return {
        "t1": jnp.asarray(t1, jnp.bfloat16),
        "b1": jnp.asarray(b1r, jnp.float32),
        "t3": jnp.asarray(t3, jnp.bfloat16),
        "b3": jnp.asarray(b3r, jnp.float32),
        "t5": jnp.asarray(t5, jnp.bfloat16),
        "b5": jnp.asarray(b5.reshape(1, 120), jnp.float32),
        "w6": jnp.asarray(np.ascontiguousarray(w6.T), jnp.bfloat16),
        "b6": jnp.asarray(b6.reshape(1, 84), jnp.float32),
        "ct": jnp.asarray(np.ascontiguousarray(cen.T), jnp.float32),
        "cc": jnp.asarray(np.sum(cen * cen, axis=1).reshape(1, 10), jnp.float32),
    }


# --------------------------------------------------------------------------
# Deterministic parameters (matching the PyTorch module's structure).
# --------------------------------------------------------------------------
def _rbf_centers():
    centers = []
    for digit in range(10):
        bm = jnp.zeros((7, 12), jnp.float32)
        if digit == 0:
            bm = bm.at[1:6, 1:11].set(1.0)
        elif digit == 1:
            bm = bm.at[:, 6].set(1.0)
        centers.append(bm.reshape(-1))
    return jnp.stack(centers, axis=0)                          # (10, 84)


def init_params(key):
    def uinit(k, shape, fan_in):
        bound = 1.0 / jnp.sqrt(jnp.float32(fan_in))
        return jax.random.uniform(k, shape, jnp.float32, -bound, bound)

    ks = jax.random.split(key, 8)
    return {
        "c1_w": uinit(ks[0], (6, 1, 5, 5), 1 * 25),
        "c1_b": uinit(ks[1], (6,), 1 * 25),
        "c3_w": uinit(ks[2], (16, 6, 5, 5), 6 * 25),
        "c3_b": uinit(ks[3], (16,), 6 * 25),
        "c5_w": uinit(ks[4], (120, 16, 5, 5), 16 * 25),
        "c5_b": uinit(ks[5], (120,), 16 * 25),
        "f6_w": uinit(ks[6], (84, 120), 120),    # PyTorch Linear weight (out, in)
        "f6_b": uinit(ks[7], (84,), 120),
        "centers": _rbf_centers(),
    }


# --------------------------------------------------------------------------
# Forward pass: pad batch to a multiple of tb, run one fused pallas_call.
# --------------------------------------------------------------------------
@jax.jit
def lenet5_forward(packed, x):
    # x: (B, 1, 32, 32) float32, NCHW
    B = x.shape[0]
    tb = 16 if B >= 64 else 8          # images per grid step (sublane-aligned)
    Bp = ((B + tb - 1) // tb) * tb
    xi = x.reshape(B, 32, 32).astype(jnp.float32)
    if Bp != B:
        xi = jnp.concatenate([xi, jnp.zeros((Bp - B, 32, 32), jnp.float32)], axis=0)
    x2d = xi.reshape(Bp * 32, 32)

    R = tb * 32
    out = pl.pallas_call(
        _lenet_kernel,
        out_shape=jax.ShapeDtypeStruct((Bp, 10), jnp.float32),
        grid=(Bp // tb,),
        in_specs=[
            pl.BlockSpec((R, 32), lambda i: (i, 0)),            # input tile
            pl.BlockSpec((5, 32, 256), lambda i: (0, 0, 0)),    # t1 (bf16)
            pl.BlockSpec((1, 256), lambda i: (0, 0)),           # b1
            pl.BlockSpec((5, 128, 256), lambda i: (0, 0, 0)),   # t3 (bf16)
            pl.BlockSpec((1, 256), lambda i: (0, 0)),           # b3
            pl.BlockSpec((5, 128, 120), lambda i: (0, 0, 0)),   # t5 (bf16, x0.25)
            pl.BlockSpec((1, 120), lambda i: (0, 0)),           # b5
            pl.BlockSpec((120, 84), lambda i: (0, 0)),          # f6_w.T (bf16)
            pl.BlockSpec((1, 84), lambda i: (0, 0)),            # b6
            pl.BlockSpec((84, 10), lambda i: (0, 0)),           # centers.T
            pl.BlockSpec((1, 10), lambda i: (0, 0)),            # sum(centers^2)
        ],
        out_specs=pl.BlockSpec((tb, 10), lambda i: (i, 0)),
        scratch_shapes=[
            pltpu.VMEM((R, 128), jnp.float32),        # pre-pool staging buffer
            pltpu.VMEM((tb * 16, 128), jnp.float32),  # compact p1 (after s2)
            pltpu.VMEM((tb * 8, 128), jnp.float32),   # compact 4*s4 (pool sums)
        ],
        compiler_params=pltpu.CompilerParams(
            dimension_semantics=("parallel",),
            vmem_limit_bytes=32 * 1024 * 1024,
        ),
    )(x2d, packed["t1"], packed["b1"], packed["t3"], packed["b3"],
      packed["t5"], packed["b5"], packed["w6"], packed["b6"],
      packed["ct"], packed["cc"])
    return out[:B]                                              # (B, 10) squared distances


if __name__ == "__main__":
    key = jax.random.PRNGKey(0)
    pkey, xkey = jax.random.split(key)
    params = init_params(pkey)
    packed = pack_params(params)
    x = jax.random.normal(xkey, (2, 1, 32, 32), jnp.float32)
    out = jax.block_until_ready(lenet5_forward(packed, x))
    assert out.shape == (2, 10) and out.dtype == jnp.float32
    assert bool(jnp.all(jnp.isfinite(out)))
    print("KERNEL_OK")
</pallas_src>

<mosaic_0001>
module attributes {stable_mosaic.version = 11 : i64} {
  func.func @_lenet_kernel(%arg0: i32, %arg1: memref<256x32xf32, #tpu.memory_space<vmem>>, %arg2: memref<5x32x256xbf16, #tpu.memory_space<vmem>>, %arg3: memref<1x256xf32, #tpu.memory_space<vmem>>, %arg4: memref<5x128x256xbf16, #tpu.memory_space<vmem>>, %arg5: memref<1x256xf32, #tpu.memory_space<vmem>>, %arg6: memref<5x128x120xbf16, #tpu.memory_space<vmem>>, %arg7: memref<1x120xf32, #tpu.memory_space<vmem>>, %arg8: memref<120x84xbf16, #tpu.memory_space<vmem>>, %arg9: memref<1x84xf32, #tpu.memory_space<vmem>>, %arg10: memref<84x10xf32, #tpu.memory_space<vmem>>, %arg11: memref<1x10xf32, #tpu.memory_space<vmem>>, %arg12: memref<8x10xf32, #tpu.memory_space<vmem>>, %arg13: memref<256x128xf32, #tpu.memory_space<vmem>>, %arg14: memref<128x128xf32, #tpu.memory_space<vmem>>, %arg15: memref<64x128xf32, #tpu.memory_space<vmem>>) attributes {dimension_semantics = [#tpu.dimension_semantics<parallel>], iteration_bounds = array<i64: 1>, scalar_prefetch = 0 : i64, scratch_operands = 3 : i64, tpu.core_type = #tpu.core_type<tc>, window_params = [{transform_indices = @transform_0, window_bounds = array<i64: 256, 32>}, {pipeline_mode = #tpu.pipeline_mode<synchronous>, transform_indices = @transform_1, window_bounds = array<i64: 5, 32, 256>}, {pipeline_mode = #tpu.pipeline_mode<synchronous>, transform_indices = @transform_2, window_bounds = array<i64: 1, 256>}, {pipeline_mode = #tpu.pipeline_mode<synchronous>, transform_indices = @transform_3, window_bounds = array<i64: 5, 128, 256>}, {pipeline_mode = #tpu.pipeline_mode<synchronous>, transform_indices = @transform_4, window_bounds = array<i64: 1, 256>}, {pipeline_mode = #tpu.pipeline_mode<synchronous>, transform_indices = @transform_5, window_bounds = array<i64: 5, 128, 120>}, {pipeline_mode = #tpu.pipeline_mode<synchronous>, transform_indices = @transform_6, window_bounds = array<i64: 1, 120>}, {pipeline_mode = #tpu.pipeline_mode<synchronous>, transform_indices = @transform_7, window_bounds = array<i64: 120, 84>}, {pipeline_mode = #tpu.pipeline_mode<synchronous>, transform_indices = @transform_8, window_bounds = array<i64: 1, 84>}, {pipeline_mode = #tpu.pipeline_mode<synchronous>, transform_indices = @transform_9, window_bounds = array<i64: 84, 10>}, {pipeline_mode = #tpu.pipeline_mode<synchronous>, transform_indices = @transform_10, window_bounds = array<i64: 1, 10>}, {transform_indices = @transform_11, window_bounds = array<i64: 8, 10>}]} {
    %cst = arith.constant 0.000000e+00 : f32
    %0 = vector.broadcast %cst : f32 to vector<8x128xf32>
    %c248 = arith.constant 248 : index
    %c0 = arith.constant 0 : index
    %1 = vector.load %arg13[%c248, %c0] : memref<256x128xf32, #tpu.memory_space<vmem>>, vector<8x128xf32>
    tpu.vector_store %arg13[%c248, %c0], %0 {strides = array<i32>} : memref<256x128xf32, #tpu.memory_space<vmem>>, vector<8x128xf32>,
    %c0_0 = arith.constant 0 : index
    %c0_1 = arith.constant 0 : index
    %2 = vector.load %arg1[%c0_0, %c0_1] : memref<256x32xf32, #tpu.memory_space<vmem>>, vector<252x32xf32>
    %3 = arith.truncf %2 : vector<252x32xf32> to vector<252x32xbf16>
    %c0_2 = arith.constant 0 : index
    %c0_3 = arith.constant 0 : index
    %c0_4 = arith.constant 0 : index
    %4 = vector.load %arg2[%c0_2, %c0_3, %c0_4] : memref<5x32x256xbf16, #tpu.memory_space<vmem>>, vector<1x32x256xbf16>
    %5 = vector.shape_cast %4 : vector<1x32x256xbf16> to vector<32x256xbf16>
    %cst_5 = arith.constant dense<0.000000e+00> : vector<252x256xf32>
    %6 = tpu.matmul %3, %5, %cst_5 {dimension_numbers = #tpu.dot_dimension_numbers<[1], [0], [0], [1], [0, 0, 1, 1], [], []>} : vector<252x32xbf16>, vector<32x256xbf16>, vector<252x256xf32> -> vector<252x256xf32>
    %c1 = arith.constant 1 : index
    %c0_6 = arith.constant 0 : index
    %7 = vector.load %arg1[%c1, %c0_6] : memref<256x32xf32, #tpu.memory_space<vmem>>, vector<252x32xf32>
    %8 = arith.truncf %7 : vector<252x32xf32> to vector<252x32xbf16>
    %c1_7 = arith.constant 1 : index
    %c0_8 = arith.constant 0 : index
    %c0_9 = arith.constant 0 : index
    %9 = vector.load %arg2[%c1_7, %c0_8, %c0_9] : memref<5x32x256xbf16, #tpu.memory_space<vmem>>, vector<1x32x256xbf16>
    %10 = vector.shape_cast %9 : vector<1x32x256xbf16> to vector<32x256xbf16>
    %cst_10 = arith.constant dense<0.000000e+00> : vector<252x256xf32>
    %11 = tpu.matmul %8, %10, %cst_10 {dimension_numbers = #tpu.dot_dimension_numbers<[1], [0], [0], [1], [0, 0, 1, 1], [], []>} : vector<252x32xbf16>, vector<32x256xbf16>, vector<252x256xf32> -> vector<252x256xf32>
    %12 = arith.addf %6, %11 : vector<252x256xf32>
    %c2 = arith.constant 2 : index
    %c0_11 = arith.constant 0 : index
    %13 = vector.load %arg1[%c2, %c0_11] : memref<256x32xf32, #tpu.memory_space<vmem>>, vector<252x32xf32>
    %14 = arith.truncf %13 : vector<252x32xf32> to vector<252x32xbf16>
    %c2_12 = arith.constant 2 : index
    %c0_13 = arith.constant 0 : index
    %c0_14 = arith.constant 0 : index
    %15 = vector.load %arg2[%c2_12, %c0_13, %c0_14] : memref<5x32x256xbf16, #tpu.memory_space<vmem>>, vector<1x32x256xbf16>
    %16 = vector.shape_cast %15 : vector<1x32x256xbf16> to vector<32x256xbf16>
    %cst_15 = arith.constant dense<0.000000e+00> : vector<252x256xf32>
    %17 = tpu.matmul %14, %16, %cst_15 {dimension_numbers = #tpu.dot_dimension_numbers<[1], [0], [0], [1], [0, 0, 1, 1], [], []>} : vector<252x32xbf16>, vector<32x256xbf16>, vector<252x256xf32> -> vector<252x256xf32>
    %18 = arith.addf %12, %17 : vector<252x256xf32>
    %c3 = arith.constant 3 : index
    %c0_16 = arith.constant 0 : index
    %19 = vector.load %arg1[%c3, %c0_16] : memref<256x32xf32, #tpu.memory_space<vmem>>, vector<252x32xf32>
    %20 = arith.truncf %19 : vector<252x32xf32> to vector<252x32xbf16>
    %c3_17 = arith.constant 3 : index
    %c0_18 = arith.constant 0 : index
    %c0_19 = arith.constant 0 : index
    %21 = vector.load %arg2[%c3_17, %c0_18, %c0_19] : memref<5x32x256xbf16, #tpu.memory_space<vmem>>, vector<1x32x256xbf16>
    %22 = vector.shape_cast %21 : vector<1x32x256xbf16> to vector<32x256xbf16>
    %cst_20 = arith.constant dense<0.000000e+00> : vector<252x256xf32>
    %23 = tpu.matmul %20, %22, %cst_20 {dimension_numbers = #tpu.dot_dimension_numbers<[1], [0], [0], [1], [0, 0, 1, 1], [], []>} : vector<252x32xbf16>, vector<32x256xbf16>, vector<252x256xf32> -> vector<252x256xf32>
    %24 = arith.addf %18, %23 : vector<252x256xf32>
    %c4 = arith.constant 4 : index
    %c0_21 = arith.constant 0 : index
    %25 = vector.load %arg1[%c4, %c0_21] : memref<256x32xf32, #tpu.memory_space<vmem>>, vector<252x32xf32>
    %26 = arith.truncf %25 : vector<252x32xf32> to vector<252x32xbf16>
    %c4_22 = arith.constant 4 : index
    %c0_23 = arith.constant 0 : index
    %c0_24 = arith.constant 0 : index
    %27 = vector.load %arg2[%c4_22, %c0_23, %c0_24] : memref<5x32x256xbf16, #tpu.memory_space<vmem>>, vector<1x32x256xbf16>
    %28 = vector.shape_cast %27 : vector<1x32x256xbf16> to vector<32x256xbf16>
    %cst_25 = arith.constant dense<0.000000e+00> : vector<252x256xf32>
    %29 = tpu.matmul %26, %28, %cst_25 {dimension_numbers = #tpu.dot_dimension_numbers<[1], [0], [0], [1], [0, 0, 1, 1], [], []>} : vector<252x32xbf16>, vector<32x256xbf16>, vector<252x256xf32> -> vector<252x256xf32>
    %30 = arith.addf %24, %29 : vector<252x256xf32>
    %c0_26 = arith.constant 0 : index
    %c0_27 = arith.constant 0 : index
    %31 = vector.load %arg3[%c0_26, %c0_27] : memref<1x256xf32, #tpu.memory_space<vmem>>, vector<1x256xf32>
    %32 = vector.broadcast %31 : vector<1x256xf32> to vector<252x256xf32>
    %33 = arith.addf %30, %32 : vector<252x256xf32>
    %cst_28 = arith.constant 0.666666686 : f32
    %34 = vector.broadcast %cst_28 : f32 to vector<252x256xf32>
    %35 = arith.mulf %34, %33 : vector<252x256xf32>
    %36 = math.tanh %35 : vector<252x256xf32>
    %cst_29 = arith.constant 1.715900e+00 : f32
    %37 = vector.broadcast %cst_29 : f32 to vector<252x256xf32>
    %38 = arith.mulf %37, %36 : vector<252x256xf32>
    %39 = vector.extract_strided_slice %38 {offsets = [0, 0], sizes = [252, 128], strides = [1, 1]} : vector<252x256xf32> to vector<252x128xf32>
    %40 = vector.extract_strided_slice %38 {offsets = [0, 128], sizes = [252, 128], strides = [1, 1]} : vector<252x256xf32> to vector<252x128xf32>
    %41 = arith.maximumf %39, %40 : vector<252x128xf32>
    %c0_30 = arith.constant 0 : index
    %c0_31 = arith.constant 0 : index
    %42 = vector.load %arg13[%c0_30, %c0_31] : memref<256x128xf32, #tpu.memory_space<vmem>>, vector<252x128xf32>
    tpu.vector_store %arg13[%c0_30, %c0_31], %41 {strides = array<i32>} : memref<256x128xf32, #tpu.memory_space<vmem>>, vector<252x128xf32>,
    %c0_32 = arith.constant 0 : index
    %c0_33 = arith.constant 0 : index
    %43 = tpu.strided_load %arg13[%c0_32, %c0_33] {strides = array<i32: 2, 1>} : memref<256x128xf32, #tpu.memory_space<vmem>>, vector<128x128xf32>
    %c1_34 = arith.constant 1 : index
    %c0_35 = arith.constant 0 : index
    %44 = tpu.strided_load %arg13[%c1_34, %c0_35] {strides = array<i32: 2, 1>} : memref<256x128xf32, #tpu.memory_space<vmem>>, vector<128x128xf32>
    %45 = arith.maximumf %43, %44 : vector<128x128xf32>
    %c0_36 = arith.constant 0 : index
    %c0_37 = arith.constant 0 : index
    %46 = vector.load %arg14[%c0_36, %c0_37] : memref<128x128xf32, #tpu.memory_space<vmem>>, vector<128x128xf32>
    tpu.vector_store %arg14[%c0_36, %c0_37], %45 {strides = array<i32>} : memref<128x128xf32, #tpu.memory_space<vmem>>, vector<128x128xf32>,
    %c0_38 = arith.constant 0 : index
    %c0_39 = arith.constant 0 : index
    %47 = vector.load %arg14[%c0_38, %c0_39] : memref<128x128xf32, #tpu.memory_space<vmem>>, vector<124x128xf32>
    %48 = arith.truncf %47 : vector<124x128xf32> to vector<124x128xbf16>
    %c0_40 = arith.constant 0 : index
    %c0_41 = arith.constant 0 : index
    %c0_42 = arith.constant 0 : index
    %49 = vector.load %arg4[%c0_40, %c0_41, %c0_42] : memref<5x128x256xbf16, #tpu.memory_space<vmem>>, vector<1x128x256xbf16>
    %50 = vector.shape_cast %49 : vector<1x128x256xbf16> to vector<128x256xbf16>
    %cst_43 = arith.constant dense<0.000000e+00> : vector<124x256xf32>
    %51 = tpu.matmul %48, %50, %cst_43 {dimension_numbers = #tpu.dot_dimension_numbers<[1], [0], [0], [1], [0, 0, 1, 1], [], []>} : vector<124x128xbf16>, vector<128x256xbf16>, vector<124x256xf32> -> vector<124x256xf32>
    %c1_44 = arith.constant 1 : index
    %c0_45 = arith.constant 0 : index
    %52 = vector.load %arg14[%c1_44, %c0_45] : memref<128x128xf32, #tpu.memory_space<vmem>>, vector<124x128xf32>
    %53 = arith.truncf %52 : vector<124x128xf32> to vector<124x128xbf16>
    %c1_46 = arith.constant 1 : index
    %c0_47 = arith.constant 0 : index
    %c0_48 = arith.constant 0 : index
    %54 = vector.load %arg4[%c1_46, %c0_47, %c0_48] : memref<5x128x256xbf16, #tpu.memory_space<vmem>>, vector<1x128x256xbf16>
    %55 = vector.shape_cast %54 : vector<1x128x256xbf16> to vector<128x256xbf16>
    %cst_49 = arith.constant dense<0.000000e+00> : vector<124x256xf32>
    %56 = tpu.matmul %53, %55, %cst_49 {dimension_numbers = #tpu.dot_dimension_numbers<[1], [0], [0], [1], [0, 0, 1, 1], [], []>} : vector<124x128xbf16>, vector<128x256xbf16>, vector<124x256xf32> -> vector<124x256xf32>
    %57 = arith.addf %51, %56 : vector<124x256xf32>
    %c2_50 = arith.constant 2 : index
    %c0_51 = arith.constant 0 : index
    %58 = vector.load %arg14[%c2_50, %c0_51] : memref<128x128xf32, #tpu.memory_space<vmem>>, vector<124x128xf32>
    %59 = arith.truncf %58 : vector<124x128xf32> to vector<124x128xbf16>
    %c2_52 = arith.constant 2 : index
    %c0_53 = arith.constant 0 : index
    %c0_54 = arith.constant 0 : index
    %60 = vector.load %arg4[%c2_52, %c0_53, %c0_54] : memref<5x128x256xbf16, #tpu.memory_space<vmem>>, vector<1x128x256xbf16>
    %61 = vector.shape_cast %60 : vector<1x128x256xbf16> to vector<128x256xbf16>
    %cst_55 = arith.constant dense<0.000000e+00> : vector<124x256xf32>
    %62 = tpu.matmul %59, %61, %cst_55 {dimension_numbers = #tpu.dot_dimension_numbers<[1], [0], [0], [1], [0, 0, 1, 1], [], []>} : vector<124x128xbf16>, vector<128x256xbf16>, vector<124x256xf32> -> vector<124x256xf32>
    %63 = arith.addf %57, %62 : vector<124x256xf32>
    %c3_56 = arith.constant 3 : index
    %c0_57 = arith.constant 0 : index
    %64 = vector.load %arg14[%c3_56, %c0_57] : memref<128x128xf32, #tpu.memory_space<vmem>>, vector<124x128xf32>
    %65 = arith.truncf %64 : vector<124x128xf32> to vector<124x128xbf16>
    %c3_58 = arith.constant 3 : index
    %c0_59 = arith.constant 0 : index
    %c0_60 = arith.constant 0 : index
    %66 = vector.load %arg4[%c3_58, %c0_59, %c0_60] : memref<5x128x256xbf16, #tpu.memory_space<vmem>>, vector<1x128x256xbf16>
    %67 = vector.shape_cast %66 : vector<1x128x256xbf16> to vector<128x256xbf16>
    %cst_61 = arith.constant dense<0.000000e+00> : vector<124x256xf32>
    %68 = tpu.matmul %65, %67, %cst_61 {dimension_numbers = #tpu.dot_dimension_numbers<[1], [0], [0], [1], [0, 0, 1, 1], [], []>} : vector<124x128xbf16>, vector<128x256xbf16>, vector<124x256xf32> -> vector<124x256xf32>
    %69 = arith.addf %63, %68 : vector<124x256xf32>
    %c4_62 = arith.constant 4 : index
    %c0_63 = arith.constant 0 : index
    %70 = vector.load %arg14[%c4_62, %c0_63] : memref<128x128xf32, #tpu.memory_space<vmem>>, vector<124x128xf32>
    %71 = arith.truncf %70 : vector<124x128xf32> to vector<124x128xbf16>
    %c4_64 = arith.constant 4 : index
    %c0_65 = arith.constant 0 : index
    %c0_66 = arith.constant 0 : index
    %72 = vector.load %arg4[%c4_64, %c0_65, %c0_66] : memref<5x128x256xbf16, #tpu.memory_space<vmem>>, vector<1x128x256xbf16>
    %73 = vector.shape_cast %72 : vector<1x128x256xbf16> to vector<128x256xbf16>
    %cst_67 = arith.constant dense<0.000000e+00> : vector<124x256xf32>
    %74 = tpu.matmul %71, %73, %cst_67 {dimension_numbers = #tpu.dot_dimension_numbers<[1], [0], [0], [1], [0, 0, 1, 1], [], []>} : vector<124x128xbf16>, vector<128x256xbf16>, vector<124x256xf32> -> vector<124x256xf32>
    %75 = arith.addf %69, %74 : vector<124x256xf32>
    %c0_68 = arith.constant 0 : index
    %c0_69 = arith.constant 0 : index
    %76 = vector.load %arg5[%c0_68, %c0_69] : memref<1x256xf32, #tpu.memory_space<vmem>>, vector<1x256xf32>
    %77 = vector.broadcast %76 : vector<1x256xf32> to vector<124x256xf32>
    %78 = arith.addf %75, %77 : vector<124x256xf32>
    %cst_70 = arith.constant 0.666666686 : f32
    %79 = vector.broadcast %cst_70 : f32 to vector<124x256xf32>
    %80 = arith.mulf %79, %78 : vector<124x256xf32>
    %81 = math.tanh %80 : vector<124x256xf32>
    %cst_71 = arith.constant 1.715900e+00 : f32
    %82 = vector.broadcast %cst_71 : f32 to vector<124x256xf32>
    %83 = arith.mulf %82, %81 : vector<124x256xf32>
    %84 = vector.extract_strided_slice %83 {offsets = [0, 0], sizes = [124, 128], strides = [1, 1]} : vector<124x256xf32> to vector<124x128xf32>
    %85 = vector.extract_strided_slice %83 {offsets = [0, 128], sizes = [124, 128], strides = [1, 1]} : vector<124x256xf32> to vector<124x128xf32>
    %86 = arith.addf %84, %85 : vector<124x128xf32>
    %c0_72 = arith.constant 0 : index
    %c0_73 = arith.constant 0 : index
    %87 = vector.load %arg13[%c0_72, %c0_73] : memref<256x128xf32, #tpu.memory_space<vmem>>, vector<124x128xf32>
    tpu.vector_store %arg13[%c0_72, %c0_73], %86 {strides = array<i32>} : memref<256x128xf32, #tpu.memory_space<vmem>>, vector<124x128xf32>,
    %c0_74 = arith.constant 0 : index
    %c0_75 = arith.constant 0 : index
    %88 = tpu.strided_load %arg13[%c0_74, %c0_75] {strides = array<i32: 2, 1>} : memref<256x128xf32, #tpu.memory_space<vmem>>, vector<64x128xf32>
    %c1_76 = arith.constant 1 : index
    %c0_77 = arith.constant 0 : index
    %89 = tpu.strided_load %arg13[%c1_76, %c0_77] {strides = array<i32: 2, 1>} : memref<256x128xf32, #tpu.memory_space<vmem>>, vector<64x128xf32>
    %90 = arith.addf %88, %89 : vector<64x128xf32>
    %c0_78 = arith.constant 0 : index
    %c0_79 = arith.constant 0 : index
    %91 = vector.load %arg15[%c0_78, %c0_79] : memref<64x128xf32, #tpu.memory_space<vmem>>, vector<64x128xf32>
    tpu.vector_store %arg15[%c0_78, %c0_79], %90 {strides = array<i32>} : memref<64x128xf32, #tpu.memory_space<vmem>>, vector<64x128xf32>,
    %c0_80 = arith.constant 0 : index
    %c0_81 = arith.constant 0 : index
    %92 = tpu.strided_load %arg15[%c0_80, %c0_81] {strides = array<i32: 8, 1>} : memref<64x128xf32, #tpu.memory_space<vmem>>, vector<8x128xf32>
    %93 = arith.truncf %92 : vector<8x128xf32> to vector<8x128xbf16>
    %c0_82 = arith.constant 0 : index
    %c0_83 = arith.constant 0 : index
    %c0_84 = arith.constant 0 : index
    %94 = vector.load %arg6[%c0_82, %c0_83, %c0_84] : memref<5x128x120xbf16, #tpu.memory_space<vmem>>, vector<1x128x120xbf16>
    %95 = vector.shape_cast %94 : vector<1x128x120xbf16> to vector<128x120xbf16>
    %cst_85 = arith.constant dense<0.000000e+00> : vector<8x120xf32>
    %96 = tpu.matmul %93, %95, %cst_85 {dimension_numbers = #tpu.dot_dimension_numbers<[1], [0], [0], [1], [0, 0, 1, 1], [], []>} : vector<8x128xbf16>, vector<128x120xbf16>, vector<8x120xf32> -> vector<8x120xf32>
    %c1_86 = arith.constant 1 : index
    %c0_87 = arith.constant 0 : index
    %97 = tpu.strided_load %arg15[%c1_86, %c0_87] {strides = array<i32: 8, 1>} : memref<64x128xf32, #tpu.memory_space<vmem>>, vector<8x128xf32>
    %98 = arith.truncf %97 : vector<8x128xf32> to vector<8x128xbf16>
    %c1_88 = arith.constant 1 : index
    %c0_89 = arith.constant 0 : index
    %c0_90 = arith.constant 0 : index
    %99 = vector.load %arg6[%c1_88, %c0_89, %c0_90] : memref<5x128x120xbf16, #tpu.memory_space<vmem>>, vector<1x128x120xbf16>
    %100 = vector.shape_cast %99 : vector<1x128x120xbf16> to vector<128x120xbf16>
    %cst_91 = arith.constant dense<0.000000e+00> : vector<8x120xf32>
    %101 = tpu.matmul %98, %100, %cst_91 {dimension_numbers = #tpu.dot_dimension_numbers<[1], [0], [0], [1], [0, 0, 1, 1], [], []>} : vector<8x128xbf16>, vector<128x120xbf16>, vector<8x120xf32> -> vector<8x120xf32>
    %102 = arith.addf %96, %101 : vector<8x120xf32>
    %c2_92 = arith.constant 2 : index
    %c0_93 = arith.constant 0 : index
    %103 = tpu.strided_load %arg15[%c2_92, %c0_93] {strides = array<i32: 8, 1>} : memref<64x128xf32, #tpu.memory_space<vmem>>, vector<8x128xf32>
    %104 = arith.truncf %103 : vector<8x128xf32> to vector<8x128xbf16>
    %c2_94 = arith.constant 2 : index
    %c0_95 = arith.constant 0 : index
    %c0_96 = arith.constant 0 : index
    %105 = vector.load %arg6[%c2_94, %c0_95, %c0_96] : memref<5x128x120xbf16, #tpu.memory_space<vmem>>, vector<1x128x120xbf16>
    %106 = vector.shape_cast %105 : vector<1x128x120xbf16> to vector<128x120xbf16>
    %cst_97 = arith.constant dense<0.000000e+00> : vector<8x120xf32>
    %107 = tpu.matmul %104, %106, %cst_97 {dimension_numbers = #tpu.dot_dimension_numbers<[1], [0], [0], [1], [0, 0, 1, 1], [], []>} : vector<8x128xbf16>, vector<128x120xbf16>, vector<8x120xf32> -> vector<8x120xf32>
    %108 = arith.addf %102, %107 : vector<8x120xf32>
    %c3_98 = arith.constant 3 : index
    %c0_99 = arith.constant 0 : index
    %109 = tpu.strided_load %arg15[%c3_98, %c0_99] {strides = array<i32: 8, 1>} : memref<64x128xf32, #tpu.memory_space<vmem>>, vector<8x128xf32>
    %110 = arith.truncf %109 : vector<8x128xf32> to vector<8x128xbf16>
    %c3_100 = arith.constant 3 : index
    %c0_101 = arith.constant 0 : index
    %c0_102 = arith.constant 0 : index
    %111 = vector.load %arg6[%c3_100, %c0_101, %c0_102] : memref<5x128x120xbf16, #tpu.memory_space<vmem>>, vector<1x128x120xbf16>
    %112 = vector.shape_cast %111 : vector<1x128x120xbf16> to vector<128x120xbf16>
    %cst_103 = arith.constant dense<0.000000e+00> : vector<8x120xf32>
    %113 = tpu.matmul %110, %112, %cst_103 {dimension_numbers = #tpu.dot_dimension_numbers<[1], [0], [0], [1], [0, 0, 1, 1], [], []>} : vector<8x128xbf16>, vector<128x120xbf16>, vector<8x120xf32> -> vector<8x120xf32>
    %114 = arith.addf %108, %113 : vector<8x120xf32>
    %c4_104 = arith.constant 4 : index
    %c0_105 = arith.constant 0 : index
    %115 = tpu.strided_load %arg15[%c4_104, %c0_105] {strides = array<i32: 8, 1>} : memref<64x128xf32, #tpu.memory_space<vmem>>, vector<8x128xf32>
    %116 = arith.truncf %115 : vector<8x128xf32> to vector<8x128xbf16>
    %c4_106 = arith.constant 4 : index
    %c0_107 = arith.constant 0 : index
    %c0_108 = arith.constant 0 : index
    %117 = vector.load %arg6[%c4_106, %c0_107, %c0_108] : memref<5x128x120xbf16, #tpu.memory_space<vmem>>, vector<1x128x120xbf16>
    %118 = vector.shape_cast %117 : vector<1x128x120xbf16> to vector<128x120xbf16>
    %cst_109 = arith.constant dense<0.000000e+00> : vector<8x120xf32>
    %119 = tpu.matmul %116, %118, %cst_109 {dimension_numbers = #tpu.dot_dimension_numbers<[1], [0], [0], [1], [0, 0, 1, 1], [], []>} : vector<8x128xbf16>, vector<128x120xbf16>, vector<8x120xf32> -> vector<8x120xf32>
    %120 = arith.addf %114, %119 : vector<8x120xf32>
    %c0_110 = arith.constant 0 : index
    %c0_111 = arith.constant 0 : index
    %121 = vector.load %arg7[%c0_110, %c0_111] : memref<1x120xf32, #tpu.memory_space<vmem>>, vector<1x120xf32>
    %122 = vector.broadcast %121 : vector<1x120xf32> to vector<8x120xf32>
    %123 = arith.addf %120, %122 : vector<8x120xf32>
    %cst_112 = arith.constant 0.666666686 : f32
    %124 = vector.broadcast %cst_112 : f32 to vector<8x120xf32>
    %125 = arith.mulf %124, %123 : vector<8x120xf32>
    %126 = math.tanh %125 : vector<8x120xf32>
    %cst_113 = arith.constant 1.715900e+00 : f32
    %127 = vector.broadcast %cst_113 : f32 to vector<8x120xf32>
    %128 = arith.mulf %127, %126 : vector<8x120xf32>
    %129 = arith.truncf %128 : vector<8x120xf32> to vector<8x120xbf16>
    %c0_114 = arith.constant 0 : index
    %c0_115 = arith.constant 0 : index
    %130 = vector.load %arg8[%c0_114, %c0_115] : memref<120x84xbf16, #tpu.memory_space<vmem>>, vector<120x84xbf16>
    %cst_116 = arith.constant dense<0.000000e+00> : vector<8x84xf32>
    %131 = tpu.matmul %129, %130, %cst_116 {dimension_numbers = #tpu.dot_dimension_numbers<[1], [0], [0], [1], [0, 0, 1, 1], [], []>} : vector<8x120xbf16>, vector<120x84xbf16>, vector<8x84xf32> -> vector<8x84xf32>
    %c0_117 = arith.constant 0 : index
    %c0_118 = arith.constant 0 : index
    %132 = vector.load %arg9[%c0_117, %c0_118] : memref<1x84xf32, #tpu.memory_space<vmem>>, vector<1x84xf32>
    %133 = vector.broadcast %132 : vector<1x84xf32> to vector<8x84xf32>
    %134 = arith.addf %131, %133 : vector<8x84xf32>
    %cst_119 = arith.constant 0.666666686 : f32
    %135 = vector.broadcast %cst_119 : f32 to vector<8x84xf32>
    %136 = arith.mulf %135, %134 : vector<8x84xf32>
    %137 = math.tanh %136 : vector<8x84xf32>
    %cst_120 = arith.constant 1.715900e+00 : f32
    %138 = vector.broadcast %cst_120 : f32 to vector<8x84xf32>
    %139 = arith.mulf %138, %137 : vector<8x84xf32>
    %c0_121 = arith.constant 0 : index
    %c0_122 = arith.constant 0 : index
    %140 = vector.load %arg10[%c0_121, %c0_122] : memref<84x10xf32, #tpu.memory_space<vmem>>, vector<84x10xf32>
    %cst_123 = arith.constant dense<0.000000e+00> : vector<8x10xf32>
    %141 = tpu.matmul %139, %140, %cst_123 {dimension_numbers = #tpu.dot_dimension_numbers<[1], [0], [0], [1], [0, 0, 1, 1], [], []>} : vector<8x84xf32>, vector<84x10xf32>, vector<8x10xf32> -> vector<8x10xf32>
    %142 = arith.mulf %139, %139 : vector<8x84xf32>
    %cst_124 = arith.constant dense<0.000000e+00> : vector<8xf32>
    %143 = vector.multi_reduction <add>, %142, %cst_124 [1] : vector<8x84xf32> to vector<8xf32>
    %144 = vector.shape_cast %143 : vector<8xf32> to vector<8x1xf32>
    %cst_125 = arith.constant 2.000000e+00 : f32
    %145 = vector.broadcast %cst_125 : f32 to vector<8x10xf32>
    %146 = arith.mulf %145, %141 : vector<8x10xf32>
    %147 = vector.broadcast %144 : vector<8x1xf32> to vector<8x10xf32>
    %148 = arith.subf %147, %146 : vector<8x10xf32>
    %c0_126 = arith.constant 0 : index
    %c0_127 = arith.constant 0 : index
    %149 = vector.load %arg11[%c0_126, %c0_127] : memref<1x10xf32, #tpu.memory_space<vmem>>, vector<1x10xf32>
    %150 = vector.broadcast %149 : vector<1x10xf32> to vector<8x10xf32>
    %151 = arith.addf %148, %150 : vector<8x10xf32>
    %c0_128 = arith.constant 0 : index
    %c0_129 = arith.constant 0 : index
    %152 = vector.load %arg12[%c0_128, %c0_129] : memref<8x10xf32, #tpu.memory_space<vmem>>, vector<8x10xf32>
    tpu.vector_store %arg12[%c0_128, %c0_129], %151 {strides = array<i32>} : memref<8x10xf32, #tpu.memory_space<vmem>>, vector<8x10xf32>,
    return
  }
  func.func @transform_0(%arg0: i32) -> (i32, i32) {
    %c0_i32 = arith.constant 0 : i32
    %c0_i32_0 = arith.constant 0 : i32
    return %arg0, %c0_i32 : i32, i32
  }
  func.func @transform_1(%arg0: i32) -> (i32, i32, i32) {
    %c0_i32 = arith.constant 0 : i32
    %c0_i32_0 = arith.constant 0 : i32
    %c0_i32_1 = arith.constant 0 : i32
    %c0_i32_2 = arith.constant 0 : i32
    return %c0_i32, %c0_i32_0, %c0_i32_1 : i32, i32, i32
  }
  func.func @transform_2(%arg0: i32) -> (i32, i32) {
    %c0_i32 = arith.constant 0 : i32
    %c0_i32_0 = arith.constant 0 : i32
    %c0_i32_1 = arith.constant 0 : i32
    return %c0_i32, %c0_i32_0 : i32, i32
  }
  func.func @transform_3(%arg0: i32) -> (i32, i32, i32) {
    %c0_i32 = arith.constant 0 : i32
    %c0_i32_0 = arith.constant 0 : i32
    %c0_i32_1 = arith.constant 0 : i32
    %c0_i32_2 = arith.constant 0 : i32
    return %c0_i32, %c0_i32_0, %c0_i32_1 : i32, i32, i32
  }
  func.func @transform_4(%arg0: i32) -> (i32, i32) {
    %c0_i32 = arith.constant 0 : i32
    %c0_i32_0 = arith.constant 0 : i32
    %c0_i32_1 = arith.constant 0 : i32
    return %c0_i32, %c0_i32_0 : i32, i32
  }
  func.func @transform_5(%arg0: i32) -> (i32, i32, i32) {
    %c0_i32 = arith.constant 0 : i32
    %c0_i32_0 = arith.constant 0 : i32
    %c0_i32_1 = arith.constant 0 : i32
    %c0_i32_2 = arith.constant 0 : i32
    return %c0_i32, %c0_i32_0, %c0_i32_1 : i32, i32, i32
  }
  func.func @transform_6(%arg0: i32) -> (i32, i32) {
    %c0_i32 = arith.constant 0 : i32
    %c0_i32_0 = arith.constant 0 : i32
    %c0_i32_1 = arith.constant 0 : i32
    return %c0_i32, %c0_i32_0 : i32, i32
  }
  func.func @transform_7(%arg0: i32) -> (i32, i32) {
    %c0_i32 = arith.constant 0 : i32
    %c0_i32_0 = arith.constant 0 : i32
    %c0_i32_1 = arith.constant 0 : i32
    return %c0_i32, %c0_i32_0 : i32, i32
  }
  func.func @transform_8(%arg0: i32) -> (i32, i32) {
    %c0_i32 = arith.constant 0 : i32
    %c0_i32_0 = arith.constant 0 : i32
    %c0_i32_1 = arith.constant 0 : i32
    return %c0_i32, %c0_i32_0 : i32, i32
  }
  func.func @transform_9(%arg0: i32) -> (i32, i32) {
    %c0_i32 = arith.constant 0 : i32
    %c0_i32_0 = arith.constant 0 : i32
    %c0_i32_1 = arith.constant 0 : i32
    return %c0_i32, %c0_i32_0 : i32, i32
  }
  func.func @transform_10(%arg0: i32) -> (i32, i32) {
    %c0_i32 = arith.constant 0 : i32
    %c0_i32_0 = arith.constant 0 : i32
    %c0_i32_1 = arith.constant 0 : i32
    return %c0_i32, %c0_i32_0 : i32, i32
  }
  func.func @transform_11(%arg0: i32) -> (i32, i32) {
    %c0_i32 = arith.constant 0 : i32
    %c0_i32_0 = arith.constant 0 : i32
    return %arg0, %c0_i32 : i32, i32
  }
}

</mosaic_0001>

<llo_original>
// kernel: lenet5_forward.1
$region0: #{lenet5_forward.1}
  #allocation0 [shape = 'u32[]', space=smem, size = 0x4, offset = 0x4, fixed_abs, tag = 'smem constant byte address 0x4 - core index']
  #allocation1 [shape = 'u32[144,128]{1,0:T(1,128)}', space=vmem, size = 0x12000, scoped, tag = 'internal scratch']
  #allocation2 [shape = 'f32[256,128]{1,0:T(8,128)}', space=vmem, size = 0x20000, scoped, tag = 'scratch operand']
  #allocation3 [shape = 'f32[128,128]{1,0:T(8,128)}', space=vmem, size = 0x10000, scoped, tag = 'scratch operand']
  #allocation4 [shape = 'f32[64,128]{1,0:T(8,128)}', space=vmem, size = 0x8000, scoped, tag = 'scratch operand']
  %s0 = inlined_call_operand.vmem [shape: f32[256,32], index: 0, kind: input, shape index: {}]
  %s1 = inlined_call_operand.vmem [shape: bf16[5,32,256], index: 1, kind: input, shape index: {}]
  %s2 = inlined_call_operand.vmem [shape: f32[1,256], index: 2, kind: input, shape index: {}]
  %s3 = inlined_call_operand.vmem [shape: bf16[5,128,256], index: 3, kind: input, shape index: {}]
  %s4 = inlined_call_operand.vmem [shape: f32[1,256], index: 4, kind: input, shape index: {}]
  %s5 = inlined_call_operand.vmem [shape: bf16[5,128,120], index: 5, kind: input, shape index: {}]
  %s6 = inlined_call_operand.vmem [shape: f32[1,120], index: 6, kind: input, shape index: {}]
  %s7 = inlined_call_operand.vmem [shape: bf16[120,84], index: 7, kind: input, shape index: {}]
  %s8 = inlined_call_operand.vmem [shape: f32[1,84], index: 8, kind: input, shape index: {}]
  %s9 = inlined_call_operand.vmem [shape: f32[84,10], index: 9, kind: input, shape index: {}]
  %s10 = inlined_call_operand.vmem [shape: f32[1,10], index: 10, kind: input, shape index: {}]
  %s11 = inlined_call_operand.vmem [shape: f32[8,10], index: 11, kind: output, shape index: {}]
  %s12 = sld [smem:[#allocation0]]
  $region54: #{lenet5_forward.1} parent=0
    _
  %s14 = ssub.s32 1, %s12
  %s15 = scalar_select 0, %s14, %s12
  // Predicated region
  $region2: #{lenet5_forward.1} parent=0 // pred_check
    _
  $region3: #{lenet5_forward.1} parent=0 // pred_check_branch
    %17 = sbr.rel (0) target = $region5
  $region4: #{lenet5_forward.1} parent=0 // pred_region
    _
  $region5: #{lenet5_forward.1} parent=0 // pred_fallthru
    _
  // Predicated region
  $region6: #{lenet5_forward.1} parent=0 // pred_check
    _
  $region7: #{lenet5_forward.1} parent=0 // pred_check_branch
    %19 = sbr.rel (0) target = $region9
  $region8: #{lenet5_forward.1} parent=0 // pred_region
    _
  $region9: #{lenet5_forward.1} parent=0 // pred_fallthru
    _
  // Predicated region
  $region10: #{lenet5_forward.1} parent=0 // pred_check
    _
  $region11: #{lenet5_forward.1} parent=0 // pred_check_branch
    %21 = sbr.rel (0) target = $region13
  $region12: #{lenet5_forward.1} parent=0 // pred_region
    _
  $region13: #{lenet5_forward.1} parent=0 // pred_fallthru
    _
  // Predicated region
  $region14: #{lenet5_forward.1} parent=0 // pred_check
    _
  $region15: #{lenet5_forward.1} parent=0 // pred_check_branch
    %23 = sbr.rel (0) target = $region17
  $region16: #{lenet5_forward.1} parent=0 // pred_region
    _
  $region17: #{lenet5_forward.1} parent=0 // pred_fallthru
    _
  // Predicated region
  $region18: #{lenet5_forward.1} parent=0 // pred_check
    _
  $region19: #{lenet5_forward.1} parent=0 // pred_check_branch
    %25 = sbr.rel (0) target = $region21
  $region20: #{lenet5_forward.1} parent=0 // pred_region
    _
  $region21: #{lenet5_forward.1} parent=0 // pred_fallthru
    _
  // Predicated region
  $region22: #{lenet5_forward.1} parent=0 // pred_check
    _
  $region23: #{lenet5_forward.1} parent=0 // pred_check_branch
    %27 = sbr.rel (0) target = $region25
  $region24: #{lenet5_forward.1} parent=0 // pred_region
    _
  $region25: #{lenet5_forward.1} parent=0 // pred_fallthru
    _
  // Predicated region
  $region26: #{lenet5_forward.1} parent=0 // pred_check
    _
  $region27: #{lenet5_forward.1} parent=0 // pred_check_branch
    %29 = sbr.rel (0) target = $region29
  $region28: #{lenet5_forward.1} parent=0 // pred_region
    _
  $region29: #{lenet5_forward.1} parent=0 // pred_fallthru
    _
  // Predicated region
  $region30: #{lenet5_forward.1} parent=0 // pred_check
    _
  $region31: #{lenet5_forward.1} parent=0 // pred_check_branch
    %31 = sbr.rel (0) target = $region33
  $region32: #{lenet5_forward.1} parent=0 // pred_region
    _
  $region33: #{lenet5_forward.1} parent=0 // pred_fallthru
    _
  // Predicated region
  $region34: #{lenet5_forward.1} parent=0 // pred_check
    _
  $region35: #{lenet5_forward.1} parent=0 // pred_check_branch
    %33 = sbr.rel (0) target = $region37
  $region36: #{lenet5_forward.1} parent=0 // pred_region
    _
  $region37: #{lenet5_forward.1} parent=0 // pred_fallthru
    _
  // Predicated region
  $region38: #{lenet5_forward.1} parent=0 // pred_check
    _
  $region39: #{lenet5_forward.1} parent=0 // pred_check_branch
    %35 = sbr.rel (0) target = $region41
  $region40: #{lenet5_forward.1} parent=0 // pred_region
    _
  $region41: #{lenet5_forward.1} parent=0 // pred_fallthru
    _
  // Predicated region
  $region42: #{lenet5_forward.1} parent=0 // pred_check
    _
  $region43: #{lenet5_forward.1} parent=0 // pred_check_branch
    %37 = sbr.rel (0) target = $region45
  $region44: #{lenet5_forward.1} parent=0 // pred_region
    _
  $region45: #{lenet5_forward.1} parent=0 // pred_fallthru
    _
  %39 = vst [vmem:[#allocation2 + $0xf8] sm:$0xff] 0.0
  %v40 = vld [vmem:[%s0] sm:$0xff]
  %v41 = vld [vmem:[%s0 + $0x8] sm:$0xff]
  %v42 = vld [vmem:[%s0 + $0x10] sm:$0xff]
  %v43 = vld [vmem:[%s0 + $0x18] sm:$0xff]
  %v44 = vld [vmem:[%s0 + $0x20] sm:$0xff]
  %v45 = vld [vmem:[%s0 + $0x28] sm:$0xff]
  %v46 = vld [vmem:[%s0 + $0x30] sm:$0xff]
  %v47 = vld [vmem:[%s0 + $0x38] sm:$0xff]
  %v48 = vld [vmem:[%s0 + $0x40] sm:$0xff]
  %v49 = vld [vmem:[%s0 + $0x48] sm:$0xff]
  %v50 = vld [vmem:[%s0 + $0x50] sm:$0xff]
  %v51 = vld [vmem:[%s0 + $0x58] sm:$0xff]
  %v52 = vld [vmem:[%s0 + $0x60] sm:$0xff]
  %v53 = vld [vmem:[%s0 + $0x68] sm:$0xff]
  %v54 = vld [vmem:[%s0 + $0x70] sm:$0xff]
  %v55 = vld [vmem:[%s0 + $0x78] sm:$0xff]
  %v56 = vld [vmem:[%s0 + $0x80] sm:$0xff]
  %v57 = vld [vmem:[%s0 + $0x88] sm:$0xff]
  %v58 = vld [vmem:[%s0 + $0x90] sm:$0xff]
  %v59 = vld [vmem:[%s0 + $0x98] sm:$0xff]
  %v60 = vld [vmem:[%s0 + $0xa0] sm:$0xff]
  %v61 = vld [vmem:[%s0 + $0xa8] sm:$0xff]
  %v62 = vld [vmem:[%s0 + $0xb0] sm:$0xff]
  %v63 = vld [vmem:[%s0 + $0xb8] sm:$0xff]
  %v64 = vld [vmem:[%s0 + $0xc0] sm:$0xff]
  %v65 = vld [vmem:[%s0 + $0xc8] sm:$0xff]
  %v66 = vld [vmem:[%s0 + $0xd0] sm:$0xff]
  %v67 = vld [vmem:[%s0 + $0xd8] sm:$0xff]
  %v68 = vld [vmem:[%s0 + $0xe0] sm:$0xff]
  %v69 = vld [vmem:[%s0 + $0xe8] sm:$0xff]
  %v70 = vld [vmem:[%s0 + $0xf0] sm:$0xff]
  %v71 = vld [vmem:[%s0 + $0xf8] sm:$0xf]
  %v72 = vpack.c.bf16 %v41, %v40
  %v73 = vpack.c.bf16 %v43, %v42
  %v74 = vpack.c.bf16 %v45, %v44
  %v75 = vpack.c.bf16 %v47, %v46
  %v76 = vpack.c.bf16 %v49, %v48
  %v77 = vpack.c.bf16 %v51, %v50
  %v78 = vpack.c.bf16 %v53, %v52
  %v79 = vpack.c.bf16 %v55, %v54
  %v80 = vpack.c.bf16 %v57, %v56
  %v81 = vpack.c.bf16 %v59, %v58
  %v82 = vpack.c.bf16 %v61, %v60
  %v83 = vpack.c.bf16 %v63, %v62
  %v84 = vpack.c.bf16 %v65, %v64
  %v85 = vpack.c.bf16 %v67, %v66
  %v86 = vpack.c.bf16 %v69, %v68
  %v87 = vpack.c.bf16 %v71, %v70
  %v88 = vld [vmem:[%s1] sm:$0xff]
  %v89 = vld [vmem:[%s1 + $0x8] sm:$0xff]
  %v90 = vld [vmem:[%s1 + $0x10] sm:$0xff]
  %v91 = vld [vmem:[%s1 + $0x18] sm:$0xff]
  %v92 = vld [vmem:[%s0 + $0x1] sm:$0xff]
  %v93 = vld [vmem:[%s0 + $0x9] sm:$0xff]
  %v94 = vld [vmem:[%s0 + $0x11] sm:$0xff]
  %v95 = vld [vmem:[%s0 + $0x19] sm:$0xff]
  %v96 = vld [vmem:[%s0 + $0x21] sm:$0xff]
  %v97 = vld [vmem:[%s0 + $0x29] sm:$0xff]
  %v98 = vld [vmem:[%s0 + $0x31] sm:$0xff]
  %v99 = vld [vmem:[%s0 + $0x39] sm:$0xff]
  %v100 = vld [vmem:[%s0 + $0x41] sm:$0xff]
  %v101 = vld [vmem:[%s0 + $0x49] sm:$0xff]
  %v102 = vld [vmem:[%s0 + $0x51] sm:$0xff]
  %v103 = vld [vmem:[%s0 + $0x59] sm:$0xff]
  %v104 = vld [vmem:[%s0 + $0x61] sm:$0xff]
  %v105 = vld [vmem:[%s0 + $0x69] sm:$0xff]
  %v106 = vld [vmem:[%s0 + $0x71] sm:$0xff]
  %v107 = vld [vmem:[%s0 + $0x79] sm:$0xff]
  %v108 = vld [vmem:[%s0 + $0x81] sm:$0xff]
  %v109 = vld [vmem:[%s0 + $0x89] sm:$0xff]
  %v110 = vld [vmem:[%s0 + $0x91] sm:$0xff]
  %v111 = vld [vmem:[%s0 + $0x99] sm:$0xff]
  %v112 = vld [vmem:[%s0 + $0xa1] sm:$0xff]
  %v113 = vld [vmem:[%s0 + $0xa9] sm:$0xff]
  %v114 = vld [vmem:[%s0 + $0xb1] sm:$0xff]
  %v115 = vld [vmem:[%s0 + $0xb9] sm:$0xff]
  %v116 = vld [vmem:[%s0 + $0xc1] sm:$0xff]
  %v117 = vld [vmem:[%s0 + $0xc9] sm:$0xff]
  %v118 = vld [vmem:[%s0 + $0xd1] sm:$0xff]
  %v119 = vld [vmem:[%s0 + $0xd9] sm:$0xff]
  %v120 = vld [vmem:[%s0 + $0xe1] sm:$0xff]
  %v121 = vld [vmem:[%s0 + $0xe9] sm:$0xff]
  %v122 = vld [vmem:[%s0 + $0xf1] sm:$0xff]
  %v123 = vld [vmem:[%s0 + $0xf9] sm:$0xf]
  %v124 = vpack.c.bf16 %v93, %v92
  %v125 = vpack.c.bf16 %v95, %v94
  %v126 = vpack.c.bf16 %v97, %v96
  %v127 = vpack.c.bf16 %v99, %v98
  %v128 = vpack.c.bf16 %v101, %v100
  %v129 = vpack.c.bf16 %v103, %v102
  %v130 = vpack.c.bf16 %v105, %v104
  %v131 = vpack.c.bf16 %v107, %v106
  %v132 = vpack.c.bf16 %v109, %v108
  %v133 = vpack.c.bf16 %v111, %v110
  %v134 = vpack.c.bf16 %v113, %v112
  %v135 = vpack.c.bf16 %v115, %v114
  %v136 = vpack.c.bf16 %v117, %v116
  %v137 = vpack.c.bf16 %v119, %v118
  %v138 = vpack.c.bf16 %v121, %v120
  %v139 = vpack.c.bf16 %v123, %v122
  %s140 = scalar_lea.vmem %s1, 32
  %v141 = vld [vmem:[%s140] sm:$0xff]
  %v142 = vld [vmem:[%s140 + $0x8] sm:$0xff]
  %v143 = vld [vmem:[%s140 + $0x10] sm:$0xff]
  %v144 = vld [vmem:[%s140 + $0x18] sm:$0xff]
  %v149 = vunpack.c.l.b16 %v141
  %v150 = vunpack.c.h.b16 %v141
  %v151 = vunpack.c.l.b16 %v142
  %v152 = vunpack.c.h.b16 %v142
  %v153 = vunpack.c.l.b16 %v143
  %v154 = vunpack.c.h.b16 %v143
  %v155 = vunpack.c.l.b16 %v144
  %v156 = vunpack.c.h.b16 %v144
  %v157 = vpack.c.b16 %v151, %v149
  %v158 = vpack.c.b16 %v152, %v150
  %v159 = vpack.c.b16 %v155, %v153
  %v160 = vpack.c.b16 %v156, %v154
  %vm165 = vcmask 261120
  %v167 = vsel %vm165, %v124, 0
  %v170 = vsel %vm165, %v125, 0
  %v173 = vsel %vm165, %v126, 0
  %v176 = vsel %vm165, %v127, 0
  %v179 = vsel %vm165, %v128, 0
  %v182 = vsel %vm165, %v129, 0
  %v185 = vsel %vm165, %v130, 0
  %v188 = vsel %vm165, %v131, 0
  %v191 = vsel %vm165, %v132, 0
  %v194 = vsel %vm165, %v133, 0
  %v197 = vsel %vm165, %v134, 0
  %v200 = vsel %vm165, %v135, 0
  %v203 = vsel %vm165, %v136, 0
  %v206 = vsel %vm165, %v137, 0
  %v209 = vsel %vm165, %v138, 0
  %v212 = vsel %vm165, %v139, 0
  %214 = vmatprep.subr.bf16.mxu0 %v158
  %215 = vmatpush1.bf16.msra.mxu0 %v157
  %216 = vmatprep.subr.bf16.mxu0 %v160
  %217 = vmatpush1.bf16.msra.mxu0 %v159
  %218 = vmatprep.subr.bf16.mxu0 0
  %219 = vmatpush1.bf16.msra.mxu0 0
  %220 = vmatprep.subr.bf16.mxu0 0
  %221 = vmatpush1.bf16.msra.mxu0 0
  %222 = vmatprep.subr.bf16.mxu0 0
  %223 = vmatpush1.bf16.msra.mxu0 0
  %224 = vmatprep.subr.bf16.mxu0 0
  %225 = vmatpush1.bf16.msra.mxu0 0
  %226 = vmatprep.subr.bf16.mxu0 0
  %227 = vmatpush1.bf16.msra.mxu0 0
  %228 = vmatprep.subr.bf16.mxu0 0
  %229 = vmatpush1.bf16.msra.mxu0 0
  %230 = vmatprep.subr.bf16.mxu0 0
  %231 = vmatpush1.bf16.msra.mxu0 0
  %232 = vmatprep.subr.bf16.mxu0 0
  %233 = vmatpush1.bf16.msra.mxu0 0
  %234 = vmatprep.subr.bf16.mxu0 0
  %235 = vmatpush1.bf16.msra.mxu0 0
  %236 = vmatprep.subr.bf16.mxu0 0
  %237 = vmatpush1.bf16.msra.mxu0 0
  %238 = vmatprep.subr.bf16.mxu0 0
  %239 = vmatpush1.bf16.msra.mxu0 0
  %240 = vmatprep.subr.bf16.mxu0 0
  %241 = vmatpush1.bf16.msra.mxu0 0
  %242 = vmatprep.subr.bf16.mxu0 0
  %243 = vmatpush1.bf16.msra.mxu0 0
  %244 = vmatprep.subr.bf16.mxu0 0
  %245 = vmatpush1.bf16.msra.mxu0 0
  %246 = vmatprep.mubr.bf16.mxu0 0
  %247 = vmatmul.mubr.bf16.gmra.mrb[0].mxu0 %v167
  %v248 = vpop.f32.mrb[0].mxu0
  %v249 = vadd.f32 0.0, %v248
  %v250 = vpop.f32.mrb[0].mxu0
  %v251 = vadd.f32 0.0, %v250
  %v252 = vpop.f32.mrb[0].mxu0
  %v253 = vadd.f32 0.0, %v252
  %v254 = vpop.f32.mrb[0].mxu0
  %v255 = vadd.f32 0.0, %v254
  %256 = vmatprep.mubr.bf16.mxu0 0
  %257 = vmatmul.mubr.bf16.gmra.mrb[0].mxu0 %v170
  %v258 = vpop.f32.mrb[0].mxu0
  %v259 = vadd.f32 0.0, %v258
  %v260 = vpop.f32.mrb[0].mxu0
  %v261 = vadd.f32 0.0, %v260
  %v262 = vpop.f32.mrb[0].mxu0
  %v263 = vadd.f32 0.0, %v262
  %v264 = vpop.f32.mrb[0].mxu0
  %v265 = vadd.f32 0.0, %v264
  %266 = vmatprep.mubr.bf16.mxu0 0
  %267 = vmatmul.mubr.bf16.gmra.mrb[0].mxu0 %v173
  %v268 = vpop.f32.mrb[0].mxu0
  %v269 = vadd.f32 0.0, %v268
  %v270 = vpop.f32.mrb[0].mxu0
  %v271 = vadd.f32 0.0, %v270
  %v272 = vpop.f32.mrb[0].mxu0
  %v273 = vadd.f32 0.0, %v272
  %v274 = vpop.f32.mrb[0].mxu0
  %v275 = vadd.f32 0.0, %v274
  %276 = vmatprep.mubr.bf16.mxu0 0
  %277 = vmatmul.mubr.bf16.gmra.mrb[0].mxu0 %v176
  %v278 = vpop.f32.mrb[0].mxu0
  %v279 = vadd.f32 0.0, %v278
  %v280 = vpop.f32.mrb[0].mxu0
  %v281 = vadd.f32 0.0, %v280
  %v282 = vpop.f32.mrb[0].mxu0
  %v283 = vadd.f32 0.0, %v282
  %v284 = vpop.f32.mrb[0].mxu0
  %v285 = vadd.f32 0.0, %v284
  %286 = vmatprep.mubr.bf16.mxu0 0
  %287 = vmatmul.mubr.bf16.gmra.mrb[0].mxu0 %v179
  %v288 = vpop.f32.mrb[0].mxu0
  %v289 = vadd.f32 0.0, %v288
  %v290 = vpop.f32.mrb[0].mxu0
  %v291 = vadd.f32 0.0, %v290
  %v292 = vpop.f32.mrb[0].mxu0
  %v293 = vadd.f32 0.0, %v292
  %v294 = vpop.f32.mrb[0].mxu0
  %v295 = vadd.f32 0.0, %v294
  %296 = vmatprep.mubr.bf16.mxu0 0
  %297 = vmatmul.mubr.bf16.gmra.mrb[0].mxu0 %v182
  %v298 = vpop.f32.mrb[0].mxu0
  %v299 = vadd.f32 0.0, %v298
  %v300 = vpop.f32.mrb[0].mxu0
  %v301 = vadd.f32 0.0, %v300
  %v302 = vpop.f32.mrb[0].mxu0
  %v303 = vadd.f32 0.0, %v302
  %v304 = vpop.f32.mrb[0].mxu0
  %v305 = vadd.f32 0.0, %v304
  %306 = vmatprep.mubr.bf16.mxu0 0
  %307 = vmatmul.mubr.bf16.gmra.mrb[0].mxu0 %v185
  %v308 = vpop.f32.mrb[0].mxu0
  %v309 = vadd.f32 0.0, %v308
  %v310 = vpop.f32.mrb[0].mxu0
  %v311 = vadd.f32 0.0, %v310
  %v312 = vpop.f32.mrb[0].mxu0
  %v313 = vadd.f32 0.0, %v312
  %v314 = vpop.f32.mrb[0].mxu0
  %v315 = vadd.f32 0.0, %v314
  %316 = vmatprep.mubr.bf16.mxu0 0
  %317 = vmatmul.mubr.bf16.gmra.mrb[0].mxu0 %v188
  %v318 = vpop.f32.mrb[0].mxu0
  %v319 = vadd.f32 0.0, %v318
  %v320 = vpop.f32.mrb[0].mxu0
  %v321 = vadd.f32 0.0, %v320
  %v322 = vpop.f32.mrb[0].mxu0
  %v323 = vadd.f32 0.0, %v322
  %v324 = vpop.f32.mrb[0].mxu0
  %v325 = vadd.f32 0.0, %v324
  %326 = vmatprep.mubr.bf16.mxu0 0
  %327 = vmatmul.mubr.bf16.gmra.mrb[0].mxu0 %v191
  %v328 = vpop.f32.mrb[0].mxu0
  %v329 = vadd.f32 0.0, %v328
  %v330 = vpop.f32.mrb[0].mxu0
  %v331 = vadd.f32 0.0, %v330
  %v332 = vpop.f32.mrb[0].mxu0
  %v333 = vadd.f32 0.0, %v332
  %v334 = vpop.f32.mrb[0].mxu0
  %v335 = vadd.f32 0.0, %v334
  %336 = vmatprep.mubr.bf16.mxu0 0
  %337 = vmatmul.mubr.bf16.gmra.mrb[0].mxu0 %v194
  %v338 = vpop.f32.mrb[0].mxu0
  %v339 = vadd.f32 0.0, %v338
  %v340 = vpop.f32.mrb[0].mxu0
  %v341 = vadd.f32 0.0, %v340
  %v342 = vpop.f32.mrb[0].mxu0
  %v343 = vadd.f32 0.0, %v342
  %v344 = vpop.f32.mrb[0].mxu0
  %v345 = vadd.f32 0.0, %v344
  %346 = vmatprep.mubr.bf16.mxu0 0
  %347 = vmatmul.mubr.bf16.gmra.mrb[0].mxu0 %v197
  %v348 = vpop.f32.mrb[0].mxu0
  %v349 = vadd.f32 0.0, %v348
  %v350 = vpop.f32.mrb[0].mxu0
  %v351 = vadd.f32 0.0, %v350
  %v352 = vpop.f32.mrb[0].mxu0
  %v353 = vadd.f32 0.0, %v352
  %v354 = vpop.f32.mrb[0].mxu0
  %v355 = vadd.f32 0.0, %v354
  %356 = vmatprep.mubr.bf16.mxu0 0
  %357 = vmatmul.mubr.bf16.gmra.mrb[0].mxu0 %v200
  %v358 = vpop.f32.mrb[0].mxu0
  %v359 = vadd.f32 0.0, %v358
  %v360 = vpop.f32.mrb[0].mxu0
  %v361 = vadd.f32 0.0, %v360
  %v362 = vpop.f32.mrb[0].mxu0
  %v363 = vadd.f32 0.0, %v362
  %v364 = vpop.f32.mrb[0].mxu0
  %v365 = vadd.f32 0.0, %v364
  %366 = vmatprep.mubr.bf16.mxu0 0
  %367 = vmatmul.mubr.bf16.gmra.mrb[0].mxu0 %v203
  %v368 = vpop.f32.mrb[0].mxu0
  %v369 = vadd.f32 0.0, %v368
  %v370 = vpop.f32.mrb[0].mxu0
  %v371 = vadd.f32 0.0, %v370
  %v372 = vpop.f32.mrb[0].mxu0
  %v373 = vadd.f32 0.0, %v372
  %v374 = vpop.f32.mrb[0].mxu0
  %v375 = vadd.f32 0.0, %v374
  %376 = vmatprep.mubr.bf16.mxu0 0
  %377 = vmatmul.mubr.bf16.gmra.mrb[0].mxu0 %v206
  %v378 = vpop.f32.mrb[0].mxu0
  %v379 = vadd.f32 0.0, %v378
  %v380 = vpop.f32.mrb[0].mxu0
  %v381 = vadd.f32 0.0, %v380
  %v382 = vpop.f32.mrb[0].mxu0
  %v383 = vadd.f32 0.0, %v382
  %v384 = vpop.f32.mrb[0].mxu0
  %v385 = vadd.f32 0.0, %v384
  %386 = vmatprep.mubr.bf16.mxu0 0
  %387 = vmatmul.mubr.bf16.gmra.mrb[0].mxu0 %v209
  %v388 = vpop.f32.mrb[0].mxu0
  %v389 = vadd.f32 0.0, %v388
  %v390 = vpop.f32.mrb[0].mxu0
  %v391 = vadd.f32 0.0, %v390
  %v392 = vpop.f32.mrb[0].mxu0
  %v393 = vadd.f32 0.0, %v392
  %v394 = vpop.f32.mrb[0].mxu0
  %v395 = vadd.f32 0.0, %v394
  %396 = vmatprep.mubr.bf16.mxu0 0
  %397 = vmatmul.mubr.bf16.gmra.mrb[0].mxu0 %v212
  %v398 = vpop.f32.mrb[0].mxu0
  %v399 = vadd.f32 0.0, %v398
  %v400 = vpop.f32.mrb[0].mxu0
  %v401 = vadd.f32 0.0, %v400
  %v402 = vpop.f32.mrb[0].mxu0
  %v403 = vadd.f32 0.0, %v402
  %v404 = vpop.f32.mrb[0].mxu0
  %v405 = vadd.f32 0.0, %v404
  %406 = vdwg.mxu0
  %v411 = vunpack.c.l.b16 %v88
  %v412 = vunpack.c.h.b16 %v88
  %v413 = vunpack.c.l.b16 %v89
  %v414 = vunpack.c.h.b16 %v89
  %v415 = vunpack.c.l.b16 %v90
  %v416 = vunpack.c.h.b16 %v90
  %v417 = vunpack.c.l.b16 %v91
  %v418 = vunpack.c.h.b16 %v91
  %v419 = vpack.c.b16 %v413, %v411
  %v420 = vpack.c.b16 %v414, %v412
  %v421 = vpack.c.b16 %v417, %v415
  %v422 = vpack.c.b16 %v418, %v416
  %v428 = vsel %vm165, %v72, 0
  %v431 = vsel %vm165, %v73, 0
  %v434 = vsel %vm165, %v74, 0
  %v437 = vsel %vm165, %v75, 0
  %v440 = vsel %vm165, %v76, 0
  %v443 = vsel %vm165, %v77, 0
  %v446 = vsel %vm165, %v78, 0
  %v449 = vsel %vm165, %v79, 0
  %v452 = vsel %vm165, %v80, 0
  %v455 = vsel %vm165, %v81, 0
  %v458 = vsel %vm165, %v82, 0
  %v461 = vsel %vm165, %v83, 0
  %v464 = vsel %vm165, %v84, 0
  %v467 = vsel %vm165, %v85, 0
  %v470 = vsel %vm165, %v86, 0
  %v473 = vsel %vm165, %v87, 0
  %475 = vmatprep.subr.bf16.mxu0 %v420
  %476 = vmatpush1.bf16.msra.mxu0 %v419
  %477 = vmatprep.subr.bf16.mxu0 %v422
  %478 = vmatpush1.bf16.msra.mxu0 %v421
  %479 = vmatprep.subr.bf16.mxu0 0
  %480 = vmatpush1.bf16.msra.mxu0 0
  %481 = vmatprep.subr.bf16.mxu0 0
  %482 = vmatpush1.bf16.msra.mxu0 0
  %483 = vmatprep.subr.bf16.mxu0 0
  %484 = vmatpush1.bf16.msra.mxu0 0
  %485 = vmatprep.subr.bf16.mxu0 0
  %486 = vmatpush1.bf16.msra.mxu0 0
  %487 = vmatprep.subr.bf16.mxu0 0
  %488 = vmatpush1.bf16.msra.mxu0 0
  %489 = vmatprep.subr.bf16.mxu0 0
  %490 = vmatpush1.bf16.msra.mxu0 0
  %491 = vmatprep.subr.bf16.mxu0 0
  %492 = vmatpush1.bf16.msra.mxu0 0
  %493 = vmatprep.subr.bf16.mxu0 0
  %494 = vmatpush1.bf16.msra.mxu0 0
  %495 = vmatprep.subr.bf16.mxu0 0
  %496 = vmatpush1.bf16.msra.mxu0 0
  %497 = vmatprep.subr.bf16.mxu0 0
  %498 = vmatpush1.bf16.msra.mxu0 0
  %499 = vmatprep.subr.bf16.mxu0 0
  %500 = vmatpush1.bf16.msra.mxu0 0
  %501 = vmatprep.subr.bf16.mxu0 0
  %502 = vmatpush1.bf16.msra.mxu0 0
  %503 = vmatprep.subr.bf16.mxu0 0
  %504 = vmatpush1.bf16.msra.mxu0 0
  %505 = vmatprep.subr.bf16.mxu0 0
  %506 = vmatpush1.bf16.msra.mxu0 0
  %507 = vmatprep.mubr.bf16.mxu0 0
  %508 = vmatmul.mubr.bf16.gmra.mrb[0].mxu0 %v428
  %v509 = vpop.f32.mrb[0].mxu0
  %v510 = vadd.f32 %v249, %v509
  %v511 = vpop.f32.mrb[0].mxu0
  %v512 = vadd.f32 %v251, %v511
  %v513 = vpop.f32.mrb[0].mxu0
  %v514 = vadd.f32 %v253, %v513
  %v515 = vpop.f32.mrb[0].mxu0
  %v516 = vadd.f32 %v255, %v515
  %517 = vmatprep.mubr.bf16.mxu0 0
  %518 = vmatmul.mubr.bf16.gmra.mrb[0].mxu0 %v431
  %v519 = vpop.f32.mrb[0].mxu0
  %v520 = vadd.f32 %v259, %v519
  %v521 = vpop.f32.mrb[0].mxu0
  %v522 = vadd.f32 %v261, %v521
  %v523 = vpop.f32.mrb[0].mxu0
  %v524 = vadd.f32 %v263, %v523
  %v525 = vpop.f32.mrb[0].mxu0
  %v526 = vadd.f32 %v265, %v525
  %527 = vmatprep.mubr.bf16.mxu0 0
  %528 = vmatmul.mubr.bf16.gmra.mrb[0].mxu0 %v434
  %v529 = vpop.f32.mrb[0].mxu0
  %v530 = vadd.f32 %v269, %v529
  %v531 = vpop.f32.mrb[0].mxu0
  %v532 = vadd.f32 %v271, %v531
  %v533 = vpop.f32.mrb[0].mxu0
  %v534 = vadd.f32 %v273, %v533
  %v535 = vpop.f32.mrb[0].mxu0
  %v536 = vadd.f32 %v275, %v535
  %537 = vmatprep.mubr.bf16.mxu0 0
  %538 = vmatmul.mubr.bf16.gmra.mrb[0].mxu0 %v437
  %v539 = vpop.f32.mrb[0].mxu0
  %v540 = vadd.f32 %v279, %v539
  %v541 = vpop.f32.mrb[0].mxu0
  %v542 = vadd.f32 %v281, %v541
  %v543 = vpop.f32.mrb[0].mxu0
  %v544 = vadd.f32 %v283, %v543
  %v545 = vpop.f32.mrb[0].mxu0
  %v546 = vadd.f32 %v285, %v545
  %547 = vmatprep.mubr.bf16.mxu0 0
  %548 = vmatmul.mubr.bf16.gmra.mrb[0].mxu0 %v440
  %v549 = vpop.f32.mrb[0].mxu0
  %v550 = vadd.f32 %v289, %v549
  %v551 = vpop.f32.mrb[0].mxu0
  %v552 = vadd.f32 %v291, %v551
  %v553 = vpop.f32.mrb[0].mxu0
  %v554 = vadd.f32 %v293, %v553
  %v555 = vpop.f32.mrb[0].mxu0
  %v556 = vadd.f32 %v295, %v555
  %557 = vmatprep.mubr.bf16.mxu0 0
  %558 = vmatmul.mubr.bf16.gmra.mrb[0].mxu0 %v443
  %v559 = vpop.f32.mrb[0].mxu0
  %v560 = vadd.f32 %v299, %v559
  %v561 = vpop.f32.mrb[0].mxu0
  %v562 = vadd.f32 %v301, %v561
  %v563 = vpop.f32.mrb[0].mxu0
  %v564 = vadd.f32 %v303, %v563
  %v565 = vpop.f32.mrb[0].mxu0
  %v566 = vadd.f32 %v305, %v565
  %567 = vmatprep.mubr.bf16.mxu0 0
  %568 = vmatmul.mubr.bf16.gmra.mrb[0].mxu0 %v446
  %v569 = vpop.f32.mrb[0].mxu0
  %v570 = vadd.f32 %v309, %v569
  %v571 = vpop.f32.mrb[0].mxu0
  %v572 = vadd.f32 %v311, %v571
  %v573 = vpop.f32.mrb[0].mxu0
  %v574 = vadd.f32 %v313, %v573
  %v575 = vpop.f32.mrb[0].mxu0
  %v576 = vadd.f32 %v315, %v575
  %577 = vmatprep.mubr.bf16.mxu0 0
  %578 = vmatmul.mubr.bf16.gmra.mrb[0].mxu0 %v449
  %v579 = vpop.f32.mrb[0].mxu0
  %v580 = vadd.f32 %v319, %v579
  %v581 = vpop.f32.mrb[0].mxu0
  %v582 = vadd.f32 %v321, %v581
  %v583 = vpop.f32.mrb[0].mxu0
  %v584 = vadd.f32 %v323, %v583
  %v585 = vpop.f32.mrb[0].mxu0
  %v586 = vadd.f32 %v325, %v585
  %587 = vmatprep.mubr.bf16.mxu0 0
  %588 = vmatmul.mubr.bf16.gmra.mrb[0].mxu0 %v452
  %v589 = vpop.f32.mrb[0].mxu0
  %v590 = vadd.f32 %v329, %v589
  %v591 = vpop.f32.mrb[0].mxu0
  %v592 = vadd.f32 %v331, %v591
  %v593 = vpop.f32.mrb[0].mxu0
  %v594 = vadd.f32 %v333, %v593
  %v595 = vpop.f32.mrb[0].mxu0
  %v596 = vadd.f32 %v335, %v595
  %597 = vmatprep.mubr.bf16.mxu0 0
  %598 = vmatmul.mubr.bf16.gmra.mrb[0].mxu0 %v455
  %v599 = vpop.f32.mrb[0].mxu0
  %v600 = vadd.f32 %v339, %v599
  %v601 = vpop.f32.mrb[0].mxu0
  %v602 = vadd.f32 %v341, %v601
  %v603 = vpop.f32.mrb[0].mxu0
  %v604 = vadd.f32 %v343, %v603
  %v605 = vpop.f32.mrb[0].mxu0
  %v606 = vadd.f32 %v345, %v605
  %607 = vmatprep.mubr.bf16.mxu0 0
  %608 = vmatmul.mubr.bf16.gmra.mrb[0].mxu0 %v458
  %v609 = vpop.f32.mrb[0].mxu0
  %v610 = vadd.f32 %v349, %v609
  %v611 = vpop.f32.mrb[0].mxu0
  %v612 = vadd.f32 %v351, %v611
  %v613 = vpop.f32.mrb[0].mxu0
  %v614 = vadd.f32 %v353, %v613
  %v615 = vpop.f32.mrb[0].mxu0
  %v616 = vadd.f32 %v355, %v615
  %617 = vmatprep.mubr.bf16.mxu0 0
  %618 = vmatmul.mubr.bf16.gmra.mrb[0].mxu0 %v461
  %v619 = vpop.f32.mrb[0].mxu0
  %v620 = vadd.f32 %v359, %v619
  %v621 = vpop.f32.mrb[0].mxu0
  %v622 = vadd.f32 %v361, %v621
  %v623 = vpop.f32.mrb[0].mxu0
  %v624 = vadd.f32 %v363, %v623
  %v625 = vpop.f32.mrb[0].mxu0
  %v626 = vadd.f32 %v365, %v625
  %627 = vmatprep.mubr.bf16.mxu0 0
  %628 = vmatmul.mubr.bf16.gmra.mrb[0].mxu0 %v464
  %v629 = vpop.f32.mrb[0].mxu0
  %v630 = vadd.f32 %v369, %v629
  %v631 = vpop.f32.mrb[0].mxu0
  %v632 = vadd.f32 %v371, %v631
  %v633 = vpop.f32.mrb[0].mxu0
  %v634 = vadd.f32 %v373, %v633
  %v635 = vpop.f32.mrb[0].mxu0
  %v636 = vadd.f32 %v375, %v635
  %637 = vmatprep.mubr.bf16.mxu0 0
  %638 = vmatmul.mubr.bf16.gmra.mrb[0].mxu0 %v467
  %v639 = vpop.f32.mrb[0].mxu0
  %v640 = vadd.f32 %v379, %v639
  %v641 = vpop.f32.mrb[0].mxu0
  %v642 = vadd.f32 %v381, %v641
  %v643 = vpop.f32.mrb[0].mxu0
  %v644 = vadd.f32 %v383, %v643
  %v645 = vpop.f32.mrb[0].mxu0
  %v646 = vadd.f32 %v385, %v645
  %647 = vmatprep.mubr.bf16.mxu0 0
  %648 = vmatmul.mubr.bf16.gmra.mrb[0].mxu0 %v470
  %v649 = vpop.f32.mrb[0].mxu0
  %v650 = vadd.f32 %v389, %v649
  %v651 = vpop.f32.mrb[0].mxu0
  %v652 = vadd.f32 %v391, %v651
  %v653 = vpop.f32.mrb[0].mxu0
  %v654 = vadd.f32 %v393, %v653
  %v655 = vpop.f32.mrb[0].mxu0
  %v656 = vadd.f32 %v395, %v655
  %657 = vmatprep.mubr.bf16.mxu0 0
  %658 = vmatmul.mubr.bf16.gmra.mrb[0].mxu0 %v473
  %v659 = vpop.f32.mrb[0].mxu0
  %v660 = vadd.f32 %v399, %v659
  %v661 = vpop.f32.mrb[0].mxu0
  %v662 = vadd.f32 %v401, %v661
  %v663 = vpop.f32.mrb[0].mxu0
  %v664 = vadd.f32 %v403, %v663
  %v665 = vpop.f32.mrb[0].mxu0
  %v666 = vadd.f32 %v405, %v665
  %667 = vdwg.mxu0
  %v668 = vld [vmem:[%s0 + $0x2] sm:$0xff]
  %v669 = vld [vmem:[%s0 + $0xa] sm:$0xff]
  %v670 = vld [vmem:[%s0 + $0x12] sm:$0xff]
  %v671 = vld [vmem:[%s0 + $0x1a] sm:$0xff]
  %v672 = vld [vmem:[%s0 + $0x22] sm:$0xff]
  %v673 = vld [vmem:[%s0 + $0x2a] sm:$0xff]
  %v674 = vld [vmem:[%s0 + $0x32] sm:$0xff]
  %v675 = vld [vmem:[%s0 + $0x3a] sm:$0xff]
  %v676 = vld [vmem:[%s0 + $0x42] sm:$0xff]
  %v677 = vld [vmem:[%s0 + $0x4a] sm:$0xff]
  %v678 = vld [vmem:[%s0 + $0x52] sm:$0xff]
  %v679 = vld [vmem:[%s0 + $0x5a] sm:$0xff]
  %v680 = vld [vmem:[%s0 + $0x62] sm:$0xff]
  %v681 = vld [vmem:[%s0 + $0x6a] sm:$0xff]
  %v682 = vld [vmem:[%s0 + $0x72] sm:$0xff]
  %v683 = vld [vmem:[%s0 + $0x7a] sm:$0xff]
  %v684 = vld [vmem:[%s0 + $0x82] sm:$0xff]
  %v685 = vld [vmem:[%s0 + $0x8a] sm:$0xff]
  %v686 = vld [vmem:[%s0 + $0x92] sm:$0xff]
  %v687 = vld [vmem:[%s0 + $0x9a] sm:$0xff]
  %v688 = vld [vmem:[%s0 + $0xa2] sm:$0xff]
  %v689 = vld [vmem:[%s0 + $0xaa] sm:$0xff]
  %v690 = vld [vmem:[%s0 + $0xb2] sm:$0xff]
  %v691 = vld [vmem:[%s0 + $0xba] sm:$0xff]
  %v692 = vld [vmem:[%s0 + $0xc2] sm:$0xff]
  %v693 = vld [vmem:[%s0 + $0xca] sm:$0xff]
  %v694 = vld [vmem:[%s0 + $0xd2] sm:$0xff]
  %v695 = vld [vmem:[%s0 + $0xda] sm:$0xff]
  %v696 = vld [vmem:[%s0 + $0xe2] sm:$0xff]
  %v697 = vld [vmem:[%s0 + $0xea] sm:$0xff]
  %v698 = vld [vmem:[%s0 + $0xf2] sm:$0xff]
  %v699 = vld [vmem:[%s0 + $0xfa] sm:$0xf]
  %v700 = vpack.c.bf16 %v669, %v668
  %v701 = vpack.c.bf16 %v671, %v670
  %v702 = vpack.c.bf16 %v673, %v672
  %v703 = vpack.c.bf16 %v675, %v674
  %v704 = vpack.c.bf16 %v677, %v676
  %v705 = vpack.c.bf16 %v679, %v678
  %v706 = vpack.c.bf16 %v681, %v680
  %v707 = vpack.c.bf16 %v683, %v682
  %v708 = vpack.c.bf16 %v685, %v684
  %v709 = vpack.c.bf16 %v687, %v686
  %v710 = vpack.c.bf16 %v689, %v688
  %v711 = vpack.c.bf16 %v691, %v690
  %v712 = vpack.c.bf16 %v693, %v692
  %v713 = vpack.c.bf16 %v695, %v694
  %v714 = vpack.c.bf16 %v697, %v696
  %v715 = vpack.c.bf16 %v699, %v698
  %s716 = scalar_lea.vmem %s1, 64
  %v717 = vld [vmem:[%s716] sm:$0xff]
  %v718 = vld [vmem:[%s716 + $0x8] sm:$0xff]
  %v719 = vld [vmem:[%s716 + $0x10] sm:$0xff]
  %v720 = vld [vmem:[%s716 + $0x18] sm:$0xff]
  %v725 = vunpack.c.l.b16 %v717
  %v726 = vunpack.c.h.b16 %v717
  %v727 = vunpack.c.l.b16 %v718
  %v728 = vunpack.c.h.b16 %v718
  %v729 = vunpack.c.l.b16 %v719
  %v730 = vunpack.c.h.b16 %v719
  %v731 = vunpack.c.l.b16 %v720
  %v732 = vunpack.c.h.b16 %v720
  %v733 = vpack.c.b16 %v727, %v725
  %v734 = vpack.c.b16 %v728, %v726
  %v735 = vpack.c.b16 %v731, %v729
  %v736 = vpack.c.b16 %v732, %v730
  %v742 = vsel %vm165, %v700, 0
  %v745 = vsel %vm165, %v701, 0
  %v748 = vsel %vm165, %v702, 0
  %v751 = vsel %vm165, %v703, 0
  %v754 = vsel %vm165, %v704, 0
  %v757 = vsel %vm165, %v705, 0
  %v760 = vsel %vm165, %v706, 0
  %v763 = vsel %vm165, %v707, 0
  %v766 = vsel %vm165, %v708, 0
  %v769 = vsel %vm165, %v709, 0
  %v772 = vsel %vm165, %v710, 0
  %v775 = vsel %vm165, %v711, 0
  %v778 = vsel %vm165, %v712, 0
  %v781 = vsel %vm165, %v713, 0
  %v784 = vsel %vm165, %v714, 0
  %v787 = vsel %vm165, %v715, 0
  %789 = vmatprep.subr.bf16.mxu0 %v734
  %790 = vmatpush1.bf16.msra.mxu0 %v733
  %791 = vmatprep.subr.bf16.mxu0 %v736
  %792 = vmatpush1.bf16.msra.mxu0 %v735
  %793 = vmatprep.subr.bf16.mxu0 0
  %794 = vmatpush1.bf16.msra.mxu0 0
  %795 = vmatprep.subr.bf16.mxu0 0
  %796 = vmatpush1.bf16.msra.mxu0 0
  %797 = vmatprep.subr.bf16.mxu0 0
  %798 = vmatpush1.bf16.msra.mxu0 0
  %799 = vmatprep.subr.bf16.mxu0 0
  %800 = vmatpush1.bf16.msra.mxu0 0
  %801 = vmatprep.subr.bf16.mxu0 0
  %802 = vmatpush1.bf16.msra.mxu0 0
  %803 = vmatprep.subr.bf16.mxu0 0
  %804 = vmatpush1.bf16.msra.mxu0 0
  %805 = vmatprep.subr.bf16.mxu0 0
  %806 = vmatpush1.bf16.msra.mxu0 0
  %807 = vmatprep.subr.bf16.mxu0 0
  %808 = vmatpush1.bf16.msra.mxu0 0
  %809 = vmatprep.subr.bf16.mxu0 0
  %810 = vmatpush1.bf16.msra.mxu0 0
  %811 = vmatprep.subr.bf16.mxu0 0
  %812 = vmatpush1.bf16.msra.mxu0 0
  %813 = vmatprep.subr.bf16.mxu0 0
  %814 = vmatpush1.bf16.msra.mxu0 0
  %815 = vmatprep.subr.bf16.mxu0 0
  %816 = vmatpush1.bf16.msra.mxu0 0
  %817 = vmatprep.subr.bf16.mxu0 0
  %818 = vmatpush1.bf16.msra.mxu0 0
  %819 = vmatprep.subr.bf16.mxu0 0
  %820 = vmatpush1.bf16.msra.mxu0 0
  %821 = vmatprep.mubr.bf16.mxu0 0
  %822 = vmatmul.mubr.bf16.gmra.mrb[0].mxu0 %v742
  %v823 = vpop.f32.mrb[0].mxu0
  %v824 = vadd.f32 0.0, %v823
  %v825 = vpop.f32.mrb[0].mxu0
  %v826 = vadd.f32 0.0, %v825
  %v827 = vpop.f32.mrb[0].mxu0
  %v828 = vadd.f32 0.0, %v827
  %v829 = vpop.f32.mrb[0].mxu0
  %v830 = vadd.f32 0.0, %v829
  %831 = vmatprep.mubr.bf16.mxu0 0
  %832 = vmatmul.mubr.bf16.gmra.mrb[0].mxu0 %v745
  %v833 = vpop.f32.mrb[0].mxu0
  %v834 = vadd.f32 0.0, %v833
  %v835 = vpop.f32.mrb[0].mxu0
  %v836 = vadd.f32 0.0, %v835
  %v837 = vpop.f32.mrb[0].mxu0
  %v838 = vadd.f32 0.0, %v837
  %v839 = vpop.f32.mrb[0].mxu0
  %v840 = vadd.f32 0.0, %v839
  %841 = vmatprep.mubr.bf16.mxu0 0
  %842 = vmatmul.mubr.bf16.gmra.mrb[0].mxu0 %v748
  %v843 = vpop.f32.mrb[0].mxu0
  %v844 = vadd.f32 0.0, %v843
  %v845 = vpop.f32.mrb[0].mxu0
  %v846 = vadd.f32 0.0, %v845
  %v847 = vpop.f32.mrb[0].mxu0
  %v848 = vadd.f32 0.0, %v847
  %v849 = vpop.f32.mrb[0].mxu0
  %v850 = vadd.f32 0.0, %v849
  %851 = vmatprep.mubr.bf16.mxu0 0
  %852 = vmatmul.mubr.bf16.gmra.mrb[0].mxu0 %v751
  %v853 = vpop.f32.mrb[0].mxu0
  %v854 = vadd.f32 0.0, %v853
  %v855 = vpop.f32.mrb[0].mxu0
  %v856 = vadd.f32 0.0, %v855
  %v857 = vpop.f32.mrb[0].mxu0
  %v858 = vadd.f32 0.0, %v857
  %v859 = vpop.f32.mrb[0].mxu0
  %v860 = vadd.f32 0.0, %v859
  %861 = vmatprep.mubr.bf16.mxu0 0
  %862 = vmatmul.mubr.bf16.gmra.mrb[0].mxu0 %v754
  %v863 = vpop.f32.mrb[0].mxu0
  %v864 = vadd.f32 0.0, %v863
  %v865 = vpop.f32.mrb[0].mxu0
  %v866 = vadd.f32 0.0, %v865
  %v867 = vpop.f32.mrb[0].mxu0
  %v868 = vadd.f32 0.0, %v867
  %v869 = vpop.f32.mrb[0].mxu0
  %v870 = vadd.f32 0.0, %v869
  %871 = vmatprep.mubr.bf16.mxu0 0
  %872 = vmatmul.mubr.bf16.gmra.mrb[0].mxu0 %v757
  %v873 = vpop.f32.mrb[0].mxu0
  %v874 = vadd.f32 0.0, %v873
  %v875 = vpop.f32.mrb[0].mxu0
  %v876 = vadd.f32 0.0, %v875
  %v877 = vpop.f32.mrb[0].mxu0
  %v878 = vadd.f32 0.0, %v877
  %v879 = vpop.f32.mrb[0].mxu0
  %v880 = vadd.f32 0.0, %v879
  %881 = vmatprep.mubr.bf16.mxu0 0
  %882 = vmatmul.mubr.bf16.gmra.mrb[0].mxu0 %v760
  %v883 = vpop.f32.mrb[0].mxu0
  %v884 = vadd.f32 0.0, %v883
  %v885 = vpop.f32.mrb[0].mxu0
  %v886 = vadd.f32 0.0, %v885
  %v887 = vpop.f32.mrb[0].mxu0
  %v888 = vadd.f32 0.0, %v887
  %v889 = vpop.f32.mrb[0].mxu0
  %v890 = vadd.f32 0.0, %v889
  %891 = vmatprep.mubr.bf16.mxu0 0
  %892 = vmatmul.mubr.bf16.gmra.mrb[0].mxu0 %v763
  %v893 = vpop.f32.mrb[0].mxu0
  %v894 = vadd.f32 0.0, %v893
  %v895 = vpop.f32.mrb[0].mxu0
  %v896 = vadd.f32 0.0, %v895
  %v897 = vpop.f32.mrb[0].mxu0
  %v898 = vadd.f32 0.0, %v897
  %v899 = vpop.f32.mrb[0].mxu0
  %v900 = vadd.f32 0.0, %v899
  %901 = vmatprep.mubr.bf16.mxu0 0
  %902 = vmatmul.mubr.bf16.gmra.mrb[0].mxu0 %v766
  %v903 = vpop.f32.mrb[0].mxu0
  %v904 = vadd.f32 0.0, %v903
  %v905 = vpop.f32.mrb[0].mxu0
  %v906 = vadd.f32 0.0, %v905
  %v907 = vpop.f32.mrb[0].mxu0
  %v908 = vadd.f32 0.0, %v907
  %v909 = vpop.f32.mrb[0].mxu0
  %v910 = vadd.f32 0.0, %v909
  %911 = vmatprep.mubr.bf16.mxu0 0
  %912 = vmatmul.mubr.bf16.gmra.mrb[0].mxu0 %v769
  %v913 = vpop.f32.mrb[0].mxu0
  %v914 = vadd.f32 0.0, %v913
  %v915 = vpop.f32.mrb[0].mxu0
  %v916 = vadd.f32 0.0, %v915
  %v917 = vpop.f32.mrb[0].mxu0
  %v918 = vadd.f32 0.0, %v917
  %v919 = vpop.f32.mrb[0].mxu0
  %v920 = vadd.f32 0.0, %v919
  %921 = vmatprep.mubr.bf16.mxu0 0
  %922 = vmatmul.mubr.bf16.gmra.mrb[0].mxu0 %v772
  %v923 = vpop.f32.mrb[0].mxu0
  %v924 = vadd.f32 0.0, %v923
  %v925 = vpop.f32.mrb[0].mxu0
  %v926 = vadd.f32 0.0, %v925
  %v927 = vpop.f32.mrb[0].mxu0
  %v928 = vadd.f32 0.0, %v927
  %v929 = vpop.f32.mrb[0].mxu0
  %v930 = vadd.f32 0.0, %v929
  %931 = vmatprep.mubr.bf16.mxu0 0
  %932 = vmatmul.mubr.bf16.gmra.mrb[0].mxu0 %v775
  %v933 = vpop.f32.mrb[0].mxu0
  %v934 = vadd.f32 0.0, %v933
  %v935 = vpop.f32.mrb[0].mxu0
  %v936 = vadd.f32 0.0, %v935
  %v937 = vpop.f32.mrb[0].mxu0
  %v938 = vadd.f32 0.0, %v937
  %v939 = vpop.f32.mrb[0].mxu0
  %v940 = vadd.f32 0.0, %v939
  %941 = vmatprep.mubr.bf16.mxu0 0
  %942 = vmatmul.mubr.bf16.gmra.mrb[0].mxu0 %v778
  %v943 = vpop.f32.mrb[0].mxu0
  %v944 = vadd.f32 0.0, %v943
  %v945 = vpop.f32.mrb[0].mxu0
  %v946 = vadd.f32 0.0, %v945
  %v947 = vpop.f32.mrb[0].mxu0
  %v948 = vadd.f32 0.0, %v947
  %v949 = vpop.f32.mrb[0].mxu0
  %v950 = vadd.f32 0.0, %v949
  %951 = vmatprep.mubr.bf16.mxu0 0
  %952 = vmatmul.mubr.bf16.gmra.mrb[0].mxu0 %v781
  %v953 = vpop.f32.mrb[0].mxu0
  %v954 = vadd.f32 0.0, %v953
  %v955 = vpop.f32.mrb[0].mxu0
  %v956 = vadd.f32 0.0, %v955
  %v957 = vpop.f32.mrb[0].mxu0
  %v958 = vadd.f32 0.0, %v957
  %v959 = vpop.f32.mrb[0].mxu0
  %v960 = vadd.f32 0.0, %v959
  %961 = vmatprep.mubr.bf16.mxu0 0
  %962 = vmatmul.mubr.bf16.gmra.mrb[0].mxu0 %v784
  %v963 = vpop.f32.mrb[0].mxu0
  %v964 = vadd.f32 0.0, %v963
  %v965 = vpop.f32.mrb[0].mxu0
  %v966 = vadd.f32 0.0, %v965
  %v967 = vpop.f32.mrb[0].mxu0
  %v968 = vadd.f32 0.0, %v967
  %v969 = vpop.f32.mrb[0].mxu0
  %v970 = vadd.f32 0.0, %v969
  %971 = vmatprep.mubr.bf16.mxu0 0
  %972 = vmatmul.mubr.bf16.gmra.mrb[0].mxu0 %v787
  %v973 = vpop.f32.mrb[0].mxu0
  %v974 = vadd.f32 0.0, %v973
  %v975 = vpop.f32.mrb[0].mxu0
  %v976 = vadd.f32 0.0, %v975
  %v977 = vpop.f32.mrb[0].mxu0
  %v978 = vadd.f32 0.0, %v977
  %v979 = vpop.f32.mrb[0].mxu0
  %v980 = vadd.f32 0.0, %v979
  %981 = vdwg.mxu0
  %v982 = vadd.f32 %v510, %v824
  %v983 = vadd.f32 %v512, %v826
  %v984 = vadd.f32 %v514, %v828
  %v985 = vadd.f32 %v516, %v830
  %v986 = vadd.f32 %v520, %v834
  %v987 = vadd.f32 %v522, %v836
  %v988 = vadd.f32 %v524, %v838
  %v989 = vadd.f32 %v526, %v840
  %v990 = vadd.f32 %v530, %v844
  %v991 = vadd.f32 %v532, %v846
  %v992 = vadd.f32 %v534, %v848
  %v993 = vadd.f32 %v536, %v850
  %v994 = vadd.f32 %v540, %v854
  %v995 = vadd.f32 %v542, %v856
  %v996 = vadd.f32 %v544, %v858
  %v997 = vadd.f32 %v546, %v860
  %v998 = vadd.f32 %v550, %v864
  %v999 = vadd.f32 %v552, %v866
  %v1000 = vadd.f32 %v554, %v868
  %v1001 = vadd.f32 %v556, %v870
  %v1002 = vadd.f32 %v560, %v874
  %v1003 = vadd.f32 %v562, %v876
  %v1004 = vadd.f32 %v564, %v878
  %v1005 = vadd.f32 %v566, %v880
  %v1006 = vadd.f32 %v570, %v884
  %v1007 = vadd.f32 %v572, %v886
  %v1008 = vadd.f32 %v574, %v888
  %v1009 = vadd.f32 %v576, %v890
  %v1010 = vadd.f32 %v580, %v894
  %v1011 = vadd.f32 %v582, %v896
  %v1012 = vadd.f32 %v584, %v898
  %v1013 = vadd.f32 %v586, %v900
  %v1014 = vadd.f32 %v590, %v904
  %v1015 = vadd.f32 %v592, %v906
  %v1016 = vadd.f32 %v594, %v908
  %v1017 = vadd.f32 %v596, %v910
  %v1018 = vadd.f32 %v600, %v914
  %v1019 = vadd.f32 %v602, %v916
  %v1020 = vadd.f32 %v604, %v918
  %v1021 = vadd.f32 %v606, %v920
  %v1022 = vadd.f32 %v610, %v924
  %v1023 = vadd.f32 %v612, %v926
  %v1024 = vadd.f32 %v614, %v928
  %v1025 = vadd.f32 %v616, %v930
  %v1026 = vadd.f32 %v620, %v934
  %v1027 = vadd.f32 %v622, %v936
  %v1028 = vadd.f32 %v624, %v938
  %v1029 = vadd.f32 %v626, %v940
  %v1030 = vadd.f32 %v630, %v944
  %v1031 = vadd.f32 %v632, %v946
  %v1032 = vadd.f32 %v634, %v948
  %v1033 = vadd.f32 %v636, %v950
  %v1034 = vadd.f32 %v640, %v954
  %v1035 = vadd.f32 %v642, %v956
  %v1036 = vadd.f32 %v644, %v958
  %v1037 = vadd.f32 %v646, %v960
  %v1038 = vadd.f32 %v650, %v964
  %v1039 = vadd.f32 %v652, %v966
  %v1040 = vadd.f32 %v654, %v968
  %v1041 = vadd.f32 %v656, %v970
  %v1042 = vadd.f32 %v660, %v974
  %v1043 = vadd.f32 %v662, %v976
  %v1044 = vadd.f32 %v664, %v978
  %v1045 = vadd.f32 %v666, %v980
  %v1046 = vld [vmem:[%s0 + $0x3] sm:$0xff]
  %v1047 = vld [vmem:[%s0 + $0xb] sm:$0xff]
  %v1048 = vld [vmem:[%s0 + $0x13] sm:$0xff]
  %v1049 = vld [vmem:[%s0 + $0x1b] sm:$0xff]
  %v1050 = vld [vmem:[%s0 + $0x23] sm:$0xff]
  %v1051 = vld [vmem:[%s0 + $0x2b] sm:$0xff]
  %v1052 = vld [vmem:[%s0 + $0x33] sm:$0xff]
  %v1053 = vld [vmem:[%s0 + $0x3b] sm:$0xff]
  %v1054 = vld [vmem:[%s0 + $0x43] sm:$0xff]
  %v1055 = vld [vmem:[%s0 + $0x4b] sm:$0xff]
  %v1056 = vld [vmem:[%s0 + $0x53] sm:$0xff]
  %v1057 = vld [vmem:[%s0 + $0x5b] sm:$0xff]
  %v1058 = vld [vmem:[%s0 + $0x63] sm:$0xff]
  %v1059 = vld [vmem:[%s0 + $0x6b] sm:$0xff]
  %v1060 = vld [vmem:[%s0 + $0x73] sm:$0xff]
  %v1061 = vld [vmem:[%s0 + $0x7b] sm:$0xff]
  %v1062 = vld [vmem:[%s0 + $0x83] sm:$0xff]
  %v1063 = vld [vmem:[%s0 + $0x8b] sm:$0xff]
  %v1064 = vld [vmem:[%s0 + $0x93] sm:$0xff]
  %v1065 = vld [vmem:[%s0 + $0x9b] sm:$0xff]
  %v1066 = vld [vmem:[%s0 + $0xa3] sm:$0xff]
  %v1067 = vld [vmem:[%s0 + $0xab] sm:$0xff]
  %v1068 = vld [vmem:[%s0 + $0xb3] sm:$0xff]
  %v1069 = vld [vmem:[%s0 + $0xbb] sm:$0xff]
  %v1070 = vld [vmem:[%s0 + $0xc3] sm:$0xff]
  %v1071 = vld [vmem:[%s0 + $0xcb] sm:$0xff]
  %v1072 = vld [vmem:[%s0 + $0xd3] sm:$0xff]
  %v1073 = vld [vmem:[%s0 + $0xdb] sm:$0xff]
  %v1074 = vld [vmem:[%s0 + $0xe3] sm:$0xff]
  %v1075 = vld [vmem:[%s0 + $0xeb] sm:$0xff]
  %v1076 = vld [vmem:[%s0 + $0xf3] sm:$0xff]
  %v1077 = vld [vmem:[%s0 + $0xfb] sm:$0xf]
  %v1078 = vpack.c.bf16 %v1047, %v1046
  %v1079 = vpack.c.bf16 %v1049, %v1048
  %v1080 = vpack.c.bf16 %v1051, %v1050
  %v1081 = vpack.c.bf16 %v1053, %v1052
  %v1082 = vpack.c.bf16 %v1055, %v1054
  %v1083 = vpack.c.bf16 %v1057, %v1056
  %v1084 = vpack.c.bf16 %v1059, %v1058
  %v1085 = vpack.c.bf16 %v1061, %v1060
  %v1086 = vpack.c.bf16 %v1063, %v1062
  %v1087 = vpack.c.bf16 %v1065, %v1064
  %v1088 = vpack.c.bf16 %v1067, %v1066
  %v1089 = vpack.c.bf16 %v1069, %v1068
  %v1090 = vpack.c.bf16 %v1071, %v1070
  %v1091 = vpack.c.bf16 %v1073, %v1072
  %v1092 = vpack.c.bf16 %v1075, %v1074
  %v1093 = vpack.c.bf16 %v1077, %v1076
  %s1094 = scalar_lea.vmem %s1, 96
  %v1095 = vld [vmem:[%s1094] sm:$0xff]
  %v1096 = vld [vmem:[%s1094 + $0x8] sm:$0xff]
  %v1097 = vld [vmem:[%s1094 + $0x10] sm:$0xff]
  %v1098 = vld [vmem:[%s1094 + $0x18] sm:$0xff]
  %v1103 = vunpack.c.l.b16 %v1095
  %v1104 = vunpack.c.h.b16 %v1095
  %v1105 = vunpack.c.l.b16 %v1096
  %v1106 = vunpack.c.h.b16 %v1096
  %v1107 = vunpack.c.l.b16 %v1097
  %v1108 = vunpack.c.h.b16 %v1097
  %v1109 = vunpack.c.l.b16 %v1098
  %v1110 = vunpack.c.h.b16 %v1098
  %v1111 = vpack.c.b16 %v1105, %v1103
  %v1112 = vpack.c.b16 %v1106, %v1104
  %v1113 = vpack.c.b16 %v1109, %v1107
  %v1114 = vpack.c.b16 %v1110, %v1108
  %v1120 = vsel %vm165, %v1078, 0
  %v1123 = vsel %vm165, %v1079, 0
  %v1126 = vsel %vm165, %v1080, 0
  %v1129 = vsel %vm165, %v1081, 0
  %v1132 = vsel %vm165, %v1082, 0
  %v1135 = vsel %vm165, %v1083, 0
  %v1138 = vsel %vm165, %v1084, 0
  %v1141 = vsel %vm165, %v1085, 0
  %v1144 = vsel %vm165, %v1086, 0
  %v1147 = vsel %vm165, %v1087, 0
  %v1150 = vsel %vm165, %v1088, 0
  %v1153 = vsel %vm165, %v1089, 0
  %v1156 = vsel %vm165, %v1090, 0
  %v1159 = vsel %vm165, %v1091, 0
  %v1162 = vsel %vm165, %v1092, 0
  %v1165 = vsel %vm165, %v1093, 0
  %1167 = vmatprep.subr.bf16.mxu0 %v1112
  %1168 = vmatpush1.bf16.msra.mxu0 %v1111
  %1169 = vmatprep.subr.bf16.mxu0 %v1114
  %1170 = vmatpush1.bf16.msra.mxu0 %v1113
  %1171 = vmatprep.subr.bf16.mxu0 0
  %1172 = vmatpush1.bf16.msra.mxu0 0
  %1173 = vmatprep.subr.bf16.mxu0 0
  %1174 = vmatpush1.bf16.msra.mxu0 0
  %1175 = vmatprep.subr.bf16.mxu0 0
  %1176 = vmatpush1.bf16.msra.mxu0 0
  %1177 = vmatprep.subr.bf16.mxu0 0
  %1178 = vmatpush1.bf16.msra.mxu0 0
  %1179 = vmatprep.subr.bf16.mxu0 0
  %1180 = vmatpush1.bf16.msra.mxu0 0
  %1181 = vmatprep.subr.bf16.mxu0 0
  %1182 = vmatpush1.bf16.msra.mxu0 0
  %1183 = vmatprep.subr.bf16.mxu0 0
  %1184 = vmatpush1.bf16.msra.mxu0 0
  %1185 = vmatprep.subr.bf16.mxu0 0
  %1186 = vmatpush1.bf16.msra.mxu0 0
  %1187 = vmatprep.subr.bf16.mxu0 0
  %1188 = vmatpush1.bf16.msra.mxu0 0
  %1189 = vmatprep.subr.bf16.mxu0 0
  %1190 = vmatpush1.bf16.msra.mxu0 0
  %1191 = vmatprep.subr.bf16.mxu0 0
  %1192 = vmatpush1.bf16.msra.mxu0 0
  %1193 = vmatprep.subr.bf16.mxu0 0
  %1194 = vmatpush1.bf16.msra.mxu0 0
  %1195 = vmatprep.subr.bf16.mxu0 0
  %1196 = vmatpush1.bf16.msra.mxu0 0
  %1197 = vmatprep.subr.bf16.mxu0 0
  %1198 = vmatpush1.bf16.msra.mxu0 0
  %1199 = vmatprep.mubr.bf16.mxu0 0
  %1200 = vmatmul.mubr.bf16.gmra.mrb[0].mxu0 %v1120
  %v1201 = vpop.f32.mrb[0].mxu0
  %v1202 = vadd.f32 0.0, %v1201
  %v1203 = vpop.f32.mrb[0].mxu0
  %v1204 = vadd.f32 0.0, %v1203
  %v1205 = vpop.f32.mrb[0].mxu0
  %v1206 = vadd.f32 0.0, %v1205
  %v1207 = vpop.f32.mrb[0].mxu0
  %v1208 = vadd.f32 0.0, %v1207
  %1209 = vmatprep.mubr.bf16.mxu0 0
  %1210 = vmatmul.mubr.bf16.gmra.mrb[0].mxu0 %v1123
  %v1211 = vpop.f32.mrb[0].mxu0
  %v1212 = vadd.f32 0.0, %v1211
  %v1213 = vpop.f32.mrb[0].mxu0
  %v1214 = vadd.f32 0.0, %v1213
  %v1215 = vpop.f32.mrb[0].mxu0
  %v1216 = vadd.f32 0.0, %v1215
  %v1217 = vpop.f32.mrb[0].mxu0
  %v1218 = vadd.f32 0.0, %v1217
  %1219 = vmatprep.mubr.bf16.mxu0 0
  %1220 = vmatmul.mubr.bf16.gmra.mrb[0].mxu0 %v1126
  %v1221 = vpop.f32.mrb[0].mxu0
  %v1222 = vadd.f32 0.0, %v1221
  %v1223 = vpop.f32.mrb[0].mxu0
  %v1224 = vadd.f32 0.0, %v1223
  %v1225 = vpop.f32.mrb[0].mxu0
  %v1226 = vadd.f32 0.0, %v1225
  %v1227 = vpop.f32.mrb[0].mxu0
  %v1228 = vadd.f32 0.0, %v1227
  %1229 = vmatprep.mubr.bf16.mxu0 0
  %1230 = vmatmul.mubr.bf16.gmra.mrb[0].mxu0 %v1129
  %v1231 = vpop.f32.mrb[0].mxu0
  %v1232 = vadd.f32 0.0, %v1231
  %v1233 = vpop.f32.mrb[0].mxu0
  %v1234 = vadd.f32 0.0, %v1233
  %v1235 = vpop.f32.mrb[0].mxu0
  %v1236 = vadd.f32 0.0, %v1235
  %v1237 = vpop.f32.mrb[0].mxu0
  %v1238 = vadd.f32 0.0, %v1237
  %1239 = vmatprep.mubr.bf16.mxu0 0
  %1240 = vmatmul.mubr.bf16.gmra.mrb[0].mxu0 %v1132
  %v1241 = vpop.f32.mrb[0].mxu0
  %v1242 = vadd.f32 0.0, %v1241
  %v1243 = vpop.f32.mrb[0].mxu0
  %v1244 = vadd.f32 0.0, %v1243
  %v1245 = vpop.f32.mrb[0].mxu0
  %v1246 = vadd.f32 0.0, %v1245
  %v1247 = vpop.f32.mrb[0].mxu0
  %v1248 = vadd.f32 0.0, %v1247
  %1249 = vmatprep.mubr.bf16.mxu0 0
  %1250 = vmatmul.mubr.bf16.gmra.mrb[0].mxu0 %v1135
  %v1251 = vpop.f32.mrb[0].mxu0
  %v1252 = vadd.f32 0.0, %v1251
  %v1253 = vpop.f32.mrb[0].mxu0
  %v1254 = vadd.f32 0.0, %v1253
  %v1255 = vpop.f32.mrb[0].mxu0
  %v1256 = vadd.f32 0.0, %v1255
  %v1257 = vpop.f32.mrb[0].mxu0
  %v1258 = vadd.f32 0.0, %v1257
  %1259 = vmatprep.mubr.bf16.mxu0 0
  %1260 = vmatmul.mubr.bf16.gmra.mrb[0].mxu0 %v1138
  %v1261 = vpop.f32.mrb[0].mxu0
  %v1262 = vadd.f32 0.0, %v1261
  %v1263 = vpop.f32.mrb[0].mxu0
  %v1264 = vadd.f32 0.0, %v1263
  %v1265 = vpop.f32.mrb[0].mxu0
  %v1266 = vadd.f32 0.0, %v1265
  %v1267 = vpop.f32.mrb[0].mxu0
  %v1268 = vadd.f32 0.0, %v1267
  %1269 = vmatprep.mubr.bf16.mxu0 0
  %1270 = vmatmul.mubr.bf16.gmra.mrb[0].mxu0 %v1141
  %v1271 = vpop.f32.mrb[0].mxu0
  %v1272 = vadd.f32 0.0, %v1271
  %v1273 = vpop.f32.mrb[0].mxu0
  %v1274 = vadd.f32 0.0, %v1273
  %v1275 = vpop.f32.mrb[0].mxu0
  %v1276 = vadd.f32 0.0, %v1275
  %v1277 = vpop.f32.mrb[0].mxu0
  %v1278 = vadd.f32 0.0, %v1277
  %1279 = vmatprep.mubr.bf16.mxu0 0
  %1280 = vmatmul.mubr.bf16.gmra.mrb[0].mxu0 %v1144
  %v1281 = vpop.f32.mrb[0].mxu0
  %v1282 = vadd.f32 0.0, %v1281
  %v1283 = vpop.f32.mrb[0].mxu0
  %v1284 = vadd.f32 0.0, %v1283
  %v1285 = vpop.f32.mrb[0].mxu0
  %v1286 = vadd.f32 0.0, %v1285
  %v1287 = vpop.f32.mrb[0].mxu0
  %v1288 = vadd.f32 0.0, %v1287
  %1289 = vmatprep.mubr.bf16.mxu0 0
  %1290 = vmatmul.mubr.bf16.gmra.mrb[0].mxu0 %v1147
  %v1291 = vpop.f32.mrb[0].mxu0
  %v1292 = vadd.f32 0.0, %v1291
  %v1293 = vpop.f32.mrb[0].mxu0
  %v1294 = vadd.f32 0.0, %v1293
  %v1295 = vpop.f32.mrb[0].mxu0
  %v1296 = vadd.f32 0.0, %v1295
  %v1297 = vpop.f32.mrb[0].mxu0
  %v1298 = vadd.f32 0.0, %v1297
  %1299 = vmatprep.mubr.bf16.mxu0 0
  %1300 = vmatmul.mubr.bf16.gmra.mrb[0].mxu0 %v1150
  %v1301 = vpop.f32.mrb[0].mxu0
  %v1302 = vadd.f32 0.0, %v1301
  %v1303 = vpop.f32.mrb[0].mxu0
  %v1304 = vadd.f32 0.0, %v1303
  %v1305 = vpop.f32.mrb[0].mxu0
  %v1306 = vadd.f32 0.0, %v1305
  %v1307 = vpop.f32.mrb[0].mxu0
  %v1308 = vadd.f32 0.0, %v1307
  %1309 = vmatprep.mubr.bf16.mxu0 0
  %1310 = vmatmul.mubr.bf16.gmra.mrb[0].mxu0 %v1153
  %v1311 = vpop.f32.mrb[0].mxu0
  %v1312 = vadd.f32 0.0, %v1311
  %v1313 = vpop.f32.mrb[0].mxu0
  %v1314 = vadd.f32 0.0, %v1313
  %v1315 = vpop.f32.mrb[0].mxu0
  %v1316 = vadd.f32 0.0, %v1315
  %v1317 = vpop.f32.mrb[0].mxu0
  %v1318 = vadd.f32 0.0, %v1317
  %1319 = vmatprep.mubr.bf16.mxu0 0
  %1320 = vmatmul.mubr.bf16.gmra.mrb[0].mxu0 %v1156
  %v1321 = vpop.f32.mrb[0].mxu0
  %v1322 = vadd.f32 0.0, %v1321
  %v1323 = vpop.f32.mrb[0].mxu0
  %v1324 = vadd.f32 0.0, %v1323
  %v1325 = vpop.f32.mrb[0].mxu0
  %v1326 = vadd.f32 0.0, %v1325
  %v1327 = vpop.f32.mrb[0].mxu0
  %v1328 = vadd.f32 0.0, %v1327
  %1329 = vmatprep.mubr.bf16.mxu0 0
  %1330 = vmatmul.mubr.bf16.gmra.mrb[0].mxu0 %v1159
  %v1331 = vpop.f32.mrb[0].mxu0
  %v1332 = vadd.f32 0.0, %v1331
  %v1333 = vpop.f32.mrb[0].mxu0
  %v1334 = vadd.f32 0.0, %v1333
  %v1335 = vpop.f32.mrb[0].mxu0
  %v1336 = vadd.f32 0.0, %v1335
  %v1337 = vpop.f32.mrb[0].mxu0
  %v1338 = vadd.f32 0.0, %v1337
  %1339 = vmatprep.mubr.bf16.mxu0 0
  %1340 = vmatmul.mubr.bf16.gmra.mrb[0].mxu0 %v1162
  %v1341 = vpop.f32.mrb[0].mxu0
  %v1342 = vadd.f32 0.0, %v1341
  %v1343 = vpop.f32.mrb[0].mxu0
  %v1344 = vadd.f32 0.0, %v1343
  %v1345 = vpop.f32.mrb[0].mxu0
  %v1346 = vadd.f32 0.0, %v1345
  %v1347 = vpop.f32.mrb[0].mxu0
  %v1348 = vadd.f32 0.0, %v1347
  %1349 = vmatprep.mubr.bf16.mxu0 0
  %1350 = vmatmul.mubr.bf16.gmra.mrb[0].mxu0 %v1165
  %v1351 = vpop.f32.mrb[0].mxu0
  %v1352 = vadd.f32 0.0, %v1351
  %v1353 = vpop.f32.mrb[0].mxu0
  %v1354 = vadd.f32 0.0, %v1353
  %v1355 = vpop.f32.mrb[0].mxu0
  %v1356 = vadd.f32 0.0, %v1355
  %v1357 = vpop.f32.mrb[0].mxu0
  %v1358 = vadd.f32 0.0, %v1357
  %1359 = vdwg.mxu0
  %v1360 = vadd.f32 %v982, %v1202
  %v1361 = vadd.f32 %v983, %v1204
  %v1362 = vadd.f32 %v984, %v1206
  %v1363 = vadd.f32 %v985, %v1208
  %v1364 = vadd.f32 %v986, %v1212
  %v1365 = vadd.f32 %v987, %v1214
  %v1366 = vadd.f32 %v988, %v1216
  %v1367 = vadd.f32 %v989, %v1218
  %v1368 = vadd.f32 %v990, %v1222
  %v1369 = vadd.f32 %v991, %v1224
  %v1370 = vadd.f32 %v992, %v1226
  %v1371 = vadd.f32 %v993, %v1228
  %v1372 = vadd.f32 %v994, %v1232
  %v1373 = vadd.f32 %v995, %v1234
  %v1374 = vadd.f32 %v996, %v1236
  %v1375 = vadd.f32 %v997, %v1238
  %v1376 = vadd.f32 %v998, %v1242
  %v1377 = vadd.f32 %v999, %v1244
  %v1378 = vadd.f32 %v1000, %v1246
  %v1379 = vadd.f32 %v1001, %v1248
  %v1380 = vadd.f32 %v1002, %v1252
  %v1381 = vadd.f32 %v1003, %v1254
  %v1382 = vadd.f32 %v1004, %v1256
  %v1383 = vadd.f32 %v1005, %v1258
  %v1384 = vadd.f32 %v1006, %v1262
  %v1385 = vadd.f32 %v1007, %v1264
  %v1386 = vadd.f32 %v1008, %v1266
  %v1387 = vadd.f32 %v1009, %v1268
  %v1388 = vadd.f32 %v1010, %v1272
  %v1389 = vadd.f32 %v1011, %v1274
  %v1390 = vadd.f32 %v1012, %v1276
  %v1391 = vadd.f32 %v1013, %v1278
  %v1392 = vadd.f32 %v1014, %v1282
  %v1393 = vadd.f32 %v1015, %v1284
  %v1394 = vadd.f32 %v1016, %v1286
  %v1395 = vadd.f32 %v1017, %v1288
  %v1396 = vadd.f32 %v1018, %v1292
  %v1397 = vadd.f32 %v1019, %v1294
  %v1398 = vadd.f32 %v1020, %v1296
  %v1399 = vadd.f32 %v1021, %v1298
  %v1400 = vadd.f32 %v1022, %v1302
  %v1401 = vadd.f32 %v1023, %v1304
  %v1402 = vadd.f32 %v1024, %v1306
  %v1403 = vadd.f32 %v1025, %v1308
  %v1404 = vadd.f32 %v1026, %v1312
  %v1405 = vadd.f32 %v1027, %v1314
  %v1406 = vadd.f32 %v1028, %v1316
  %v1407 = vadd.f32 %v1029, %v1318
  %v1408 = vadd.f32 %v1030, %v1322
  %v1409 = vadd.f32 %v1031, %v1324
  %v1410 = vadd.f32 %v1032, %v1326
  %v1411 = vadd.f32 %v1033, %v1328
  %v1412 = vadd.f32 %v1034, %v1332
  %v1413 = vadd.f32 %v1035, %v1334
  %v1414 = vadd.f32 %v1036, %v1336
  %v1415 = vadd.f32 %v1037, %v1338
  %v1416 = vadd.f32 %v1038, %v1342
  %v1417 = vadd.f32 %v1039, %v1344
  %v1418 = vadd.f32 %v1040, %v1346
  %v1419 = vadd.f32 %v1041, %v1348
  %v1420 = vadd.f32 %v1042, %v1352
  %v1421 = vadd.f32 %v1043, %v1354
  %v1422 = vadd.f32 %v1044, %v1356
  %v1423 = vadd.f32 %v1045, %v1358
  %v1424 = vld [vmem:[%s0 + $0x4] sm:$0xff]
  %v1425 = vld [vmem:[%s0 + $0xc] sm:$0xff]
  %v1426 = vld [vmem:[%s0 + $0x14] sm:$0xff]
  %v1427 = vld [vmem:[%s0 + $0x1c] sm:$0xff]
  %v1428 = vld [vmem:[%s0 + $0x24] sm:$0xff]
  %v1429 = vld [vmem:[%s0 + $0x2c] sm:$0xff]
  %v1430 = vld [vmem:[%s0 + $0x34] sm:$0xff]
  %v1431 = vld [vmem:[%s0 + $0x3c] sm:$0xff]
  %v1432 = vld [vmem:[%s0 + $0x44] sm:$0xff]
  %v1433 = vld [vmem:[%s0 + $0x4c] sm:$0xff]
  %v1434 = vld [vmem:[%s0 + $0x54] sm:$0xff]
  %v1435 = vld [vmem:[%s0 + $0x5c] sm:$0xff]
  %v1436 = vld [vmem:[%s0 + $0x64] sm:$0xff]
  %v1437 = vld [vmem:[%s0 + $0x6c] sm:$0xff]
  %v1438 = vld [vmem:[%s0 + $0x74] sm:$0xff]
  %v1439 = vld [vmem:[%s0 + $0x7c] sm:$0xff]
  %v1440 = vld [vmem:[%s0 + $0x84] sm:$0xff]
  %v1441 = vld [vmem:[%s0 + $0x8c] sm:$0xff]
  %v1442 = vld [vmem:[%s0 + $0x94] sm:$0xff]
  %v1443 = vld [vmem:[%s0 + $0x9c] sm:$0xff]
  %v1444 = vld [vmem:[%s0 + $0xa4] sm:$0xff]
  %v1445 = vld [vmem:[%s0 + $0xac] sm:$0xff]
  %v1446 = vld [vmem:[%s0 + $0xb4] sm:$0xff]
  %v1447 = vld [vmem:[%s0 + $0xbc] sm:$0xff]
  %v1448 = vld [vmem:[%s0 + $0xc4] sm:$0xff]
  %v1449 = vld [vmem:[%s0 + $0xcc] sm:$0xff]
  %v1450 = vld [vmem:[%s0 + $0xd4] sm:$0xff]
  %v1451 = vld [vmem:[%s0 + $0xdc] sm:$0xff]
  %v1452 = vld [vmem:[%s0 + $0xe4] sm:$0xff]
  %v1453 = vld [vmem:[%s0 + $0xec] sm:$0xff]
  %v1454 = vld [vmem:[%s0 + $0xf4] sm:$0xff]
  %v1455 = vld [vmem:[%s0 + $0xfc] sm:$0xf]
  %v1456 = vpack.c.bf16 %v1425, %v1424
  %v1457 = vpack.c.bf16 %v1427, %v1426
  %v1458 = vpack.c.bf16 %v1429, %v1428
  %v1459 = vpack.c.bf16 %v1431, %v1430
  %v1460 = vpack.c.bf16 %v1433, %v1432
  %v1461 = vpack.c.bf16 %v1435, %v1434
  %v1462 = vpack.c.bf16 %v1437, %v1436
  %v1463 = vpack.c.bf16 %v1439, %v1438
  %v1464 = vpack.c.bf16 %v1441, %v1440
  %v1465 = vpack.c.bf16 %v1443, %v1442
  %v1466 = vpack.c.bf16 %v1445, %v1444
  %v1467 = vpack.c.bf16 %v1447, %v1446
  %v1468 = vpack.c.bf16 %v1449, %v1448
  %v1469 = vpack.c.bf16 %v1451, %v1450
  %v1470 = vpack.c.bf16 %v1453, %v1452
  %v1471 = vpack.c.bf16 %v1455, %v1454
  %s1472 = scalar_lea.vmem %s1, 128
  %v1473 = vld [vmem:[%s1472] sm:$0xff]
  %v1474 = vld [vmem:[%s1472 + $0x8] sm:$0xff]
  %v1475 = vld [vmem:[%s1472 + $0x10] sm:$0xff]
  %v1476 = vld [vmem:[%s1472 + $0x18] sm:$0xff]
  %v1481 = vunpack.c.l.b16 %v1473
  %v1482 = vunpack.c.h.b16 %v1473
  %v1483 = vunpack.c.l.b16 %v1474
  %v1484 = vunpack.c.h.b16 %v1474
  %v1485 = vunpack.c.l.b16 %v1475
  %v1486 = vunpack.c.h.b16 %v1475
  %v1487 = vunpack.c.l.b16 %v1476
  %v1488 = vunpack.c.h.b16 %v1476
  %v1489 = vpack.c.b16 %v1483, %v1481
  %v1490 = vpack.c.b16 %v1484, %v1482
  %v1491 = vpack.c.b16 %v1487, %v1485
  %v1492 = vpack.c.b16 %v1488, %v1486
  %v1498 = vsel %vm165, %v1456, 0
  %v1501 = vsel %vm165, %v1457, 0
  %v1504 = vsel %vm165, %v1458, 0
  %v1507 = vsel %vm165, %v1459, 0
  %v1510 = vsel %vm165, %v1460, 0
  %v1513 = vsel %vm165, %v1461, 0
  %v1516 = vsel %vm165, %v1462, 0
  %v1519 = vsel %vm165, %v1463, 0
  %v1522 = vsel %vm165, %v1464, 0
  %v1525 = vsel %vm165, %v1465, 0
  %v1528 = vsel %vm165, %v1466, 0
  %v1531 = vsel %vm165, %v1467, 0
  %v1534 = vsel %vm165, %v1468, 0
  %v1537 = vsel %vm165, %v1469, 0
  %v1540 = vsel %vm165, %v1470, 0
  %v1543 = vsel %vm165, %v1471, 0
  %1545 = vmatprep.subr.bf16.mxu0 %v1490
  %1546 = vmatpush1.bf16.msra.mxu0 %v1489
  %1547 = vmatprep.subr.bf16.mxu0 %v1492
  %1548 = vmatpush1.bf16.msra.mxu0 %v1491
  %1549 = vmatprep.subr.bf16.mxu0 0
  %1550 = vmatpush1.bf16.msra.mxu0 0
  %1551 = vmatprep.subr.bf16.mxu0 0
  %1552 = vmatpush1.bf16.msra.mxu0 0
  %1553 = vmatprep.subr.bf16.mxu0 0
  %1554 = vmatpush1.bf16.msra.mxu0 0
  %1555 = vmatprep.subr.bf16.mxu0 0
  %1556 = vmatpush1.bf16.msra.mxu0 0
  %1557 = vmatprep.subr.bf16.mxu0 0
  %1558 = vmatpush1.bf16.msra.mxu0 0
  %1559 = vmatprep.subr.bf16.mxu0 0
  %1560 = vmatpush1.bf16.msra.mxu0 0
  %1561 = vmatprep.subr.bf16.mxu0 0
  %1562 = vmatpush1.bf16.msra.mxu0 0
  %1563 = vmatprep.subr.bf16.mxu0 0
  %1564 = vmatpush1.bf16.msra.mxu0 0
  %1565 = vmatprep.subr.bf16.mxu0 0
  %1566 = vmatpush1.bf16.msra.mxu0 0
  %1567 = vmatprep.subr.bf16.mxu0 0
  %1568 = vmatpush1.bf16.msra.mxu0 0
  %1569 = vmatprep.subr.bf16.mxu0 0
  %1570 = vmatpush1.bf16.msra.mxu0 0
  %1571 = vmatprep.subr.bf16.mxu0 0
  %1572 = vmatpush1.bf16.msra.mxu0 0
  %1573 = vmatprep.subr.bf16.mxu0 0
  %1574 = vmatpush1.bf16.msra.mxu0 0
  %1575 = vmatprep.subr.bf16.mxu0 0
  %1576 = vmatpush1.bf16.msra.mxu0 0
  %1577 = vmatprep.mubr.bf16.mxu0 0
  %1578 = vmatmul.mubr.bf16.gmra.mrb[0].mxu0 %v1498
  %v1579 = vpop.f32.mrb[0].mxu0
  %v1580 = vadd.f32 0.0, %v1579
  %v1581 = vpop.f32.mrb[0].mxu0
  %v1582 = vadd.f32 0.0, %v1581
  %v1583 = vpop.f32.mrb[0].mxu0
  %v1584 = vadd.f32 0.0, %v1583
  %v1585 = vpop.f32.mrb[0].mxu0
  %v1586 = vadd.f32 0.0, %v1585
  %1587 = vmatprep.mubr.bf16.mxu0 0
  %1588 = vmatmul.mubr.bf16.gmra.mrb[0].mxu0 %v1501
  %v1589 = vpop.f32.mrb[0].mxu0
  %v1590 = vadd.f32 0.0, %v1589
  %v1591 = vpop.f32.mrb[0].mxu0
  %v1592 = vadd.f32 0.0, %v1591
  %v1593 = vpop.f32.mrb[0].mxu0
  %v1594 = vadd.f32 0.0, %v1593
  %v1595 = vpop.f32.mrb[0].mxu0
  %v1596 = vadd.f32 0.0, %v1595
  %1597 = vmatprep.mubr.bf16.mxu0 0
  %1598 = vmatmul.mubr.bf16.gmra.mrb[0].mxu0 %v1504
  %v1599 = vpop.f32.mrb[0].mxu0
  %v1600 = vadd.f32 0.0, %v1599
  %v1601 = vpop.f32.mrb[0].mxu0
  %v1602 = vadd.f32 0.0, %v1601
  %v1603 = vpop.f32.mrb[0].mxu0
  %v1604 = vadd.f32 0.0, %v1603
  %v1605 = vpop.f32.mrb[0].mxu0
  %v1606 = vadd.f32 0.0, %v1605
  %1607 = vmatprep.mubr.bf16.mxu0 0
  %1608 = vmatmul.mubr.bf16.gmra.mrb[0].mxu0 %v1507
  %v1609 = vpop.f32.mrb[0].mxu0
  %v1610 = vadd.f32 0.0, %v1609
  %v1611 = vpop.f32.mrb[0].mxu0
  %v1612 = vadd.f32 0.0, %v1611
  %v1613 = vpop.f32.mrb[0].mxu0
  %v1614 = vadd.f32 0.0, %v1613
  %v1615 = vpop.f32.mrb[0].mxu0
  %v1616 = vadd.f32 0.0, %v1615
  %1617 = vmatprep.mubr.bf16.mxu0 0
  %1618 = vmatmul.mubr.bf16.gmra.mrb[0].mxu0 %v1510
  %v1619 = vpop.f32.mrb[0].mxu0
  %v1620 = vadd.f32 0.0, %v1619
  %v1621 = vpop.f32.mrb[0].mxu0
  %v1622 = vadd.f32 0.0, %v1621
  %v1623 = vpop.f32.mrb[0].mxu0
  %v1624 = vadd.f32 0.0, %v1623
  %v1625 = vpop.f32.mrb[0].mxu0
  %v1626 = vadd.f32 0.0, %v1625
  %1627 = vmatprep.mubr.bf16.mxu0 0
  %1628 = vmatmul.mubr.bf16.gmra.mrb[0].mxu0 %v1513
  %v1629 = vpop.f32.mrb[0].mxu0
  %v1630 = vadd.f32 0.0, %v1629
  %v1631 = vpop.f32.mrb[0].mxu0
  %v1632 = vadd.f32 0.0, %v1631
  %v1633 = vpop.f32.mrb[0].mxu0
  %v1634 = vadd.f32 0.0, %v1633
  %v1635 = vpop.f32.mrb[0].mxu0
  %v1636 = vadd.f32 0.0, %v1635
  %1637 = vmatprep.mubr.bf16.mxu0 0
  %1638 = vmatmul.mubr.bf16.gmra.mrb[0].mxu0 %v1516
  %v1639 = vpop.f32.mrb[0].mxu0
  %v1640 = vadd.f32 0.0, %v1639
  %v1641 = vpop.f32.mrb[0].mxu0
  %v1642 = vadd.f32 0.0, %v1641
  %v1643 = vpop.f32.mrb[0].mxu0
  %v1644 = vadd.f32 0.0, %v1643
  %v1645 = vpop.f32.mrb[0].mxu0
  %v1646 = vadd.f32 0.0, %v1645
  %1647 = vmatprep.mubr.bf16.mxu0 0
  %1648 = vmatmul.mubr.bf16.gmra.mrb[0].mxu0 %v1519
  %v1649 = vpop.f32.mrb[0].mxu0
  %v1650 = vadd.f32 0.0, %v1649
  %v1651 = vpop.f32.mrb[0].mxu0
  %v1652 = vadd.f32 0.0, %v1651
  %v1653 = vpop.f32.mrb[0].mxu0
  %v1654 = vadd.f32 0.0, %v1653
  %v1655 = vpop.f32.mrb[0].mxu0
  %v1656 = vadd.f32 0.0, %v1655
  %1657 = vmatprep.mubr.bf16.mxu0 0
  %1658 = vmatmul.mubr.bf16.gmra.mrb[0].mxu0 %v1522
  %v1659 = vpop.f32.mrb[0].mxu0
  %v1660 = vadd.f32 0.0, %v1659
  %v1661 = vpop.f32.mrb[0].mxu0
  %v1662 = vadd.f32 0.0, %v1661
  %v1663 = vpop.f32.mrb[0].mxu0
  %v1664 = vadd.f32 0.0, %v1663
  %v1665 = vpop.f32.mrb[0].mxu0
  %v1666 = vadd.f32 0.0, %v1665
  %1667 = vmatprep.mubr.bf16.mxu0 0
  %1668 = vmatmul.mubr.bf16.gmra.mrb[0].mxu0 %v1525
  %v1669 = vpop.f32.mrb[0].mxu0
  %v1670 = vadd.f32 0.0, %v1669
  %v1671 = vpop.f32.mrb[0].mxu0
  %v1672 = vadd.f32 0.0, %v1671
  %v1673 = vpop.f32.mrb[0].mxu0
  %v1674 = vadd.f32 0.0, %v1673
  %v1675 = vpop.f32.mrb[0].mxu0
  %v1676 = vadd.f32 0.0, %v1675
  %1677 = vmatprep.mubr.bf16.mxu0 0
  %1678 = vmatmul.mubr.bf16.gmra.mrb[0].mxu0 %v1528
  %v1679 = vpop.f32.mrb[0].mxu0
  %v1680 = vadd.f32 0.0, %v1679
  %v1681 = vpop.f32.mrb[0].mxu0
  %v1682 = vadd.f32 0.0, %v1681
  %v1683 = vpop.f32.mrb[0].mxu0
  %v1684 = vadd.f32 0.0, %v1683
  %v1685 = vpop.f32.mrb[0].mxu0
  %v1686 = vadd.f32 0.0, %v1685
  %1687 = vmatprep.mubr.bf16.mxu0 0
  %1688 = vmatmul.mubr.bf16.gmra.mrb[0].mxu0 %v1531
  %v1689 = vpop.f32.mrb[0].mxu0
  %v1690 = vadd.f32 0.0, %v1689
  %v1691 = vpop.f32.mrb[0].mxu0
  %v1692 = vadd.f32 0.0, %v1691
  %v1693 = vpop.f32.mrb[0].mxu0
  %v1694 = vadd.f32 0.0, %v1693
  %v1695 = vpop.f32.mrb[0].mxu0
  %v1696 = vadd.f32 0.0, %v1695
  %1697 = vmatprep.mubr.bf16.mxu0 0
  %1698 = vmatmul.mubr.bf16.gmra.mrb[0].mxu0 %v1534
  %v1699 = vpop.f32.mrb[0].mxu0
  %v1700 = vadd.f32 0.0, %v1699
  %v1701 = vpop.f32.mrb[0].mxu0
  %v1702 = vadd.f32 0.0, %v1701
  %v1703 = vpop.f32.mrb[0].mxu0
  %v1704 = vadd.f32 0.0, %v1703
  %v1705 = vpop.f32.mrb[0].mxu0
  %v1706 = vadd.f32 0.0, %v1705
  %1707 = vmatprep.mubr.bf16.mxu0 0
  %1708 = vmatmul.mubr.bf16.gmra.mrb[0].mxu0 %v1537
  %v1709 = vpop.f32.mrb[0].mxu0
  %v1710 = vadd.f32 0.0, %v1709
  %v1711 = vpop.f32.mrb[0].mxu0
  %v1712 = vadd.f32 0.0, %v1711
  %v1713 = vpop.f32.mrb[0].mxu0
  %v1714 = vadd.f32 0.0, %v1713
  %v1715 = vpop.f32.mrb[0].mxu0
  %v1716 = vadd.f32 0.0, %v1715
  %1717 = vmatprep.mubr.bf16.mxu0 0
  %1718 = vmatmul.mubr.bf16.gmra.mrb[0].mxu0 %v1540
  %v1719 = vpop.f32.mrb[0].mxu0
  %v1720 = vadd.f32 0.0, %v1719
  %v1721 = vpop.f32.mrb[0].mxu0
  %v1722 = vadd.f32 0.0, %v1721
  %v1723 = vpop.f32.mrb[0].mxu0
  %v1724 = vadd.f32 0.0, %v1723
  %v1725 = vpop.f32.mrb[0].mxu0
  %v1726 = vadd.f32 0.0, %v1725
  %1727 = vmatprep.mubr.bf16.mxu0 0
  %1728 = vmatmul.mubr.bf16.gmra.mrb[0].mxu0 %v1543
  %v1729 = vpop.f32.mrb[0].mxu0
  %v1730 = vadd.f32 0.0, %v1729
  %v1731 = vpop.f32.mrb[0].mxu0
  %v1732 = vadd.f32 0.0, %v1731
  %v1733 = vpop.f32.mrb[0].mxu0
  %v1734 = vadd.f32 0.0, %v1733
  %v1735 = vpop.f32.mrb[0].mxu0
  %v1736 = vadd.f32 0.0, %v1735
  %1737 = vdwg.mxu0
  %v1738 = vadd.f32 %v1360, %v1580
  %v1739 = vadd.f32 %v1361, %v1582
  %v1740 = vadd.f32 %v1362, %v1584
  %v1741 = vadd.f32 %v1363, %v1586
  %v1742 = vadd.f32 %v1364, %v1590
  %v1743 = vadd.f32 %v1365, %v1592
  %v1744 = vadd.f32 %v1366, %v1594
  %v1745 = vadd.f32 %v1367, %v1596
  %v1746 = vadd.f32 %v1368, %v1600
  %v1747 = vadd.f32 %v1369, %v1602
  %v1748 = vadd.f32 %v1370, %v1604
  %v1749 = vadd.f32 %v1371, %v1606
  %v1750 = vadd.f32 %v1372, %v1610
  %v1751 = vadd.f32 %v1373, %v1612
  %v1752 = vadd.f32 %v1374, %v1614
  %v1753 = vadd.f32 %v1375, %v1616
  %v1754 = vadd.f32 %v1376, %v1620
  %v1755 = vadd.f32 %v1377, %v1622
  %v1756 = vadd.f32 %v1378, %v1624
  %v1757 = vadd.f32 %v1379, %v1626
  %v1758 = vadd.f32 %v1380, %v1630
  %v1759 = vadd.f32 %v1381, %v1632
  %v1760 = vadd.f32 %v1382, %v1634
  %v1761 = vadd.f32 %v1383, %v1636
  %v1762 = vadd.f32 %v1384, %v1640
  %v1763 = vadd.f32 %v1385, %v1642
  %v1764 = vadd.f32 %v1386, %v1644
  %v1765 = vadd.f32 %v1387, %v1646
  %v1766 = vadd.f32 %v1388, %v1650
  %v1767 = vadd.f32 %v1389, %v1652
  %v1768 = vadd.f32 %v1390, %v1654
  %v1769 = vadd.f32 %v1391, %v1656
  %v1770 = vadd.f32 %v1392, %v1660
  %v1771 = vadd.f32 %v1393, %v1662
  %v1772 = vadd.f32 %v1394, %v1664
  %v1773 = vadd.f32 %v1395, %v1666
  %v1774 = vadd.f32 %v1396, %v1670
  %v1775 = vadd.f32 %v1397, %v1672
  %v1776 = vadd.f32 %v1398, %v1674
  %v1777 = vadd.f32 %v1399, %v1676
  %v1778 = vadd.f32 %v1400, %v1680
  %v1779 = vadd.f32 %v1401, %v1682
  %v1780 = vadd.f32 %v1402, %v1684
  %v1781 = vadd.f32 %v1403, %v1686
  %v1782 = vadd.f32 %v1404, %v1690
  %v1783 = vadd.f32 %v1405, %v1692
  %v1784 = vadd.f32 %v1406, %v1694
  %v1785 = vadd.f32 %v1407, %v1696
  %v1786 = vadd.f32 %v1408, %v1700
  %v1787 = vadd.f32 %v1409, %v1702
  %v1788 = vadd.f32 %v1410, %v1704
  %v1789 = vadd.f32 %v1411, %v1706
  %v1790 = vadd.f32 %v1412, %v1710
  %v1791 = vadd.f32 %v1413, %v1712
  %v1792 = vadd.f32 %v1414, %v1714
  %v1793 = vadd.f32 %v1415, %v1716
  %v1794 = vadd.f32 %v1416, %v1720
  %v1795 = vadd.f32 %v1417, %v1722
  %v1796 = vadd.f32 %v1418, %v1724
  %v1797 = vadd.f32 %v1419, %v1726
  %v1798 = vadd.f32 %v1420, %v1730
  %v1799 = vadd.f32 %v1421, %v1732
  %v1800 = vadd.f32 %v1422, %v1734
  %v1801 = vadd.f32 %v1423, %v1736
  %v1802 = vld [vmem:[%s2] sm:$0x3]
  %v1804 = vlaneseq
  %v1805 = vshrl.u32 %v1804, 7
  %v1806 = vsub.s32 0, %v1805
  %v1807 = vrot.slane %v1802, %v1806
  %v1808 = vlaneseq
  %v1809 = vshrl.u32 %v1808, 7
  %v1810 = vsub.s32 1, %v1809
  %v1811 = vrot.slane %v1802, %v1810
  %v1814 = vadd.f32 %v1738, %v1807
  %v1815 = vadd.f32 %v1739, %v1811
  %v1816 = vadd.f32 %v1740, %v1807
  %v1817 = vadd.f32 %v1741, %v1811
  %v1818 = vadd.f32 %v1742, %v1807
  %v1819 = vadd.f32 %v1743, %v1811
  %v1820 = vadd.f32 %v1744, %v1807
  %v1821 = vadd.f32 %v1745, %v1811
  %v1822 = vadd.f32 %v1746, %v1807
  %v1823 = vadd.f32 %v1747, %v1811
  %v1824 = vadd.f32 %v1748, %v1807
  %v1825 = vadd.f32 %v1749, %v1811
  %v1826 = vadd.f32 %v1750, %v1807
  %v1827 = vadd.f32 %v1751, %v1811
  %v1828 = vadd.f32 %v1752, %v1807
  %v1829 = vadd.f32 %v1753, %v1811
  %v1830 = vadd.f32 %v1754, %v1807
  %v1831 = vadd.f32 %v1755, %v1811
  %v1832 = vadd.f32 %v1756, %v1807
  %v1833 = vadd.f32 %v1757, %v1811
  %v1834 = vadd.f32 %v1758, %v1807
  %v1835 = vadd.f32 %v1759, %v1811
  %v1836 = vadd.f32 %v1760, %v1807
  %v1837 = vadd.f32 %v1761, %v1811
  %v1838 = vadd.f32 %v1762, %v1807
  %v1839 = vadd.f32 %v1763, %v1811
  %v1840 = vadd.f32 %v1764, %v1807
  %v1841 = vadd.f32 %v1765, %v1811
  %v1842 = vadd.f32 %v1766, %v1807
  %v1843 = vadd.f32 %v1767, %v1811
  %v1844 = vadd.f32 %v1768, %v1807
  %v1845 = vadd.f32 %v1769, %v1811
  %v1846 = vadd.f32 %v1770, %v1807
  %v1847 = vadd.f32 %v1771, %v1811
  %v1848 = vadd.f32 %v1772, %v1807
  %v1849 = vadd.f32 %v1773, %v1811
  %v1850 = vadd.f32 %v1774, %v1807
  %v1851 = vadd.f32 %v1775, %v1811
  %v1852 = vadd.f32 %v1776, %v1807
  %v1853 = vadd.f32 %v1777, %v1811
  %v1854 = vadd.f32 %v1778, %v1807
  %v1855 = vadd.f32 %v1779, %v1811
  %v1856 = vadd.f32 %v1780, %v1807
  %v1857 = vadd.f32 %v1781, %v1811
  %v1858 = vadd.f32 %v1782, %v1807
  %v1859 = vadd.f32 %v1783, %v1811
  %v1860 = vadd.f32 %v1784, %v1807
  %v1861 = vadd.f32 %v1785, %v1811
  %v1862 = vadd.f32 %v1786, %v1807
  %v1863 = vadd.f32 %v1787, %v1811
  %v1864 = vadd.f32 %v1788, %v1807
  %v1865 = vadd.f32 %v1789, %v1811
  %v1866 = vadd.f32 %v1790, %v1807
  %v1867 = vadd.f32 %v1791, %v1811
  %v1868 = vadd.f32 %v1792, %v1807
  %v1869 = vadd.f32 %v1793, %v1811
  %v1870 = vadd.f32 %v1794, %v1807
  %v1871 = vadd.f32 %v1795, %v1811
  %v1872 = vadd.f32 %v1796, %v1807
  %v1873 = vadd.f32 %v1797, %v1811
  %v1874 = vadd.f32 %v1798, %v1807
  %v1875 = vadd.f32 %v1799, %v1811
  %v1876 = vadd.f32 %v1800, %v1807
  %v1877 = vadd.f32 %v1801, %v1811
  %v1878 = vmul.f32 %v1814, 0.6666667
  %v1879 = vmul.f32 %v1815, 0.6666667
  %v1880 = vmul.f32 %v1816, 0.6666667
  %v1881 = vmul.f32 %v1817, 0.6666667
  %v1882 = vmul.f32 %v1818, 0.6666667
  %v1883 = vmul.f32 %v1819, 0.6666667
  %v1884 = vmul.f32 %v1820, 0.6666667
  %v1885 = vmul.f32 %v1821, 0.6666667
  %v1886 = vmul.f32 %v1822, 0.6666667
  %v1887 = vmul.f32 %v1823, 0.6666667
  %v1888 = vmul.f32 %v1824, 0.6666667
  %v1889 = vmul.f32 %v1825, 0.6666667
  %v1890 = vmul.f32 %v1826, 0.6666667
  %v1891 = vmul.f32 %v1827, 0.6666667
  %v1892 = vmul.f32 %v1828, 0.6666667
  %v1893 = vmul.f32 %v1829, 0.6666667
  %v1894 = vmul.f32 %v1830, 0.6666667
  %v1895 = vmul.f32 %v1831, 0.6666667
  %v1896 = vmul.f32 %v1832, 0.6666667
  %v1897 = vmul.f32 %v1833, 0.6666667
  %v1898 = vmul.f32 %v1834, 0.6666667
  %v1899 = vmul.f32 %v1835, 0.6666667
  %v1900 = vmul.f32 %v1836, 0.6666667
  %v1901 = vmul.f32 %v1837, 0.6666667
  %v1902 = vmul.f32 %v1838, 0.6666667
  %v1903 = vmul.f32 %v1839, 0.6666667
  %v1904 = vmul.f32 %v1840, 0.6666667
  %v1905 = vmul.f32 %v1841, 0.6666667
  %v1906 = vmul.f32 %v1842, 0.6666667
  %v1907 = vmul.f32 %v1843, 0.6666667
  %v1908 = vmul.f32 %v1844, 0.6666667
  %v1909 = vmul.f32 %v1845, 0.6666667
  %v1910 = vmul.f32 %v1846, 0.6666667
  %v1911 = vmul.f32 %v1847, 0.6666667
  %v1912 = vmul.f32 %v1848, 0.6666667
  %v1913 = vmul.f32 %v1849, 0.6666667
  %v1914 = vmul.f32 %v1850, 0.6666667
  %v1915 = vmul.f32 %v1851, 0.6666667
  %v1916 = vmul.f32 %v1852, 0.6666667
  %v1917 = vmul.f32 %v1853, 0.6666667
  %v1918 = vmul.f32 %v1854, 0.6666667
  %v1919 = vmul.f32 %v1855, 0.6666667
  %v1920 = vmul.f32 %v1856, 0.6666667
  %v1921 = vmul.f32 %v1857, 0.6666667
  %v1922 = vmul.f32 %v1858, 0.6666667
  %v1923 = vmul.f32 %v1859, 0.6666667
  %v1924 = vmul.f32 %v1860, 0.6666667
  %v1925 = vmul.f32 %v1861, 0.6666667
  %v1926 = vmul.f32 %v1862, 0.6666667
  %v1927 = vmul.f32 %v1863, 0.6666667
  %v1928 = vmul.f32 %v1864, 0.6666667
  %v1929 = vmul.f32 %v1865, 0.6666667
  %v1930 = vmul.f32 %v1866, 0.6666667
  %v1931 = vmul.f32 %v1867, 0.6666667
  %v1932 = vmul.f32 %v1868, 0.6666667
  %v1933 = vmul.f32 %v1869, 0.6666667
  %v1934 = vmul.f32 %v1870, 0.6666667
  %v1935 = vmul.f32 %v1871, 0.6666667
  %v1936 = vmul.f32 %v1872, 0.6666667
  %v1937 = vmul.f32 %v1873, 0.6666667
  %v1938 = vmul.f32 %v1874, 0.6666667
  %v1939 = vmul.f32 %v1875, 0.6666667
  %v1940 = vmul.f32 %v1876, 0.6666667
  %v1941 = vmul.f32 %v1877, 0.6666667
  %v1942 = vtanh.pop %v1878
  %v1943 = vtanh.pop %v1879
  %v1944 = vtanh.pop %v1880
  %v1945 = vtanh.pop %v1881
  %v1946 = vtanh.pop %v1882
  %v1947 = vtanh.pop %v1883
  %v1948 = vtanh.pop %v1884
  %v1949 = vtanh.pop %v1885
  %v1950 = vtanh.pop %v1886
  %v1951 = vtanh.pop %v1887
  %v1952 = vtanh.pop %v1888
  %v1953 = vtanh.pop %v1889
  %v1954 = vtanh.pop %v1890
  %v1955 = vtanh.pop %v1891
  %v1956 = vtanh.pop %v1892
  %v1957 = vtanh.pop %v1893
  %v1958 = vtanh.pop %v1894
  %v1959 = vtanh.pop %v1895
  %v1960 = vtanh.pop %v1896
  %v1961 = vtanh.pop %v1897
  %v1962 = vtanh.pop %v1898
  %v1963 = vtanh.pop %v1899
  %v1964 = vtanh.pop %v1900
  %v1965 = vtanh.pop %v1901
  %v1966 = vtanh.pop %v1902
  %v1967 = vtanh.pop %v1903
  %v1968 = vtanh.pop %v1904
  %v1969 = vtanh.pop %v1905
  %v1970 = vtanh.pop %v1906
  %v1971 = vtanh.pop %v1907
  %v1972 = vtanh.pop %v1908
  %v1973 = vtanh.pop %v1909
  %v1974 = vtanh.pop %v1910
  %v1975 = vtanh.pop %v1911
  %v1976 = vtanh.pop %v1912
  %v1977 = vtanh.pop %v1913
  %v1978 = vtanh.pop %v1914
  %v1979 = vtanh.pop %v1915
  %v1980 = vtanh.pop %v1916
  %v1981 = vtanh.pop %v1917
  %v1982 = vtanh.pop %v1918
  %v1983 = vtanh.pop %v1919
  %v1984 = vtanh.pop %v1920
  %v1985 = vtanh.pop %v1921
  %v1986 = vtanh.pop %v1922
  %v1987 = vtanh.pop %v1923
  %v1988 = vtanh.pop %v1924
  %v1989 = vtanh.pop %v1925
  %v1990 = vtanh.pop %v1926
  %v1991 = vtanh.pop %v1927
  %v1992 = vtanh.pop %v1928
  %v1993 = vtanh.pop %v1929
  %v1994 = vtanh.pop %v1930
  %v1995 = vtanh.pop %v1931
  %v1996 = vtanh.pop %v1932
  %v1997 = vtanh.pop %v1933
  %v1998 = vtanh.pop %v1934
  %v1999 = vtanh.pop %v1935
  %v2000 = vtanh.pop %v1936
  %v2001 = vtanh.pop %v1937
  %v2002 = vtanh.pop %v1938
  %v2003 = vtanh.pop %v1939
  %v2004 = vtanh.pop %v1940
  %v2005 = vtanh.pop %v1941
  %v2006 = vmul.f32 %v1942, 1.7159
  %v2007 = vmul.f32 %v1943, 1.7159
  %v2008 = vmul.f32 %v1944, 1.7159
  %v2009 = vmul.f32 %v1945, 1.7159
  %v2010 = vmul.f32 %v1946, 1.7159
  %v2011 = vmul.f32 %v1947, 1.7159
  %v2012 = vmul.f32 %v1948, 1.7159
  %v2013 = vmul.f32 %v1949, 1.7159
  %v2014 = vmul.f32 %v1950, 1.7159
  %v2015 = vmul.f32 %v1951, 1.7159
  %v2016 = vmul.f32 %v1952, 1.7159
  %v2017 = vmul.f32 %v1953, 1.7159
  %v2018 = vmul.f32 %v1954, 1.7159
  %v2019 = vmul.f32 %v1955, 1.7159
  %v2020 = vmul.f32 %v1956, 1.7159
  %v2021 = vmul.f32 %v1957, 1.7159
  %v2022 = vmul.f32 %v1958, 1.7159
  %v2023 = vmul.f32 %v1959, 1.7159
  %v2024 = vmul.f32 %v1960, 1.7159
  %v2025 = vmul.f32 %v1961, 1.7159
  %v2026 = vmul.f32 %v1962, 1.7159
  %v2027 = vmul.f32 %v1963, 1.7159
  %v2028 = vmul.f32 %v1964, 1.7159
  %v2029 = vmul.f32 %v1965, 1.7159
  %v2030 = vmul.f32 %v1966, 1.7159
  %v2031 = vmul.f32 %v1967, 1.7159
  %v2032 = vmul.f32 %v1968, 1.7159
  %v2033 = vmul.f32 %v1969, 1.7159
  %v2034 = vmul.f32 %v1970, 1.7159
  %v2035 = vmul.f32 %v1971, 1.7159
  %v2036 = vmul.f32 %v1972, 1.7159
  %v2037 = vmul.f32 %v1973, 1.7159
  %v2038 = vmul.f32 %v1974, 1.7159
  %v2039 = vmul.f32 %v1975, 1.7159
  %v2040 = vmul.f32 %v1976, 1.7159
  %v2041 = vmul.f32 %v1977, 1.7159
  %v2042 = vmul.f32 %v1978, 1.7159
  %v2043 = vmul.f32 %v1979, 1.7159
  %v2044 = vmul.f32 %v1980, 1.7159
  %v2045 = vmul.f32 %v1981, 1.7159
  %v2046 = vmul.f32 %v1982, 1.7159
  %v2047 = vmul.f32 %v1983, 1.7159
  %v2048 = vmul.f32 %v1984, 1.7159
  %v2049 = vmul.f32 %v1985, 1.7159
  %v2050 = vmul.f32 %v1986, 1.7159
  %v2051 = vmul.f32 %v1987, 1.7159
  %v2052 = vmul.f32 %v1988, 1.7159
  %v2053 = vmul.f32 %v1989, 1.7159
  %v2054 = vmul.f32 %v1990, 1.7159
  %v2055 = vmul.f32 %v1991, 1.7159
  %v2056 = vmul.f32 %v1992, 1.7159
  %v2057 = vmul.f32 %v1993, 1.7159
  %v2058 = vmul.f32 %v1994, 1.7159
  %v2059 = vmul.f32 %v1995, 1.7159
  %v2060 = vmul.f32 %v1996, 1.7159
  %v2061 = vmul.f32 %v1997, 1.7159
  %v2062 = vmul.f32 %v1998, 1.7159
  %v2063 = vmul.f32 %v1999, 1.7159
  %v2064 = vmul.f32 %v2000, 1.7159
  %v2065 = vmul.f32 %v2001, 1.7159
  %v2066 = vmul.f32 %v2002, 1.7159
  %v2067 = vmul.f32 %v2003, 1.7159
  %v2068 = vmul.f32 %v2004, 1.7159
  %v2069 = vmul.f32 %v2005, 1.7159
  %v2070 = vmax.f32 %v2006, %v2007
  %v2071 = vmax.f32 %v2008, %v2009
  %v2072 = vmax.f32 %v2010, %v2011
  %v2073 = vmax.f32 %v2012, %v2013
  %v2074 = vmax.f32 %v2014, %v2015
  %v2075 = vmax.f32 %v2016, %v2017
  %v2076 = vmax.f32 %v2018, %v2019
  %v2077 = vmax.f32 %v2020, %v2021
  %v2078 = vmax.f32 %v2022, %v2023
  %v2079 = vmax.f32 %v2024, %v2025
  %v2080 = vmax.f32 %v2026, %v2027
  %v2081 = vmax.f32 %v2028, %v2029
  %v2082 = vmax.f32 %v2030, %v2031
  %v2083 = vmax.f32 %v2032, %v2033
  %v2084 = vmax.f32 %v2034, %v2035
  %v2085 = vmax.f32 %v2036, %v2037
  %v2086 = vmax.f32 %v2038, %v2039
  %v2087 = vmax.f32 %v2040, %v2041
  %v2088 = vmax.f32 %v2042, %v2043
  %v2089 = vmax.f32 %v2044, %v2045
  %v2090 = vmax.f32 %v2046, %v2047
  %v2091 = vmax.f32 %v2048, %v2049
  %v2092 = vmax.f32 %v2050, %v2051
  %v2093 = vmax.f32 %v2052, %v2053
  %v2094 = vmax.f32 %v2054, %v2055
  %v2095 = vmax.f32 %v2056, %v2057
  %v2096 = vmax.f32 %v2058, %v2059
  %v2097 = vmax.f32 %v2060, %v2061
  %v2098 = vmax.f32 %v2062, %v2063
  %v2099 = vmax.f32 %v2064, %v2065
  %v2100 = vmax.f32 %v2066, %v2067
  %v2101 = vmax.f32 %v2068, %v2069
  %2102 = vst [vmem:[#allocation2] sm:$0xff] %v2070
  %2103 = vst [vmem:[#allocation2 + $0x8] sm:$0xff] %v2071
  %2104 = vst [vmem:[#allocation2 + $0x10] sm:$0xff] %v2072
  %2105 = vst [vmem:[#allocation2 + $0x18] sm:$0xff] %v2073
  %2106 = vst [vmem:[#allocation2 + $0x20] sm:$0xff] %v2074
  %2107 = vst [vmem:[#allocation2 + $0x28] sm:$0xff] %v2075
  %2108 = vst [vmem:[#allocation2 + $0x30] sm:$0xff] %v2076
  %2109 = vst [vmem:[#allocation2 + $0x38] sm:$0xff] %v2077
  %2110 = vst [vmem:[#allocation2 + $0x40] sm:$0xff] %v2078
  %2111 = vst [vmem:[#allocation2 + $0x48] sm:$0xff] %v2079
  %2112 = vst [vmem:[#allocation2 + $0x50] sm:$0xff] %v2080
  %2113 = vst [vmem:[#allocation2 + $0x58] sm:$0xff] %v2081
  %2114 = vst [vmem:[#allocation2 + $0x60] sm:$0xff] %v2082
  %2115 = vst [vmem:[#allocation2 + $0x68] sm:$0xff] %v2083
  %2116 = vst [vmem:[#allocation2 + $0x70] sm:$0xff] %v2084
  %2117 = vst [vmem:[#allocation2 + $0x78] sm:$0xff] %v2085
  %2118 = vst [vmem:[#allocation2 + $0x80] sm:$0xff] %v2086
  %2119 = vst [vmem:[#allocation2 + $0x88] sm:$0xff] %v2087
  %2120 = vst [vmem:[#allocation2 + $0x90] sm:$0xff] %v2088
  %2121 = vst [vmem:[#allocation2 + $0x98] sm:$0xff] %v2089
  %2122 = vst [vmem:[#allocation2 + $0xa0] sm:$0xff] %v2090
  %2123 = vst [vmem:[#allocation2 + $0xa8] sm:$0xff] %v2091
  %2124 = vst [vmem:[#allocation2 + $0xb0] sm:$0xff] %v2092
  %2125 = vst [vmem:[#allocation2 + $0xb8] sm:$0xff] %v2093
  %2126 = vst [vmem:[#allocation2 + $0xc0] sm:$0xff] %v2094
  %2127 = vst [vmem:[#allocation2 + $0xc8] sm:$0xff] %v2095
  %2128 = vst [vmem:[#allocation2 + $0xd0] sm:$0xff] %v2096
  %2129 = vst [vmem:[#allocation2 + $0xd8] sm:$0xff] %v2097
  %2130 = vst [vmem:[#allocation2 + $0xe0] sm:$0xff] %v2098
  %2131 = vst [vmem:[#allocation2 + $0xe8] sm:$0xff] %v2099
  %2132 = vst [vmem:[#allocation2 + $0xf0] sm:$0xff] %v2100
  %2133 = vst [vmem:[#allocation2 + $0xf8] sm:$0xf] %v2101
  %v2134 = vld [vmem:[#allocation2] ss:$2 sm:$0xff]
  %s2135 = scalar_lea.vmem [#allocation2], 16
  %v2136 = vld [vmem:[%s2135] ss:$2 sm:$0xff]
  %s2137 = scalar_lea.vmem [#allocation2], 32
  %v2138 = vld [vmem:[%s2137] ss:$2 sm:$0xff]
  %s2139 = scalar_lea.vmem [#allocation2], 48
  %v2140 = vld [vmem:[%s2139] ss:$2 sm:$0xff]
  %s2141 = scalar_lea.vmem [#allocation2], 64
  %v2142 = vld [vmem:[%s2141] ss:$2 sm:$0xff]
  %s2143 = scalar_lea.vmem [#allocation2], 80
  %v2144 = vld [vmem:[%s2143] ss:$2 sm:$0xff]
  %s2145 = scalar_lea.vmem [#allocation2], 96
  %v2146 = vld [vmem:[%s2145] ss:$2 sm:$0xff]
  %s2147 = scalar_lea.vmem [#allocation2], 112
  %v2148 = vld [vmem:[%s2147] ss:$2 sm:$0xff]
  %s2149 = scalar_lea.vmem [#allocation2], 128
  %v2150 = vld [vmem:[%s2149] ss:$2 sm:$0xff]
  %s2151 = scalar_lea.vmem [#allocation2], 144
  %v2152 = vld [vmem:[%s2151] ss:$2 sm:$0xff]
  %s2153 = scalar_lea.vmem [#allocation2], 160
  %v2154 = vld [vmem:[%s2153] ss:$2 sm:$0xff]
  %s2155 = scalar_lea.vmem [#allocation2], 176
  %v2156 = vld [vmem:[%s2155] ss:$2 sm:$0xff]
  %s2157 = scalar_lea.vmem [#allocation2], 192
  %v2158 = vld [vmem:[%s2157] ss:$2 sm:$0xff]
  %s2159 = scalar_lea.vmem [#allocation2], 208
  %v2160 = vld [vmem:[%s2159] ss:$2 sm:$0xff]
  %s2161 = scalar_lea.vmem [#allocation2], 224
  %v2162 = vld [vmem:[%s2161] ss:$2 sm:$0xff]
  %s2163 = scalar_lea.vmem [#allocation2], 240
  %v2164 = vld [vmem:[%s2163] ss:$2 sm:$0xff]
  %s2165 = scalar_lea.vmem [#allocation2], 1
  %v2166 = vld [vmem:[%s2165] ss:$2 sm:$0xff]
  %s2167 = scalar_lea.vmem [#allocation2], 17
  %v2168 = vld [vmem:[%s2167] ss:$2 sm:$0xff]
  %s2169 = scalar_lea.vmem [#allocation2], 33
  %v2170 = vld [vmem:[%s2169] ss:$2 sm:$0xff]
  %s2171 = scalar_lea.vmem [#allocation2], 49
  %v2172 = vld [vmem:[%s2171] ss:$2 sm:$0xff]
  %s2173 = scalar_lea.vmem [#allocation2], 65
  %v2174 = vld [vmem:[%s2173] ss:$2 sm:$0xff]
  %s2175 = scalar_lea.vmem [#allocation2], 81
  %v2176 = vld [vmem:[%s2175] ss:$2 sm:$0xff]
  %s2177 = scalar_lea.vmem [#allocation2], 97
  %v2178 = vld [vmem:[%s2177] ss:$2 sm:$0xff]
  %s2179 = scalar_lea.vmem [#allocation2], 113
  %v2180 = vld [vmem:[%s2179] ss:$2 sm:$0xff]
  %s2181 = scalar_lea.vmem [#allocation2], 129
  %v2182 = vld [vmem:[%s2181] ss:$2 sm:$0xff]
  %s2183 = scalar_lea.vmem [#allocation2], 145
  %v2184 = vld [vmem:[%s2183] ss:$2 sm:$0xff]
  %s2185 = scalar_lea.vmem [#allocation2], 161
  %v2186 = vld [vmem:[%s2185] ss:$2 sm:$0xff]
  %s2187 = scalar_lea.vmem [#allocation2], 177
  %v2188 = vld [vmem:[%s2187] ss:$2 sm:$0xff]
  %s2189 = scalar_lea.vmem [#allocation2], 193
  %v2190 = vld [vmem:[%s2189] ss:$2 sm:$0xff]
  %s2191 = scalar_lea.vmem [#allocation2], 209
  %v2192 = vld [vmem:[%s2191] ss:$2 sm:$0xff]
  %s2193 = scalar_lea.vmem [#allocation2], 225
  %v2194 = vld [vmem:[%s2193] ss:$2 sm:$0xff]
  %s2195 = scalar_lea.vmem [#allocation2], 241
  %v2196 = vld [vmem:[%s2195] ss:$2 sm:$0xff]
  %v2197 = vmax.f32 %v2134, %v2166
  %v2198 = vmax.f32 %v2136, %v2168
  %v2199 = vmax.f32 %v2138, %v2170
  %v2200 = vmax.f32 %v2140, %v2172
  %v2201 = vmax.f32 %v2142, %v2174
  %v2202 = vmax.f32 %v2144, %v2176
  %v2203 = vmax.f32 %v2146, %v2178
  %v2204 = vmax.f32 %v2148, %v2180
  %v2205 = vmax.f32 %v2150, %v2182
  %v2206 = vmax.f32 %v2152, %v2184
  %v2207 = vmax.f32 %v2154, %v2186
  %v2208 = vmax.f32 %v2156, %v2188
  %v2209 = vmax.f32 %v2158, %v2190
  %v2210 = vmax.f32 %v2160, %v2192
  %v2211 = vmax.f32 %v2162, %v2194
  %v2212 = vmax.f32 %v2164, %v2196
  %2213 = vst [vmem:[#allocation3] sm:$0xff] %v2197
  %2214 = vst [vmem:[#allocation3 + $0x8] sm:$0xff] %v2198
  %2215 = vst [vmem:[#allocation3 + $0x10] sm:$0xff] %v2199
  %2216 = vst [vmem:[#allocation3 + $0x18] sm:$0xff] %v2200
  %2217 = vst [vmem:[#allocation3 + $0x20] sm:$0xff] %v2201
  %2218 = vst [vmem:[#allocation3 + $0x28] sm:$0xff] %v2202
  %2219 = vst [vmem:[#allocation3 + $0x30] sm:$0xff] %v2203
  %2220 = vst [vmem:[#allocation3 + $0x38] sm:$0xff] %v2204
  %2221 = vst [vmem:[#allocation3 + $0x40] sm:$0xff] %v2205
  %2222 = vst [vmem:[#allocation3 + $0x48] sm:$0xff] %v2206
  %2223 = vst [vmem:[#allocation3 + $0x50] sm:$0xff] %v2207
  %2224 = vst [vmem:[#allocation3 + $0x58] sm:$0xff] %v2208
  %2225 = vst [vmem:[#allocation3 + $0x60] sm:$0xff] %v2209
  %2226 = vst [vmem:[#allocation3 + $0x68] sm:$0xff] %v2210
  %2227 = vst [vmem:[#allocation3 + $0x70] sm:$0xff] %v2211
  %2228 = vst [vmem:[#allocation3 + $0x78] sm:$0xff] %v2212
  %v2229 = vld [vmem:[#allocation3] sm:$0xff]
  %v2230 = vld [vmem:[#allocation3 + $0x8] sm:$0xff]
  %v2231 = vld [vmem:[#allocation3 + $0x10] sm:$0xff]
  %v2232 = vld [vmem:[#allocation3 + $0x18] sm:$0xff]
  %v2233 = vld [vmem:[#allocation3 + $0x20] sm:$0xff]
  %v2234 = vld [vmem:[#allocation3 + $0x28] sm:$0xff]
  %v2235 = vld [vmem:[#allocation3 + $0x30] sm:$0xff]
  %v2236 = vld [vmem:[#allocation3 + $0x38] sm:$0xff]
  %v2237 = vld [vmem:[#allocation3 + $0x40] sm:$0xff]
  %v2238 = vld [vmem:[#allocation3 + $0x48] sm:$0xff]
  %v2239 = vld [vmem:[#allocation3 + $0x50] sm:$0xff]
  %v2240 = vld [vmem:[#allocation3 + $0x58] sm:$0xff]
  %v2241 = vld [vmem:[#allocation3 + $0x60] sm:$0xff]
  %v2242 = vld [vmem:[#allocation3 + $0x68] sm:$0xff]
  %v2243 = vld [vmem:[#allocation3 + $0x70] sm:$0xff]
  %v2244 = vld [vmem:[#allocation3 + $0x78] sm:$0xf]
  %v2245 = vpack.c.bf16 %v2230, %v2229
  %v2246 = vpack.c.bf16 %v2232, %v2231
  %v2247 = vpack.c.bf16 %v2234, %v2233
  %v2248 = vpack.c.bf16 %v2236, %v2235
  %v2249 = vpack.c.bf16 %v2238, %v2237
  %v2250 = vpack.c.bf16 %v2240, %v2239
  %v2251 = vpack.c.bf16 %v2242, %v2241
  %v2252 = vpack.c.bf16 %v2244, %v2243
  %v2253 = vld [vmem:[%s3] sm:$0xff]
  %v2254 = vld [vmem:[%s3 + $0x8] sm:$0xff]
  %v2255 = vld [vmem:[%s3 + $0x10] sm:$0xff]
  %v2256 = vld [vmem:[%s3 + $0x18] sm:$0xff]
  %v2257 = vld [vmem:[%s3 + $0x20] sm:$0xff]
  %v2258 = vld [vmem:[%s3 + $0x28] sm:$0xff]
  %v2259 = vld [vmem:[%s3 + $0x30] sm:$0xff]
  %v2260 = vld [vmem:[%s3 + $0x38] sm:$0xff]
  %v2261 = vld [vmem:[%s3 + $0x40] sm:$0xff]
  %v2262 = vld [vmem:[%s3 + $0x48] sm:$0xff]
  %v2263 = vld [vmem:[%s3 + $0x50] sm:$0xff]
  %v2264 = vld [vmem:[%s3 + $0x58] sm:$0xff]
  %v2265 = vld [vmem:[%s3 + $0x60] sm:$0xff]
  %v2266 = vld [vmem:[%s3 + $0x68] sm:$0xff]
  %v2267 = vld [vmem:[%s3 + $0x70] sm:$0xff]
  %v2268 = vld [vmem:[%s3 + $0x78] sm:$0xff]
  %v2269 = vld [vmem:[#allocation3 + $0x1] sm:$0xff]
  %v2270 = vld [vmem:[#allocation3 + $0x9] sm:$0xff]
  %v2271 = vld [vmem:[#allocation3 + $0x11] sm:$0xff]
  %v2272 = vld [vmem:[#allocation3 + $0x19] sm:$0xff]
  %v2273 = vld [vmem:[#allocation3 + $0x21] sm:$0xff]
  %v2274 = vld [vmem:[#allocation3 + $0x29] sm:$0xff]
  %v2275 = vld [vmem:[#allocation3 + $0x31] sm:$0xff]
  %v2276 = vld [vmem:[#allocation3 + $0x39] sm:$0xff]
  %v2277 = vld [vmem:[#allocation3 + $0x41] sm:$0xff]
  %v2278 = vld [vmem:[#allocation3 + $0x49] sm:$0xff]
  %v2279 = vld [vmem:[#allocation3 + $0x51] sm:$0xff]
  %v2280 = vld [vmem:[#allocation3 + $0x59] sm:$0xff]
  %v2281 = vld [vmem:[#allocation3 + $0x61] sm:$0xff]
  %v2282 = vld [vmem:[#allocation3 + $0x69] sm:$0xff]
  %v2283 = vld [vmem:[#allocation3 + $0x71] sm:$0xff]
  %v2284 = vld [vmem:[#allocation3 + $0x79] sm:$0xf]
  %v2285 = vpack.c.bf16 %v2270, %v2269
  %v2286 = vpack.c.bf16 %v2272, %v2271
  %v2287 = vpack.c.bf16 %v2274, %v2273
  %v2288 = vpack.c.bf16 %v2276, %v2275
  %v2289 = vpack.c.bf16 %v2278, %v2277
  %v2290 = vpack.c.bf16 %v2280, %v2279
  %v2291 = vpack.c.bf16 %v2282, %v2281
  %v2292 = vpack.c.bf16 %v2284, %v2283
  %s2293 = scalar_lea.vmem %s3, 128
  %v2294 = vld [vmem:[%s2293] sm:$0xff]
  %v2295 = vld [vmem:[%s2293 + $0x8] sm:$0xff]
  %v2296 = vld [vmem:[%s2293 + $0x10] sm:$0xff]
  %v2297 = vld [vmem:[%s2293 + $0x18] sm:$0xff]
  %v2298 = vld [vmem:[%s2293 + $0x20] sm:$0xff]
  %v2299 = vld [vmem:[%s2293 + $0x28] sm:$0xff]
  %v2300 = vld [vmem:[%s2293 + $0x30] sm:$0xff]
  %v2301 = vld [vmem:[%s2293 + $0x38] sm:$0xff]
  %v2302 = vld [vmem:[%s2293 + $0x40] sm:$0xff]
  %v2303 = vld [vmem:[%s2293 + $0x48] sm:$0xff]
  %v2304 = vld [vmem:[%s2293 + $0x50] sm:$0xff]
  %v2305 = vld [vmem:[%s2293 + $0x58] sm:$0xff]
  %v2306 = vld [vmem:[%s2293 + $0x60] sm:$0xff]
  %v2307 = vld [vmem:[%s2293 + $0x68] sm:$0xff]
  %v2308 = vld [vmem:[%s2293 + $0x70] sm:$0xff]
  %v2309 = vld [vmem:[%s2293 + $0x78] sm:$0xff]
  %v2326 = vunpack.c.l.b16 %v2294
  %v2327 = vunpack.c.h.b16 %v2294
  %v2328 = vunpack.c.l.b16 %v2295
  %v2329 = vunpack.c.h.b16 %v2295
  %v2330 = vunpack.c.l.b16 %v2296
  %v2331 = vunpack.c.h.b16 %v2296
  %v2332 = vunpack.c.l.b16 %v2297
  %v2333 = vunpack.c.h.b16 %v2297
  %v2334 = vunpack.c.l.b16 %v2298
  %v2335 = vunpack.c.h.b16 %v2298
  %v2336 = vunpack.c.l.b16 %v2299
  %v2337 = vunpack.c.h.b16 %v2299
  %v2338 = vunpack.c.l.b16 %v2300
  %v2339 = vunpack.c.h.b16 %v2300
  %v2340 = vunpack.c.l.b16 %v2301
  %v2341 = vunpack.c.h.b16 %v2301
  %v2342 = vunpack.c.l.b16 %v2302
  %v2343 = vunpack.c.h.b16 %v2302
  %v2344 = vunpack.c.l.b16 %v2303
  %v2345 = vunpack.c.h.b16 %v2303
  %v2346 = vunpack.c.l.b16 %v2304
  %v2347 = vunpack.c.h.b16 %v2304
  %v2348 = vunpack.c.l.b16 %v2305
  %v2349 = vunpack.c.h.b16 %v2305
  %v2350 = vunpack.c.l.b16 %v2306
  %v2351 = vunpack.c.h.b16 %v2306
  %v2352 = vunpack.c.l.b16 %v2307
  %v2353 = vunpack.c.h.b16 %v2307
  %v2354 = vunpack.c.l.b16 %v2308
  %v2355 = vunpack.c.h.b16 %v2308
  %v2356 = vunpack.c.l.b16 %v2309
  %v2357 = vunpack.c.h.b16 %v2309
  %v2358 = vpack.c.b16 %v2328, %v2326
  %v2359 = vpack.c.b16 %v2329, %v2327
  %v2360 = vpack.c.b16 %v2332, %v2330
  %v2361 = vpack.c.b16 %v2333, %v2331
  %v2362 = vpack.c.b16 %v2336, %v2334
  %v2363 = vpack.c.b16 %v2337, %v2335
  %v2364 = vpack.c.b16 %v2340, %v2338
  %v2365 = vpack.c.b16 %v2341, %v2339
  %v2366 = vpack.c.b16 %v2344, %v2342
  %v2367 = vpack.c.b16 %v2345, %v2343
  %v2368 = vpack.c.b16 %v2348, %v2346
  %v2369 = vpack.c.b16 %v2349, %v2347
  %v2370 = vpack.c.b16 %v2352, %v2350
  %v2371 = vpack.c.b16 %v2353, %v2351
  %v2372 = vpack.c.b16 %v2356, %v2354
  %v2373 = vpack.c.b16 %v2357, %v2355
  %2390 = vmatprep.subr.bf16.mxu0 %v2359
  %2391 = vmatpush1.bf16.msra.mxu0 %v2358
  %2392 = vmatprep.subr.bf16.mxu0 %v2361
  %2393 = vmatpush1.bf16.msra.mxu0 %v2360
  %2394 = vmatprep.subr.bf16.mxu0 %v2363
  %2395 = vmatpush1.bf16.msra.mxu0 %v2362
  %2396 = vmatprep.subr.bf16.mxu0 %v2365
  %2397 = vmatpush1.bf16.msra.mxu0 %v2364
  %2398 = vmatprep.subr.bf16.mxu0 %v2367
  %2399 = vmatpush1.bf16.msra.mxu0 %v2366
  %2400 = vmatprep.subr.bf16.mxu0 %v2369
  %2401 = vmatpush1.bf16.msra.mxu0 %v2368
  %2402 = vmatprep.subr.bf16.mxu0 %v2371
  %2403 = vmatpush1.bf16.msra.mxu0 %v2370
  %2404 = vmatprep.subr.bf16.mxu0 %v2373
  %2405 = vmatpush1.bf16.msra.mxu0 %v2372
  %2406 = vmatprep.subr.bf16.mxu0 0
  %2407 = vmatpush1.bf16.msra.mxu0 0
  %2408 = vmatprep.subr.bf16.mxu0 0
  %2409 = vmatpush1.bf16.msra.mxu0 0
  %2410 = vmatprep.subr.bf16.mxu0 0
  %2411 = vmatpush1.bf16.msra.mxu0 0
  %2412 = vmatprep.subr.bf16.mxu0 0
  %2413 = vmatpush1.bf16.msra.mxu0 0
  %2414 = vmatprep.subr.bf16.mxu0 0
  %2415 = vmatpush1.bf16.msra.mxu0 0
  %2416 = vmatprep.subr.bf16.mxu0 0
  %2417 = vmatpush1.bf16.msra.mxu0 0
  %2418 = vmatprep.subr.bf16.mxu0 0
  %2419 = vmatpush1.bf16.msra.mxu0 0
  %2420 = vmatprep.subr.bf16.mxu0 0
  %2421 = vmatpush1.bf16.msra.mxu0 0
  %2422 = vmatprep.mubr.bf16.mxu0 0
  %2423 = vmatmul.mubr.bf16.gmra.mrb[0].mxu0 %v2285
  %v2424 = vpop.f32.mrb[0].mxu0
  %v2425 = vadd.f32 0.0, %v2424
  %v2426 = vpop.f32.mrb[0].mxu0
  %v2427 = vadd.f32 0.0, %v2426
  %v2428 = vpop.f32.mrb[0].mxu0
  %v2429 = vadd.f32 0.0, %v2428
  %v2430 = vpop.f32.mrb[0].mxu0
  %v2431 = vadd.f32 0.0, %v2430
  %2432 = vmatprep.mubr.bf16.mxu0 0
  %2433 = vmatmul.mubr.bf16.gmra.mrb[0].mxu0 %v2286
  %v2434 = vpop.f32.mrb[0].mxu0
  %v2435 = vadd.f32 0.0, %v2434
  %v2436 = vpop.f32.mrb[0].mxu0
  %v2437 = vadd.f32 0.0, %v2436
  %v2438 = vpop.f32.mrb[0].mxu0
  %v2439 = vadd.f32 0.0, %v2438
  %v2440 = vpop.f32.mrb[0].mxu0
  %v2441 = vadd.f32 0.0, %v2440
  %2442 = vmatprep.mubr.bf16.mxu0 0
  %2443 = vmatmul.mubr.bf16.gmra.mrb[0].mxu0 %v2287
  %v2444 = vpop.f32.mrb[0].mxu0
  %v2445 = vadd.f32 0.0, %v2444
  %v2446 = vpop.f32.mrb[0].mxu0
  %v2447 = vadd.f32 0.0, %v2446
  %v2448 = vpop.f32.mrb[0].mxu0
  %v2449 = vadd.f32 0.0, %v2448
  %v2450 = vpop.f32.mrb[0].mxu0
  %v2451 = vadd.f32 0.0, %v2450
  %2452 = vmatprep.mubr.bf16.mxu0 0
  %2453 = vmatmul.mubr.bf16.gmra.mrb[0].mxu0 %v2288
  %v2454 = vpop.f32.mrb[0].mxu0
  %v2455 = vadd.f32 0.0, %v2454
  %v2456 = vpop.f32.mrb[0].mxu0
  %v2457 = vadd.f32 0.0, %v2456
  %v2458 = vpop.f32.mrb[0].mxu0
  %v2459 = vadd.f32 0.0, %v2458
  %v2460 = vpop.f32.mrb[0].mxu0
  %v2461 = vadd.f32 0.0, %v2460
  %2462 = vmatprep.mubr.bf16.mxu0 0
  %2463 = vmatmul.mubr.bf16.gmra.mrb[0].mxu0 %v2289
  %v2464 = vpop.f32.mrb[0].mxu0
  %v2465 = vadd.f32 0.0, %v2464
  %v2466 = vpop.f32.mrb[0].mxu0
  %v2467 = vadd.f32 0.0, %v2466
  %v2468 = vpop.f32.mrb[0].mxu0
  %v2469 = vadd.f32 0.0, %v2468
  %v2470 = vpop.f32.mrb[0].mxu0
  %v2471 = vadd.f32 0.0, %v2470
  %2472 = vmatprep.mubr.bf16.mxu0 0
  %2473 = vmatmul.mubr.bf16.gmra.mrb[0].mxu0 %v2290
  %v2474 = vpop.f32.mrb[0].mxu0
  %v2475 = vadd.f32 0.0, %v2474
  %v2476 = vpop.f32.mrb[0].mxu0
  %v2477 = vadd.f32 0.0, %v2476
  %v2478 = vpop.f32.mrb[0].mxu0
  %v2479 = vadd.f32 0.0, %v2478
  %v2480 = vpop.f32.mrb[0].mxu0
  %v2481 = vadd.f32 0.0, %v2480
  %2482 = vmatprep.mubr.bf16.mxu0 0
  %2483 = vmatmul.mubr.bf16.gmra.mrb[0].mxu0 %v2291
  %v2484 = vpop.f32.mrb[0].mxu0
  %v2485 = vadd.f32 0.0, %v2484
  %v2486 = vpop.f32.mrb[0].mxu0
  %v2487 = vadd.f32 0.0, %v2486
  %v2488 = vpop.f32.mrb[0].mxu0
  %v2489 = vadd.f32 0.0, %v2488
  %v2490 = vpop.f32.mrb[0].mxu0
  %v2491 = vadd.f32 0.0, %v2490
  %2492 = vmatprep.mubr.bf16.mxu0 0
  %2493 = vmatmul.mubr.bf16.gmra.mrb[0].mxu0 %v2292
  %v2494 = vpop.f32.mrb[0].mxu0
  %v2495 = vadd.f32 0.0, %v2494
  %v2496 = vpop.f32.mrb[0].mxu0
  %v2497 = vadd.f32 0.0, %v2496
  %v2498 = vpop.f32.mrb[0].mxu0
  %v2499 = vadd.f32 0.0, %v2498
  %v2500 = vpop.f32.mrb[0].mxu0
  %v2501 = vadd.f32 0.0, %v2500
  %2502 = vdwg.mxu0
  %v2519 = vunpack.c.l.b16 %v2253
  %v2520 = vunpack.c.h.b16 %v2253
  %v2521 = vunpack.c.l.b16 %v2254
  %v2522 = vunpack.c.h.b16 %v2254
  %v2523 = vunpack.c.l.b16 %v2255
  %v2524 = vunpack.c.h.b16 %v2255
  %v2525 = vunpack.c.l.b16 %v2256
  %v2526 = vunpack.c.h.b16 %v2256
  %v2527 = vunpack.c.l.b16 %v2257
  %v2528 = vunpack.c.h.b16 %v2257
  %v2529 = vunpack.c.l.b16 %v2258
  %v2530 = vunpack.c.h.b16 %v2258
  %v2531 = vunpack.c.l.b16 %v2259
  %v2532 = vunpack.c.h.b16 %v2259
  %v2533 = vunpack.c.l.b16 %v2260
  %v2534 = vunpack.c.h.b16 %v2260
  %v2535 = vunpack.c.l.b16 %v2261
  %v2536 = vunpack.c.h.b16 %v2261
  %v2537 = vunpack.c.l.b16 %v2262
  %v2538 = vunpack.c.h.b16 %v2262
  %v2539 = vunpack.c.l.b16 %v2263
  %v2540 = vunpack.c.h.b16 %v2263
  %v2541 = vunpack.c.l.b16 %v2264
  %v2542 = vunpack.c.h.b16 %v2264
  %v2543 = vunpack.c.l.b16 %v2265
  %v2544 = vunpack.c.h.b16 %v2265
  %v2545 = vunpack.c.l.b16 %v2266
  %v2546 = vunpack.c.h.b16 %v2266
  %v2547 = vunpack.c.l.b16 %v2267
  %v2548 = vunpack.c.h.b16 %v2267
  %v2549 = vunpack.c.l.b16 %v2268
  %v2550 = vunpack.c.h.b16 %v2268
  %v2551 = vpack.c.b16 %v2521, %v2519
  %v2552 = vpack.c.b16 %v2522, %v2520
  %v2553 = vpack.c.b16 %v2525, %v2523
  %v2554 = vpack.c.b16 %v2526, %v2524
  %v2555 = vpack.c.b16 %v2529, %v2527
  %v2556 = vpack.c.b16 %v2530, %v2528
  %v2557 = vpack.c.b16 %v2533, %v2531
  %v2558 = vpack.c.b16 %v2534, %v2532
  %v2559 = vpack.c.b16 %v2537, %v2535
  %v2560 = vpack.c.b16 %v2538, %v2536
  %v2561 = vpack.c.b16 %v2541, %v2539
  %v2562 = vpack.c.b16 %v2542, %v2540
  %v2563 = vpack.c.b16 %v2545, %v2543
  %v2564 = vpack.c.b16 %v2546, %v2544
  %v2565 = vpack.c.b16 %v2549, %v2547
  %v2566 = vpack.c.b16 %v2550, %v2548
  %2583 = vmatprep.subr.bf16.mxu0 %v2552
  %2584 = vmatpush1.bf16.msra.mxu0 %v2551
  %2585 = vmatprep.subr.bf16.mxu0 %v2554
  %2586 = vmatpush1.bf16.msra.mxu0 %v2553
  %2587 = vmatprep.subr.bf16.mxu0 %v2556
  %2588 = vmatpush1.bf16.msra.mxu0 %v2555
  %2589 = vmatprep.subr.bf16.mxu0 %v2558
  %2590 = vmatpush1.bf16.msra.mxu0 %v2557
  %2591 = vmatprep.subr.bf16.mxu0 %v2560
  %2592 = vmatpush1.bf16.msra.mxu0 %v2559
  %2593 = vmatprep.subr.bf16.mxu0 %v2562
  %2594 = vmatpush1.bf16.msra.mxu0 %v2561
  %2595 = vmatprep.subr.bf16.mxu0 %v2564
  %2596 = vmatpush1.bf16.msra.mxu0 %v2563
  %2597 = vmatprep.subr.bf16.mxu0 %v2566
  %2598 = vmatpush1.bf16.msra.mxu0 %v2565
  %2599 = vmatprep.subr.bf16.mxu0 0
  %2600 = vmatpush1.bf16.msra.mxu0 0
  %2601 = vmatprep.subr.bf16.mxu0 0
  %2602 = vmatpush1.bf16.msra.mxu0 0
  %2603 = vmatprep.subr.bf16.mxu0 0
  %2604 = vmatpush1.bf16.msra.mxu0 0
  %2605 = vmatprep.subr.bf16.mxu0 0
  %2606 = vmatpush1.bf16.msra.mxu0 0
  %2607 = vmatprep.subr.bf16.mxu0 0
  %2608 = vmatpush1.bf16.msra.mxu0 0
  %2609 = vmatprep.subr.bf16.mxu0 0
  %2610 = vmatpush1.bf16.msra.mxu0 0
  %2611 = vmatprep.subr.bf16.mxu0 0
  %2612 = vmatpush1.bf16.msra.mxu0 0
  %2613 = vmatprep.subr.bf16.mxu0 0
  %2614 = vmatpush1.bf16.msra.mxu0 0
  %2615 = vmatprep.mubr.bf16.mxu0 0
  %2616 = vmatmul.mubr.bf16.gmra.mrb[0].mxu0 %v2245
  %v2617 = vpop.f32.mrb[0].mxu0
  %v2618 = vadd.f32 %v2425, %v2617
  %v2619 = vpop.f32.mrb[0].mxu0
  %v2620 = vadd.f32 %v2427, %v2619
  %v2621 = vpop.f32.mrb[0].mxu0
  %v2622 = vadd.f32 %v2429, %v2621
  %v2623 = vpop.f32.mrb[0].mxu0
  %v2624 = vadd.f32 %v2431, %v2623
  %2625 = vmatprep.mubr.bf16.mxu0 0
  %2626 = vmatmul.mubr.bf16.gmra.mrb[0].mxu0 %v2246
  %v2627 = vpop.f32.mrb[0].mxu0
  %v2628 = vadd.f32 %v2435, %v2627
  %v2629 = vpop.f32.mrb[0].mxu0
  %v2630 = vadd.f32 %v2437, %v2629
  %v2631 = vpop.f32.mrb[0].mxu0
  %v2632 = vadd.f32 %v2439, %v2631
  %v2633 = vpop.f32.mrb[0].mxu0
  %v2634 = vadd.f32 %v2441, %v2633
  %2635 = vmatprep.mubr.bf16.mxu0 0
  %2636 = vmatmul.mubr.bf16.gmra.mrb[0].mxu0 %v2247
  %v2637 = vpop.f32.mrb[0].mxu0
  %v2638 = vadd.f32 %v2445, %v2637
  %v2639 = vpop.f32.mrb[0].mxu0
  %v2640 = vadd.f32 %v2447, %v2639
  %v2641 = vpop.f32.mrb[0].mxu0
  %v2642 = vadd.f32 %v2449, %v2641
  %v2643 = vpop.f32.mrb[0].mxu0
  %v2644 = vadd.f32 %v2451, %v2643
  %2645 = vmatprep.mubr.bf16.mxu0 0
  %2646 = vmatmul.mubr.bf16.gmra.mrb[0].mxu0 %v2248
  %v2647 = vpop.f32.mrb[0].mxu0
  %v2648 = vadd.f32 %v2455, %v2647
  %v2649 = vpop.f32.mrb[0].mxu0
  %v2650 = vadd.f32 %v2457, %v2649
  %v2651 = vpop.f32.mrb[0].mxu0
  %v2652 = vadd.f32 %v2459, %v2651
  %v2653 = vpop.f32.mrb[0].mxu0
  %v2654 = vadd.f32 %v2461, %v2653
  %2655 = vmatprep.mubr.bf16.mxu0 0
  %2656 = vmatmul.mubr.bf16.gmra.mrb[0].mxu0 %v2249
  %v2657 = vpop.f32.mrb[0].mxu0
  %v2658 = vadd.f32 %v2465, %v2657
  %v2659 = vpop.f32.mrb[0].mxu0
  %v2660 = vadd.f32 %v2467, %v2659
  %v2661 = vpop.f32.mrb[0].mxu0
  %v2662 = vadd.f32 %v2469, %v2661
  %v2663 = vpop.f32.mrb[0].mxu0
  %v2664 = vadd.f32 %v2471, %v2663
  %2665 = vmatprep.mubr.bf16.mxu0 0
  %2666 = vmatmul.mubr.bf16.gmra.mrb[0].mxu0 %v2250
  %v2667 = vpop.f32.mrb[0].mxu0
  %v2668 = vadd.f32 %v2475, %v2667
  %v2669 = vpop.f32.mrb[0].mxu0
  %v2670 = vadd.f32 %v2477, %v2669
  %v2671 = vpop.f32.mrb[0].mxu0
  %v2672 = vadd.f32 %v2479, %v2671
  %v2673 = vpop.f32.mrb[0].mxu0
  %v2674 = vadd.f32 %v2481, %v2673
  %2675 = vmatprep.mubr.bf16.mxu0 0
  %2676 = vmatmul.mubr.bf16.gmra.mrb[0].mxu0 %v2251
  %v2677 = vpop.f32.mrb[0].mxu0
  %v2678 = vadd.f32 %v2485, %v2677
  %v2679 = vpop.f32.mrb[0].mxu0
  %v2680 = vadd.f32 %v2487, %v2679
  %v2681 = vpop.f32.mrb[0].mxu0
  %v2682 = vadd.f32 %v2489, %v2681
  %v2683 = vpop.f32.mrb[0].mxu0
  %v2684 = vadd.f32 %v2491, %v2683
  %2685 = vmatprep.mubr.bf16.mxu0 0
  %2686 = vmatmul.mubr.bf16.gmra.mrb[0].mxu0 %v2252
  %v2687 = vpop.f32.mrb[0].mxu0
  %v2688 = vadd.f32 %v2495, %v2687
  %v2689 = vpop.f32.mrb[0].mxu0
  %v2690 = vadd.f32 %v2497, %v2689
  %v2691 = vpop.f32.mrb[0].mxu0
  %v2692 = vadd.f32 %v2499, %v2691
  %v2693 = vpop.f32.mrb[0].mxu0
  %v2694 = vadd.f32 %v2501, %v2693
  %2695 = vdwg.mxu0
  %v2696 = vld [vmem:[#allocation3 + $0x2] sm:$0xff]
  %v2697 = vld [vmem:[#allocation3 + $0xa] sm:$0xff]
  %v2698 = vld [vmem:[#allocation3 + $0x12] sm:$0xff]
  %v2699 = vld [vmem:[#allocation3 + $0x1a] sm:$0xff]
  %v2700 = vld [vmem:[#allocation3 + $0x22] sm:$0xff]
  %v2701 = vld [vmem:[#allocation3 + $0x2a] sm:$0xff]
  %v2702 = vld [vmem:[#allocation3 + $0x32] sm:$0xff]
  %v2703 = vld [vmem:[#allocation3 + $0x3a] sm:$0xff]
  %v2704 = vld [vmem:[#allocation3 + $0x42] sm:$0xff]
  %v2705 = vld [vmem:[#allocation3 + $0x4a] sm:$0xff]
  %v2706 = vld [vmem:[#allocation3 + $0x52] sm:$0xff]
  %v2707 = vld [vmem:[#allocation3 + $0x5a] sm:$0xff]
  %v2708 = vld [vmem:[#allocation3 + $0x62] sm:$0xff]
  %v2709 = vld [vmem:[#allocation3 + $0x6a] sm:$0xff]
  %v2710 = vld [vmem:[#allocation3 + $0x72] sm:$0xff]
  %v2711 = vld [vmem:[#allocation3 + $0x7a] sm:$0xf]
  %v2712 = vpack.c.bf16 %v2697, %v2696
  %v2713 = vpack.c.bf16 %v2699, %v2698
  %v2714 = vpack.c.bf16 %v2701, %v2700
  %v2715 = vpack.c.bf16 %v2703, %v2702
  %v2716 = vpack.c.bf16 %v2705, %v2704
  %v2717 = vpack.c.bf16 %v2707, %v2706
  %v2718 = vpack.c.bf16 %v2709, %v2708
  %v2719 = vpack.c.bf16 %v2711, %v2710
  %s2720 = scalar_lea.vmem %s3, 256
  %v2721 = vld [vmem:[%s2720] sm:$0xff]
  %v2722 = vld [vmem:[%s2720 + $0x8] sm:$0xff]
  %v2723 = vld [vmem:[%s2720 + $0x10] sm:$0xff]
  %v2724 = vld [vmem:[%s2720 + $0x18] sm:$0xff]
  %v2725 = vld [vmem:[%s2720 + $0x20] sm:$0xff]
  %v2726 = vld [vmem:[%s2720 + $0x28] sm:$0xff]
  %v2727 = vld [vmem:[%s2720 + $0x30] sm:$0xff]
  %v2728 = vld [vmem:[%s2720 + $0x38] sm:$0xff]
  %v2729 = vld [vmem:[%s2720 + $0x40] sm:$0xff]
  %v2730 = vld [vmem:[%s2720 + $0x48] sm:$0xff]
  %v2731 = vld [vmem:[%s2720 + $0x50] sm:$0xff]
  %v2732 = vld [vmem:[%s2720 + $0x58] sm:$0xff]
  %v2733 = vld [vmem:[%s2720 + $0x60] sm:$0xff]
  %v2734 = vld [vmem:[%s2720 + $0x68] sm:$0xff]
  %v2735 = vld [vmem:[%s2720 + $0x70] sm:$0xff]
  %v2736 = vld [vmem:[%s2720 + $0x78] sm:$0xff]
  %v2753 = vunpack.c.l.b16 %v2721
  %v2754 = vunpack.c.h.b16 %v2721
  %v2755 = vunpack.c.l.b16 %v2722
  %v2756 = vunpack.c.h.b16 %v2722
  %v2757 = vunpack.c.l.b16 %v2723
  %v2758 = vunpack.c.h.b16 %v2723
  %v2759 = vunpack.c.l.b16 %v2724
  %v2760 = vunpack.c.h.b16 %v2724
  %v2761 = vunpack.c.l.b16 %v2725
  %v2762 = vunpack.c.h.b16 %v2725
  %v2763 = vunpack.c.l.b16 %v2726
  %v2764 = vunpack.c.h.b16 %v2726
  %v2765 = vunpack.c.l.b16 %v2727
  %v2766 = vunpack.c.h.b16 %v2727
  %v2767 = vunpack.c.l.b16 %v2728
  %v2768 = vunpack.c.h.b16 %v2728
  %v2769 = vunpack.c.l.b16 %v2729
  %v2770 = vunpack.c.h.b16 %v2729
  %v2771 = vunpack.c.l.b16 %v2730
  %v2772 = vunpack.c.h.b16 %v2730
  %v2773 = vunpack.c.l.b16 %v2731
  %v2774 = vunpack.c.h.b16 %v2731
  %v2775 = vunpack.c.l.b16 %v2732
  %v2776 = vunpack.c.h.b16 %v2732
  %v2777 = vunpack.c.l.b16 %v2733
  %v2778 = vunpack.c.h.b16 %v2733
  %v2779 = vunpack.c.l.b16 %v2734
  %v2780 = vunpack.c.h.b16 %v2734
  %v2781 = vunpack.c.l.b16 %v2735
  %v2782 = vunpack.c.h.b16 %v2735
  %v2783 = vunpack.c.l.b16 %v2736
  %v2784 = vunpack.c.h.b16 %v2736
  %v2785 = vpack.c.b16 %v2755, %v2753
  %v2786 = vpack.c.b16 %v2756, %v2754
  %v2787 = vpack.c.b16 %v2759, %v2757
  %v2788 = vpack.c.b16 %v2760, %v2758
  %v2789 = vpack.c.b16 %v2763, %v2761
  %v2790 = vpack.c.b16 %v2764, %v2762
  %v2791 = vpack.c.b16 %v2767, %v2765
  %v2792 = vpack.c.b16 %v2768, %v2766
  %v2793 = vpack.c.b16 %v2771, %v2769
  %v2794 = vpack.c.b16 %v2772, %v2770
  %v2795 = vpack.c.b16 %v2775, %v2773
  %v2796 = vpack.c.b16 %v2776, %v2774
  %v2797 = vpack.c.b16 %v2779, %v2777
  %v2798 = vpack.c.b16 %v2780, %v2778
  %v2799 = vpack.c.b16 %v2783, %v2781
  %v2800 = vpack.c.b16 %v2784, %v2782
  %2817 = vmatprep.subr.bf16.mxu0 %v2786
  %2818 = vmatpush1.bf16.msra.mxu0 %v2785
  %2819 = vmatprep.subr.bf16.mxu0 %v2788
  %2820 = vmatpush1.bf16.msra.mxu0 %v2787
  %2821 = vmatprep.subr.bf16.mxu0 %v2790
  %2822 = vmatpush1.bf16.msra.mxu0 %v2789
  %2823 = vmatprep.subr.bf16.mxu0 %v2792
  %2824 = vmatpush1.bf16.msra.mxu0 %v2791
  %2825 = vmatprep.subr.bf16.mxu0 %v2794
  %2826 = vmatpush1.bf16.msra.mxu0 %v2793
  %2827 = vmatprep.subr.bf16.mxu0 %v2796
  %2828 = vmatpush1.bf16.msra.mxu0 %v2795
  %2829 = vmatprep.subr.bf16.mxu0 %v2798
  %2830 = vmatpush1.bf16.msra.mxu0 %v2797
  %2831 = vmatprep.subr.bf16.mxu0 %v2800
  %2832 = vmatpush1.bf16.msra.mxu0 %v2799
  %2833 = vmatprep.subr.bf16.mxu0 0
  %2834 = vmatpush1.bf16.msra.mxu0 0
  %2835 = vmatprep.subr.bf16.mxu0 0
  %2836 = vmatpush1.bf16.msra.mxu0 0
  %2837 = vmatprep.subr.bf16.mxu0 0
  %2838 = vmatpush1.bf16.msra.mxu0 0
  %2839 = vmatprep.subr.bf16.mxu0 0
  %2840 = vmatpush1.bf16.msra.mxu0 0
  %2841 = vmatprep.subr.bf16.mxu0 0
  %2842 = vmatpush1.bf16.msra.mxu0 0
  %2843 = vmatprep.subr.bf16.mxu0 0
  %2844 = vmatpush1.bf16.msra.mxu0 0
  %2845 = vmatprep.subr.bf16.mxu0 0
  %2846 = vmatpush1.bf16.msra.mxu0 0
  %2847 = vmatprep.subr.bf16.mxu0 0
  %2848 = vmatpush1.bf16.msra.mxu0 0
  %2849 = vmatprep.mubr.bf16.mxu0 0
  %2850 = vmatmul.mubr.bf16.gmra.mrb[0].mxu0 %v2712
  %v2851 = vpop.f32.mrb[0].mxu0
  %v2852 = vadd.f32 0.0, %v2851
  %v2853 = vpop.f32.mrb[0].mxu0
  %v2854 = vadd.f32 0.0, %v2853
  %v2855 = vpop.f32.mrb[0].mxu0
  %v2856 = vadd.f32 0.0, %v2855
  %v2857 = vpop.f32.mrb[0].mxu0
  %v2858 = vadd.f32 0.0, %v2857
  %2859 = vmatprep.mubr.bf16.mxu0 0
  %2860 = vmatmul.mubr.bf16.gmra.mrb[0].mxu0 %v2713
  %v2861 = vpop.f32.mrb[0].mxu0
  %v2862 = vadd.f32 0.0, %v2861
  %v2863 = vpop.f32.mrb[0].mxu0
  %v2864 = vadd.f32 0.0, %v2863
  %v2865 = vpop.f32.mrb[0].mxu0
  %v2866 = vadd.f32 0.0, %v2865
  %v2867 = vpop.f32.mrb[0].mxu0
  %v2868 = vadd.f32 0.0, %v2867
  %2869 = vmatprep.mubr.bf16.mxu0 0
  %2870 = vmatmul.mubr.bf16.gmra.mrb[0].mxu0 %v2714
  %v2871 = vpop.f32.mrb[0].mxu0
  %v2872 = vadd.f32 0.0, %v2871
  %v2873 = vpop.f32.mrb[0].mxu0
  %v2874 = vadd.f32 0.0, %v2873
  %v2875 = vpop.f32.mrb[0].mxu0
  %v2876 = vadd.f32 0.0, %v2875
  %v2877 = vpop.f32.mrb[0].mxu0
  %v2878 = vadd.f32 0.0, %v2877
  %2879 = vmatprep.mubr.bf16.mxu0 0
  %2880 = vmatmul.mubr.bf16.gmra.mrb[0].mxu0 %v2715
  %v2881 = vpop.f32.mrb[0].mxu0
  %v2882 = vadd.f32 0.0, %v2881
  %v2883 = vpop.f32.mrb[0].mxu0
  %v2884 = vadd.f32 0.0, %v2883
  %v2885 = vpop.f32.mrb[0].mxu0
  %v2886 = vadd.f32 0.0, %v2885
  %v2887 = vpop.f32.mrb[0].mxu0
  %v2888 = vadd.f32 0.0, %v2887
  %2889 = vmatprep.mubr.bf16.mxu0 0
  %2890 = vmatmul.mubr.bf16.gmra.mrb[0].mxu0 %v2716
  %v2891 = vpop.f32.mrb[0].mxu0
  %v2892 = vadd.f32 0.0, %v2891
  %v2893 = vpop.f32.mrb[0].mxu0
  %v2894 = vadd.f32 0.0, %v2893
  %v2895 = vpop.f32.mrb[0].mxu0
  %v2896 = vadd.f32 0.0, %v2895
  %v2897 = vpop.f32.mrb[0].mxu0
  %v2898 = vadd.f32 0.0, %v2897
  %2899 = vmatprep.mubr.bf16.mxu0 0
  %2900 = vmatmul.mubr.bf16.gmra.mrb[0].mxu0 %v2717
  %v2901 = vpop.f32.mrb[0].mxu0
  %v2902 = vadd.f32 0.0, %v2901
  %v2903 = vpop.f32.mrb[0].mxu0
  %v2904 = vadd.f32 0.0, %v2903
  %v2905 = vpop.f32.mrb[0].mxu0
  %v2906 = vadd.f32 0.0, %v2905
  %v2907 = vpop.f32.mrb[0].mxu0
  %v2908 = vadd.f32 0.0, %v2907
  %2909 = vmatprep.mubr.bf16.mxu0 0
  %2910 = vmatmul.mubr.bf16.gmra.mrb[0].mxu0 %v2718
  %v2911 = vpop.f32.mrb[0].mxu0
  %v2912 = vadd.f32 0.0, %v2911
  %v2913 = vpop.f32.mrb[0].mxu0
  %v2914 = vadd.f32 0.0, %v2913
  %v2915 = vpop.f32.mrb[0].mxu0
  %v2916 = vadd.f32 0.0, %v2915
  %v2917 = vpop.f32.mrb[0].mxu0
  %v2918 = vadd.f32 0.0, %v2917
  %2919 = vmatprep.mubr.bf16.mxu0 0
  %2920 = vmatmul.mubr.bf16.gmra.mrb[0].mxu0 %v2719
  %v2921 = vpop.f32.mrb[0].mxu0
  %v2922 = vadd.f32 0.0, %v2921
  %v2923 = vpop.f32.mrb[0].mxu0
  %v2924 = vadd.f32 0.0, %v2923
  %v2925 = vpop.f32.mrb[0].mxu0
  %v2926 = vadd.f32 0.0, %v2925
  %v2927 = vpop.f32.mrb[0].mxu0
  %v2928 = vadd.f32 0.0, %v2927
  %2929 = vdwg.mxu0
  %v2930 = vadd.f32 %v2618, %v2852
  %v2931 = vadd.f32 %v2620, %v2854
  %v2932 = vadd.f32 %v2622, %v2856
  %v2933 = vadd.f32 %v2624, %v2858
  %v2934 = vadd.f32 %v2628, %v2862
  %v2935 = vadd.f32 %v2630, %v2864
  %v2936 = vadd.f32 %v2632, %v2866
  %v2937 = vadd.f32 %v2634, %v2868
  %v2938 = vadd.f32 %v2638, %v2872
  %v2939 = vadd.f32 %v2640, %v2874
  %v2940 = vadd.f32 %v2642, %v2876
  %v2941 = vadd.f32 %v2644, %v2878
  %v2942 = vadd.f32 %v2648, %v2882
  %v2943 = vadd.f32 %v2650, %v2884
  %v2944 = vadd.f32 %v2652, %v2886
  %v2945 = vadd.f32 %v2654, %v2888
  %v2946 = vadd.f32 %v2658, %v2892
  %v2947 = vadd.f32 %v2660, %v2894
  %v2948 = vadd.f32 %v2662, %v2896
  %v2949 = vadd.f32 %v2664, %v2898
  %v2950 = vadd.f32 %v2668, %v2902
  %v2951 = vadd.f32 %v2670, %v2904
  %v2952 = vadd.f32 %v2672, %v2906
  %v2953 = vadd.f32 %v2674, %v2908
  %v2954 = vadd.f32 %v2678, %v2912
  %v2955 = vadd.f32 %v2680, %v2914
  %v2956 = vadd.f32 %v2682, %v2916
  %v2957 = vadd.f32 %v2684, %v2918
  %v2958 = vadd.f32 %v2688, %v2922
  %v2959 = vadd.f32 %v2690, %v2924
  %v2960 = vadd.f32 %v2692, %v2926
  %v2961 = vadd.f32 %v2694, %v2928
  %v2962 = vld [vmem:[#allocation3 + $0x3] sm:$0xff]
  %v2963 = vld [vmem:[#allocation3 + $0xb] sm:$0xff]
  %v2964 = vld [vmem:[#allocation3 + $0x13] sm:$0xff]
  %v2965 = vld [vmem:[#allocation3 + $0x1b] sm:$0xff]
  %v2966 = vld [vmem:[#allocation3 + $0x23] sm:$0xff]
  %v2967 = vld [vmem:[#allocation3 + $0x2b] sm:$0xff]
  %v2968 = vld [vmem:[#allocation3 + $0x33] sm:$0xff]
  %v2969 = vld [vmem:[#allocation3 + $0x3b] sm:$0xff]
  %v2970 = vld [vmem:[#allocation3 + $0x43] sm:$0xff]
  %v2971 = vld [vmem:[#allocation3 + $0x4b] sm:$0xff]
  %v2972 = vld [vmem:[#allocation3 + $0x53] sm:$0xff]
  %v2973 = vld [vmem:[#allocation3 + $0x5b] sm:$0xff]
  %v2974 = vld [vmem:[#allocation3 + $0x63] sm:$0xff]
  %v2975 = vld [vmem:[#allocation3 + $0x6b] sm:$0xff]
  %v2976 = vld [vmem:[#allocation3 + $0x73] sm:$0xff]
  %v2977 = vld [vmem:[#allocation3 + $0x7b] sm:$0xf]
  %v2978 = vpack.c.bf16 %v2963, %v2962
  %v2979 = vpack.c.bf16 %v2965, %v2964
  %v2980 = vpack.c.bf16 %v2967, %v2966
  %v2981 = vpack.c.bf16 %v2969, %v2968
  %v2982 = vpack.c.bf16 %v2971, %v2970
  %v2983 = vpack.c.bf16 %v2973, %v2972
  %v2984 = vpack.c.bf16 %v2975, %v2974
  %v2985 = vpack.c.bf16 %v2977, %v2976
  %s2986 = scalar_lea.vmem %s3, 384
  %v2987 = vld [vmem:[%s2986] sm:$0xff]
  %v2988 = vld [vmem:[%s2986 + $0x8] sm:$0xff]
  %v2989 = vld [vmem:[%s2986 + $0x10] sm:$0xff]
  %v2990 = vld [vmem:[%s2986 + $0x18] sm:$0xff]
  %v2991 = vld [vmem:[%s2986 + $0x20] sm:$0xff]
  %v2992 = vld [vmem:[%s2986 + $0x28] sm:$0xff]
  %v2993 = vld [vmem:[%s2986 + $0x30] sm:$0xff]
  %v2994 = vld [vmem:[%s2986 + $0x38] sm:$0xff]
  %v2995 = vld [vmem:[%s2986 + $0x40] sm:$0xff]
  %v2996 = vld [vmem:[%s2986 + $0x48] sm:$0xff]
  %v2997 = vld [vmem:[%s2986 + $0x50] sm:$0xff]
  %v2998 = vld [vmem:[%s2986 + $0x58] sm:$0xff]
  %v2999 = vld [vmem:[%s2986 + $0x60] sm:$0xff]
  %v3000 = vld [vmem:[%s2986 + $0x68] sm:$0xff]
  %v3001 = vld [vmem:[%s2986 + $0x70] sm:$0xff]
  %v3002 = vld [vmem:[%s2986 + $0x78] sm:$0xff]
  %v3019 = vunpack.c.l.b16 %v2987
  %v3020 = vunpack.c.h.b16 %v2987
  %v3021 = vunpack.c.l.b16 %v2988
  %v3022 = vunpack.c.h.b16 %v2988
  %v3023 = vunpack.c.l.b16 %v2989
  %v3024 = vunpack.c.h.b16 %v2989
  %v3025 = vunpack.c.l.b16 %v2990
  %v3026 = vunpack.c.h.b16 %v2990
  %v3027 = vunpack.c.l.b16 %v2991
  %v3028 = vunpack.c.h.b16 %v2991
  %v3029 = vunpack.c.l.b16 %v2992
  %v3030 = vunpack.c.h.b16 %v2992
  %v3031 = vunpack.c.l.b16 %v2993
  %v3032 = vunpack.c.h.b16 %v2993
  %v3033 = vunpack.c.l.b16 %v2994
  %v3034 = vunpack.c.h.b16 %v2994
  %v3035 = vunpack.c.l.b16 %v2995
  %v3036 = vunpack.c.h.b16 %v2995
  %v3037 = vunpack.c.l.b16 %v2996
  %v3038 = vunpack.c.h.b16 %v2996
  %v3039 = vunpack.c.l.b16 %v2997
  %v3040 = vunpack.c.h.b16 %v2997
  %v3041 = vunpack.c.l.b16 %v2998
  %v3042 = vunpack.c.h.b16 %v2998
  %v3043 = vunpack.c.l.b16 %v2999
  %v3044 = vunpack.c.h.b16 %v2999
  %v3045 = vunpack.c.l.b16 %v3000
  %v3046 = vunpack.c.h.b16 %v3000
  %v3047 = vunpack.c.l.b16 %v3001
  %v3048 = vunpack.c.h.b16 %v3001
  %v3049 = vunpack.c.l.b16 %v3002
  %v3050 = vunpack.c.h.b16 %v3002
  %v3051 = vpack.c.b16 %v3021, %v3019
  %v3052 = vpack.c.b16 %v3022, %v3020
  %v3053 = vpack.c.b16 %v3025, %v3023
  %v3054 = vpack.c.b16 %v3026, %v3024
  %v3055 = vpack.c.b16 %v3029, %v3027
  %v3056 = vpack.c.b16 %v3030, %v3028
  %v3057 = vpack.c.b16 %v3033, %v3031
  %v3058 = vpack.c.b16 %v3034, %v3032
  %v3059 = vpack.c.b16 %v3037, %v3035
  %v3060 = vpack.c.b16 %v3038, %v3036
  %v3061 = vpack.c.b16 %v3041, %v3039
  %v3062 = vpack.c.b16 %v3042, %v3040
  %v3063 = vpack.c.b16 %v3045, %v3043
  %v3064 = vpack.c.b16 %v3046, %v3044
  %v3065 = vpack.c.b16 %v3049, %v3047
  %v3066 = vpack.c.b16 %v3050, %v3048
  %3083 = vmatprep.subr.bf16.mxu0 %v3052
  %3084 = vmatpush1.bf16.msra.mxu0 %v3051
  %3085 = vmatprep.subr.bf16.mxu0 %v3054
  %3086 = vmatpush1.bf16.msra.mxu0 %v3053
  %3087 = vmatprep.subr.bf16.mxu0 %v3056
  %3088 = vmatpush1.bf16.msra.mxu0 %v3055
  %3089 = vmatprep.subr.bf16.mxu0 %v3058
  %3090 = vmatpush1.bf16.msra.mxu0 %v3057
  %3091 = vmatprep.subr.bf16.mxu0 %v3060
  %3092 = vmatpush1.bf16.msra.mxu0 %v3059
  %3093 = vmatprep.subr.bf16.mxu0 %v3062
  %3094 = vmatpush1.bf16.msra.mxu0 %v3061
  %3095 = vmatprep.subr.bf16.mxu0 %v3064
  %3096 = vmatpush1.bf16.msra.mxu0 %v3063
  %3097 = vmatprep.subr.bf16.mxu0 %v3066
  %3098 = vmatpush1.bf16.msra.mxu0 %v3065
  %3099 = vmatprep.subr.bf16.mxu0 0
  %3100 = vmatpush1.bf16.msra.mxu0 0
  %3101 = vmatprep.subr.bf16.mxu0 0
  %3102 = vmatpush1.bf16.msra.mxu0 0
  %3103 = vmatprep.subr.bf16.mxu0 0
  %3104 = vmatpush1.bf16.msra.mxu0 0
  %3105 = vmatprep.subr.bf16.mxu0 0
  %3106 = vmatpush1.bf16.msra.mxu0 0
  %3107 = vmatprep.subr.bf16.mxu0 0
  %3108 = vmatpush1.bf16.msra.mxu0 0
  %3109 = vmatprep.subr.bf16.mxu0 0
  %3110 = vmatpush1.bf16.msra.mxu0 0
  %3111 = vmatprep.subr.bf16.mxu0 0
  %3112 = vmatpush1.bf16.msra.mxu0 0
  %3113 = vmatprep.subr.bf16.mxu0 0
  %3114 = vmatpush1.bf16.msra.mxu0 0
  %3115 = vmatprep.mubr.bf16.mxu0 0
  %3116 = vmatmul.mubr.bf16.gmra.mrb[0].mxu0 %v2978
  %v3117 = vpop.f32.mrb[0].mxu0
  %v3118 = vadd.f32 0.0, %v3117
  %v3119 = vpop.f32.mrb[0].mxu0
  %v3120 = vadd.f32 0.0, %v3119
  %v3121 = vpop.f32.mrb[0].mxu0
  %v3122 = vadd.f32 0.0, %v3121
  %v3123 = vpop.f32.mrb[0].mxu0
  %v3124 = vadd.f32 0.0, %v3123
  %3125 = vmatprep.mubr.bf16.mxu0 0
  %3126 = vmatmul.mubr.bf16.gmra.mrb[0].mxu0 %v2979
  %v3127 = vpop.f32.mrb[0].mxu0
  %v3128 = vadd.f32 0.0, %v3127
  %v3129 = vpop.f32.mrb[0].mxu0
  %v3130 = vadd.f32 0.0, %v3129
  %v3131 = vpop.f32.mrb[0].mxu0
  %v3132 = vadd.f32 0.0, %v3131
  %v3133 = vpop.f32.mrb[0].mxu0
  %v3134 = vadd.f32 0.0, %v3133
  %3135 = vmatprep.mubr.bf16.mxu0 0
  %3136 = vmatmul.mubr.bf16.gmra.mrb[0].mxu0 %v2980
  %v3137 = vpop.f32.mrb[0].mxu0
  %v3138 = vadd.f32 0.0, %v3137
  %v3139 = vpop.f32.mrb[0].mxu0
  %v3140 = vadd.f32 0.0, %v3139
  %v3141 = vpop.f32.mrb[0].mxu0
  %v3142 = vadd.f32 0.0, %v3141
  %v3143 = vpop.f32.mrb[0].mxu0
  %v3144 = vadd.f32 0.0, %v3143
  %3145 = vmatprep.mubr.bf16.mxu0 0
  %3146 = vmatmul.mubr.bf16.gmra.mrb[0].mxu0 %v2981
  %v3147 = vpop.f32.mrb[0].mxu0
  %v3148 = vadd.f32 0.0, %v3147
  %v3149 = vpop.f32.mrb[0].mxu0
  %v3150 = vadd.f32 0.0, %v3149
  %v3151 = vpop.f32.mrb[0].mxu0
  %v3152 = vadd.f32 0.0, %v3151
  %v3153 = vpop.f32.mrb[0].mxu0
  %v3154 = vadd.f32 0.0, %v3153
  %3155 = vmatprep.mubr.bf16.mxu0 0
  %3156 = vmatmul.mubr.bf16.gmra.mrb[0].mxu0 %v2982
  %v3157 = vpop.f32.mrb[0].mxu0
  %v3158 = vadd.f32 0.0, %v3157
  %v3159 = vpop.f32.mrb[0].mxu0
  %v3160 = vadd.f32 0.0, %v3159
  %v3161 = vpop.f32.mrb[0].mxu0
  %v3162 = vadd.f32 0.0, %v3161
  %v3163 = vpop.f32.mrb[0].mxu0
  %v3164 = vadd.f32 0.0, %v3163
  %3165 = vmatprep.mubr.bf16.mxu0 0
  %3166 = vmatmul.mubr.bf16.gmra.mrb[0].mxu0 %v2983
  %v3167 = vpop.f32.mrb[0].mxu0
  %v3168 = vadd.f32 0.0, %v3167
  %v3169 = vpop.f32.mrb[0].mxu0
  %v3170 = vadd.f32 0.0, %v3169
  %v3171 = vpop.f32.mrb[0].mxu0
  %v3172 = vadd.f32 0.0, %v3171
  %v3173 = vpop.f32.mrb[0].mxu0
  %v3174 = vadd.f32 0.0, %v3173
  %3175 = vmatprep.mubr.bf16.mxu0 0
  %3176 = vmatmul.mubr.bf16.gmra.mrb[0].mxu0 %v2984
  %v3177 = vpop.f32.mrb[0].mxu0
  %v3178 = vadd.f32 0.0, %v3177
  %v3179 = vpop.f32.mrb[0].mxu0
  %v3180 = vadd.f32 0.0, %v3179
  %v3181 = vpop.f32.mrb[0].mxu0
  %v3182 = vadd.f32 0.0, %v3181
  %v3183 = vpop.f32.mrb[0].mxu0
  %v3184 = vadd.f32 0.0, %v3183
  %3185 = vmatprep.mubr.bf16.mxu0 0
  %3186 = vmatmul.mubr.bf16.gmra.mrb[0].mxu0 %v2985
  %v3187 = vpop.f32.mrb[0].mxu0
  %v3188 = vadd.f32 0.0, %v3187
  %v3189 = vpop.f32.mrb[0].mxu0
  %v3190 = vadd.f32 0.0, %v3189
  %v3191 = vpop.f32.mrb[0].mxu0
  %v3192 = vadd.f32 0.0, %v3191
  %v3193 = vpop.f32.mrb[0].mxu0
  %v3194 = vadd.f32 0.0, %v3193
  %3195 = vdwg.mxu0
  %v3196 = vadd.f32 %v2930, %v3118
  %v3197 = vadd.f32 %v2931, %v3120
  %v3198 = vadd.f32 %v2932, %v3122
  %v3199 = vadd.f32 %v2933, %v3124
  %v3200 = vadd.f32 %v2934, %v3128
  %v3201 = vadd.f32 %v2935, %v3130
  %v3202 = vadd.f32 %v2936, %v3132
  %v3203 = vadd.f32 %v2937, %v3134
  %v3204 = vadd.f32 %v2938, %v3138
  %v3205 = vadd.f32 %v2939, %v3140
  %v3206 = vadd.f32 %v2940, %v3142
  %v3207 = vadd.f32 %v2941, %v3144
  %v3208 = vadd.f32 %v2942, %v3148
  %v3209 = vadd.f32 %v2943, %v3150
  %v3210 = vadd.f32 %v2944, %v3152
  %v3211 = vadd.f32 %v2945, %v3154
  %v3212 = vadd.f32 %v2946, %v3158
  %v3213 = vadd.f32 %v2947, %v3160
  %v3214 = vadd.f32 %v2948, %v3162
  %v3215 = vadd.f32 %v2949, %v3164
  %v3216 = vadd.f32 %v2950, %v3168
  %v3217 = vadd.f32 %v2951, %v3170
  %v3218 = vadd.f32 %v2952, %v3172
  %v3219 = vadd.f32 %v2953, %v3174
  %v3220 = vadd.f32 %v2954, %v3178
  %v3221 = vadd.f32 %v2955, %v3180
  %v3222 = vadd.f32 %v2956, %v3182
  %v3223 = vadd.f32 %v2957, %v3184
  %v3224 = vadd.f32 %v2958, %v3188
  %v3225 = vadd.f32 %v2959, %v3190
  %v3226 = vadd.f32 %v2960, %v3192
  %v3227 = vadd.f32 %v2961, %v3194
  %v3228 = vld [vmem:[#allocation3 + $0x4] sm:$0xff]
  %v3229 = vld [vmem:[#allocation3 + $0xc] sm:$0xff]
  %v3230 = vld [vmem:[#allocation3 + $0x14] sm:$0xff]
  %v3231 = vld [vmem:[#allocation3 + $0x1c] sm:$0xff]
  %v3232 = vld [vmem:[#allocation3 + $0x24] sm:$0xff]
  %v3233 = vld [vmem:[#allocation3 + $0x2c] sm:$0xff]
  %v3234 = vld [vmem:[#allocation3 + $0x34] sm:$0xff]
  %v3235 = vld [vmem:[#allocation3 + $0x3c] sm:$0xff]
  %v3236 = vld [vmem:[#allocation3 + $0x44] sm:$0xff]
  %v3237 = vld [vmem:[#allocation3 + $0x4c] sm:$0xff]
  %v3238 = vld [vmem:[#allocation3 + $0x54] sm:$0xff]
  %v3239 = vld [vmem:[#allocation3 + $0x5c] sm:$0xff]
  %v3240 = vld [vmem:[#allocation3 + $0x64] sm:$0xff]
  %v3241 = vld [vmem:[#allocation3 + $0x6c] sm:$0xff]
  %v3242 = vld [vmem:[#allocation3 + $0x74] sm:$0xff]
  %v3243 = vld [vmem:[#allocation3 + $0x7c] sm:$0xf]
  %v3244 = vpack.c.bf16 %v3229, %v3228
  %v3245 = vpack.c.bf16 %v3231, %v3230
  %v3246 = vpack.c.bf16 %v3233, %v3232
  %v3247 = vpack.c.bf16 %v3235, %v3234
  %v3248 = vpack.c.bf16 %v3237, %v3236
  %v3249 = vpack.c.bf16 %v3239, %v3238
  %v3250 = vpack.c.bf16 %v3241, %v3240
  %v3251 = vpack.c.bf16 %v3243, %v3242
  %s3252 = scalar_lea.vmem %s3, 512
  %v3253 = vld [vmem:[%s3252] sm:$0xff]
  %v3254 = vld [vmem:[%s3252 + $0x8] sm:$0xff]
  %v3255 = vld [vmem:[%s3252 + $0x10] sm:$0xff]
  %v3256 = vld [vmem:[%s3252 + $0x18] sm:$0xff]
  %v3257 = vld [vmem:[%s3252 + $0x20] sm:$0xff]
  %v3258 = vld [vmem:[%s3252 + $0x28] sm:$0xff]
  %v3259 = vld [vmem:[%s3252 + $0x30] sm:$0xff]
  %v3260 = vld [vmem:[%s3252 + $0x38] sm:$0xff]
  %v3261 = vld [vmem:[%s3252 + $0x40] sm:$0xff]
  %v3262 = vld [vmem:[%s3252 + $0x48] sm:$0xff]
  %v3263 = vld [vmem:[%s3252 + $0x50] sm:$0xff]
  %v3264 = vld [vmem:[%s3252 + $0x58] sm:$0xff]
  %v3265 = vld [vmem:[%s3252 + $0x60] sm:$0xff]
  %v3266 = vld [vmem:[%s3252 + $0x68] sm:$0xff]
  %v3267 = vld [vmem:[%s3252 + $0x70] sm:$0xff]
  %v3268 = vld [vmem:[%s3252 + $0x78] sm:$0xff]
  %v3285 = vunpack.c.l.b16 %v3253
  %v3286 = vunpack.c.h.b16 %v3253
  %v3287 = vunpack.c.l.b16 %v3254
  %v3288 = vunpack.c.h.b16 %v3254
  %v3289 = vunpack.c.l.b16 %v3255
  %v3290 = vunpack.c.h.b16 %v3255
  %v3291 = vunpack.c.l.b16 %v3256
  %v3292 = vunpack.c.h.b16 %v3256
  %v3293 = vunpack.c.l.b16 %v3257
  %v3294 = vunpack.c.h.b16 %v3257
  %v3295 = vunpack.c.l.b16 %v3258
  %v3296 = vunpack.c.h.b16 %v3258
  %v3297 = vunpack.c.l.b16 %v3259
  %v3298 = vunpack.c.h.b16 %v3259
  %v3299 = vunpack.c.l.b16 %v3260
  %v3300 = vunpack.c.h.b16 %v3260
  %v3301 = vunpack.c.l.b16 %v3261
  %v3302 = vunpack.c.h.b16 %v3261
  %v3303 = vunpack.c.l.b16 %v3262
  %v3304 = vunpack.c.h.b16 %v3262
  %v3305 = vunpack.c.l.b16 %v3263
  %v3306 = vunpack.c.h.b16 %v3263
  %v3307 = vunpack.c.l.b16 %v3264
  %v3308 = vunpack.c.h.b16 %v3264
  %v3309 = vunpack.c.l.b16 %v3265
  %v3310 = vunpack.c.h.b16 %v3265
  %v3311 = vunpack.c.l.b16 %v3266
  %v3312 = vunpack.c.h.b16 %v3266
  %v3313 = vunpack.c.l.b16 %v3267
  %v3314 = vunpack.c.h.b16 %v3267
  %v3315 = vunpack.c.l.b16 %v3268
  %v3316 = vunpack.c.h.b16 %v3268
  %v3317 = vpack.c.b16 %v3287, %v3285
  %v3318 = vpack.c.b16 %v3288, %v3286
  %v3319 = vpack.c.b16 %v3291, %v3289
  %v3320 = vpack.c.b16 %v3292, %v3290
  %v3321 = vpack.c.b16 %v3295, %v3293
  %v3322 = vpack.c.b16 %v3296, %v3294
  %v3323 = vpack.c.b16 %v3299, %v3297
  %v3324 = vpack.c.b16 %v3300, %v3298
  %v3325 = vpack.c.b16 %v3303, %v3301
  %v3326 = vpack.c.b16 %v3304, %v3302
  %v3327 = vpack.c.b16 %v3307, %v3305
  %v3328 = vpack.c.b16 %v3308, %v3306
  %v3329 = vpack.c.b16 %v3311, %v3309
  %v3330 = vpack.c.b16 %v3312, %v3310
  %v3331 = vpack.c.b16 %v3315, %v3313
  %v3332 = vpack.c.b16 %v3316, %v3314
  %3349 = vmatprep.subr.bf16.mxu0 %v3318
  %3350 = vmatpush1.bf16.msra.mxu0 %v3317
  %3351 = vmatprep.subr.bf16.mxu0 %v3320
  %3352 = vmatpush1.bf16.msra.mxu0 %v3319
  %3353 = vmatprep.subr.bf16.mxu0 %v3322
  %3354 = vmatpush1.bf16.msra.mxu0 %v3321
  %3355 = vmatprep.subr.bf16.mxu0 %v3324
  %3356 = vmatpush1.bf16.msra.mxu0 %v3323
  %3357 = vmatprep.subr.bf16.mxu0 %v3326
  %3358 = vmatpush1.bf16.msra.mxu0 %v3325
  %3359 = vmatprep.subr.bf16.mxu0 %v3328
  %3360 = vmatpush1.bf16.msra.mxu0 %v3327
  %3361 = vmatprep.subr.bf16.mxu0 %v3330
  %3362 = vmatpush1.bf16.msra.mxu0 %v3329
  %3363 = vmatprep.subr.bf16.mxu0 %v3332
  %3364 = vmatpush1.bf16.msra.mxu0 %v3331
  %3365 = vmatprep.subr.bf16.mxu0 0
  %3366 = vmatpush1.bf16.msra.mxu0 0
  %3367 = vmatprep.subr.bf16.mxu0 0
  %3368 = vmatpush1.bf16.msra.mxu0 0
  %3369 = vmatprep.subr.bf16.mxu0 0
  %3370 = vmatpush1.bf16.msra.mxu0 0
  %3371 = vmatprep.subr.bf16.mxu0 0
  %3372 = vmatpush1.bf16.msra.mxu0 0
  %3373 = vmatprep.subr.bf16.mxu0 0
  %3374 = vmatpush1.bf16.msra.mxu0 0
  %3375 = vmatprep.subr.bf16.mxu0 0
  %3376 = vmatpush1.bf16.msra.mxu0 0
  %3377 = vmatprep.subr.bf16.mxu0 0
  %3378 = vmatpush1.bf16.msra.mxu0 0
  %3379 = vmatprep.subr.bf16.mxu0 0
  %3380 = vmatpush1.bf16.msra.mxu0 0
  %3381 = vmatprep.mubr.bf16.mxu0 0
  %3382 = vmatmul.mubr.bf16.gmra.mrb[0].mxu0 %v3244
  %v3383 = vpop.f32.mrb[0].mxu0
  %v3384 = vadd.f32 0.0, %v3383
  %v3385 = vpop.f32.mrb[0].mxu0
  %v3386 = vadd.f32 0.0, %v3385
  %v3387 = vpop.f32.mrb[0].mxu0
  %v3388 = vadd.f32 0.0, %v3387
  %v3389 = vpop.f32.mrb[0].mxu0
  %v3390 = vadd.f32 0.0, %v3389
  %3391 = vmatprep.mubr.bf16.mxu0 0
  %3392 = vmatmul.mubr.bf16.gmra.mrb[0].mxu0 %v3245
  %v3393 = vpop.f32.mrb[0].mxu0
  %v3394 = vadd.f32 0.0, %v3393
  %v3395 = vpop.f32.mrb[0].mxu0
  %v3396 = vadd.f32 0.0, %v3395
  %v3397 = vpop.f32.mrb[0].mxu0
  %v3398 = vadd.f32 0.0, %v3397
  %v3399 = vpop.f32.mrb[0].mxu0
  %v3400 = vadd.f32 0.0, %v3399
  %3401 = vmatprep.mubr.bf16.mxu0 0
  %3402 = vmatmul.mubr.bf16.gmra.mrb[0].mxu0 %v3246
  %v3403 = vpop.f32.mrb[0].mxu0
  %v3404 = vadd.f32 0.0, %v3403
  %v3405 = vpop.f32.mrb[0].mxu0
  %v3406 = vadd.f32 0.0, %v3405
  %v3407 = vpop.f32.mrb[0].mxu0
  %v3408 = vadd.f32 0.0, %v3407
  %v3409 = vpop.f32.mrb[0].mxu0
  %v3410 = vadd.f32 0.0, %v3409
  %3411 = vmatprep.mubr.bf16.mxu0 0
  %3412 = vmatmul.mubr.bf16.gmra.mrb[0].mxu0 %v3247
  %v3413 = vpop.f32.mrb[0].mxu0
  %v3414 = vadd.f32 0.0, %v3413
  %v3415 = vpop.f32.mrb[0].mxu0
  %v3416 = vadd.f32 0.0, %v3415
  %v3417 = vpop.f32.mrb[0].mxu0
  %v3418 = vadd.f32 0.0, %v3417
  %v3419 = vpop.f32.mrb[0].mxu0
  %v3420 = vadd.f32 0.0, %v3419
  %3421 = vmatprep.mubr.bf16.mxu0 0
  %3422 = vmatmul.mubr.bf16.gmra.mrb[0].mxu0 %v3248
  %v3423 = vpop.f32.mrb[0].mxu0
  %v3424 = vadd.f32 0.0, %v3423
  %v3425 = vpop.f32.mrb[0].mxu0
  %v3426 = vadd.f32 0.0, %v3425
  %v3427 = vpop.f32.mrb[0].mxu0
  %v3428 = vadd.f32 0.0, %v3427
  %v3429 = vpop.f32.mrb[0].mxu0
  %v3430 = vadd.f32 0.0, %v3429
  %3431 = vmatprep.mubr.bf16.mxu0 0
  %3432 = vmatmul.mubr.bf16.gmra.mrb[0].mxu0 %v3249
  %v3433 = vpop.f32.mrb[0].mxu0
  %v3434 = vadd.f32 0.0, %v3433
  %v3435 = vpop.f32.mrb[0].mxu0
  %v3436 = vadd.f32 0.0, %v3435
  %v3437 = vpop.f32.mrb[0].mxu0
  %v3438 = vadd.f32 0.0, %v3437
  %v3439 = vpop.f32.mrb[0].mxu0
  %v3440 = vadd.f32 0.0, %v3439
  %3441 = vmatprep.mubr.bf16.mxu0 0
  %3442 = vmatmul.mubr.bf16.gmra.mrb[0].mxu0 %v3250
  %v3443 = vpop.f32.mrb[0].mxu0
  %v3444 = vadd.f32 0.0, %v3443
  %v3445 = vpop.f32.mrb[0].mxu0
  %v3446 = vadd.f32 0.0, %v3445
  %v3447 = vpop.f32.mrb[0].mxu0
  %v3448 = vadd.f32 0.0, %v3447
  %v3449 = vpop.f32.mrb[0].mxu0
  %v3450 = vadd.f32 0.0, %v3449
  %3451 = vmatprep.mubr.bf16.mxu0 0
  %3452 = vmatmul.mubr.bf16.gmra.mrb[0].mxu0 %v3251
  %v3453 = vpop.f32.mrb[0].mxu0
  %v3454 = vadd.f32 0.0, %v3453
  %v3455 = vpop.f32.mrb[0].mxu0
  %v3456 = vadd.f32 0.0, %v3455
  %v3457 = vpop.f32.mrb[0].mxu0
  %v3458 = vadd.f32 0.0, %v3457
  %v3459 = vpop.f32.mrb[0].mxu0
  %v3460 = vadd.f32 0.0, %v3459
  %3461 = vdwg.mxu0
  %v3462 = vadd.f32 %v3196, %v3384
  %v3463 = vadd.f32 %v3197, %v3386
  %v3464 = vadd.f32 %v3198, %v3388
  %v3465 = vadd.f32 %v3199, %v3390
  %v3466 = vadd.f32 %v3200, %v3394
  %v3467 = vadd.f32 %v3201, %v3396
  %v3468 = vadd.f32 %v3202, %v3398
  %v3469 = vadd.f32 %v3203, %v3400
  %v3470 = vadd.f32 %v3204, %v3404
  %v3471 = vadd.f32 %v3205, %v3406
  %v3472 = vadd.f32 %v3206, %v3408
  %v3473 = vadd.f32 %v3207, %v3410
  %v3474 = vadd.f32 %v3208, %v3414
  %v3475 = vadd.f32 %v3209, %v3416
  %v3476 = vadd.f32 %v3210, %v3418
  %v3477 = vadd.f32 %v3211, %v3420
  %v3478 = vadd.f32 %v3212, %v3424
  %v3479 = vadd.f32 %v3213, %v3426
  %v3480 = vadd.f32 %v3214, %v3428
  %v3481 = vadd.f32 %v3215, %v3430
  %v3482 = vadd.f32 %v3216, %v3434
  %v3483 = vadd.f32 %v3217, %v3436
  %v3484 = vadd.f32 %v3218, %v3438
  %v3485 = vadd.f32 %v3219, %v3440
  %v3486 = vadd.f32 %v3220, %v3444
  %v3487 = vadd.f32 %v3221, %v3446
  %v3488 = vadd.f32 %v3222, %v3448
  %v3489 = vadd.f32 %v3223, %v3450
  %v3490 = vadd.f32 %v3224, %v3454
  %v3491 = vadd.f32 %v3225, %v3456
  %v3492 = vadd.f32 %v3226, %v3458
  %v3493 = vadd.f32 %v3227, %v3460
  %v3494 = vld [vmem:[%s4] sm:$0x3]
  %v3496 = vlaneseq
  %v3497 = vshrl.u32 %v3496, 7
  %v3498 = vsub.s32 0, %v3497
  %v3499 = vrot.slane %v3494, %v3498
  %v3500 = vlaneseq
  %v3501 = vshrl.u32 %v3500, 7
  %v3502 = vsub.s32 1, %v3501
  %v3503 = vrot.slane %v3494, %v3502
  %v3506 = vadd.f32 %v3462, %v3499
  %v3507 = vadd.f32 %v3463, %v3503
  %v3508 = vadd.f32 %v3464, %v3499
  %v3509 = vadd.f32 %v3465, %v3503
  %v3510 = vadd.f32 %v3466, %v3499
  %v3511 = vadd.f32 %v3467, %v3503
  %v3512 = vadd.f32 %v3468, %v3499
  %v3513 = vadd.f32 %v3469, %v3503
  %v3514 = vadd.f32 %v3470, %v3499
  %v3515 = vadd.f32 %v3471, %v3503
  %v3516 = vadd.f32 %v3472, %v3499
  %v3517 = vadd.f32 %v3473, %v3503
  %v3518 = vadd.f32 %v3474, %v3499
  %v3519 = vadd.f32 %v3475, %v3503
  %v3520 = vadd.f32 %v3476, %v3499
  %v3521 = vadd.f32 %v3477, %v3503
  %v3522 = vadd.f32 %v3478, %v3499
  %v3523 = vadd.f32 %v3479, %v3503
  %v3524 = vadd.f32 %v3480, %v3499
  %v3525 = vadd.f32 %v3481, %v3503
  %v3526 = vadd.f32 %v3482, %v3499
  %v3527 = vadd.f32 %v3483, %v3503
  %v3528 = vadd.f32 %v3484, %v3499
  %v3529 = vadd.f32 %v3485, %v3503
  %v3530 = vadd.f32 %v3486, %v3499
  %v3531 = vadd.f32 %v3487, %v3503
  %v3532 = vadd.f32 %v3488, %v3499
  %v3533 = vadd.f32 %v3489, %v3503
  %v3534 = vadd.f32 %v3490, %v3499
  %v3535 = vadd.f32 %v3491, %v3503
  %v3536 = vadd.f32 %v3492, %v3499
  %v3537 = vadd.f32 %v3493, %v3503
  %v3538 = vmul.f32 %v3506, 0.6666667
  %v3539 = vmul.f32 %v3507, 0.6666667
  %v3540 = vmul.f32 %v3508, 0.6666667
  %v3541 = vmul.f32 %v3509, 0.6666667
  %v3542 = vmul.f32 %v3510, 0.6666667
  %v3543 = vmul.f32 %v3511, 0.6666667
  %v3544 = vmul.f32 %v3512, 0.6666667
  %v3545 = vmul.f32 %v3513, 0.6666667
  %v3546 = vmul.f32 %v3514, 0.6666667
  %v3547 = vmul.f32 %v3515, 0.6666667
  %v3548 = vmul.f32 %v3516, 0.6666667
  %v3549 = vmul.f32 %v3517, 0.6666667
  %v3550 = vmul.f32 %v3518, 0.6666667
  %v3551 = vmul.f32 %v3519, 0.6666667
  %v3552 = vmul.f32 %v3520, 0.6666667
  %v3553 = vmul.f32 %v3521, 0.6666667
  %v3554 = vmul.f32 %v3522, 0.6666667
  %v3555 = vmul.f32 %v3523, 0.6666667
  %v3556 = vmul.f32 %v3524, 0.6666667
  %v3557 = vmul.f32 %v3525, 0.6666667
  %v3558 = vmul.f32 %v3526, 0.6666667
  %v3559 = vmul.f32 %v3527, 0.6666667
  %v3560 = vmul.f32 %v3528, 0.6666667
  %v3561 = vmul.f32 %v3529, 0.6666667
  %v3562 = vmul.f32 %v3530, 0.6666667
  %v3563 = vmul.f32 %v3531, 0.6666667
  %v3564 = vmul.f32 %v3532, 0.6666667
  %v3565 = vmul.f32 %v3533, 0.6666667
  %v3566 = vmul.f32 %v3534, 0.6666667
  %v3567 = vmul.f32 %v3535, 0.6666667
  %v3568 = vmul.f32 %v3536, 0.6666667
  %v3569 = vmul.f32 %v3537, 0.6666667
  %v3570 = vtanh.pop %v3538
  %v3571 = vtanh.pop %v3539
  %v3572 = vtanh.pop %v3540
  %v3573 = vtanh.pop %v3541
  %v3574 = vtanh.pop %v3542
  %v3575 = vtanh.pop %v3543
  %v3576 = vtanh.pop %v3544
  %v3577 = vtanh.pop %v3545
  %v3578 = vtanh.pop %v3546
  %v3579 = vtanh.pop %v3547
  %v3580 = vtanh.pop %v3548
  %v3581 = vtanh.pop %v3549
  %v3582 = vtanh.pop %v3550
  %v3583 = vtanh.pop %v3551
  %v3584 = vtanh.pop %v3552
  %v3585 = vtanh.pop %v3553
  %v3586 = vtanh.pop %v3554
  %v3587 = vtanh.pop %v3555
  %v3588 = vtanh.pop %v3556
  %v3589 = vtanh.pop %v3557
  %v3590 = vtanh.pop %v3558
  %v3591 = vtanh.pop %v3559
  %v3592 = vtanh.pop %v3560
  %v3593 = vtanh.pop %v3561
  %v3594 = vtanh.pop %v3562
  %v3595 = vtanh.pop %v3563
  %v3596 = vtanh.pop %v3564
  %v3597 = vtanh.pop %v3565
  %v3598 = vtanh.pop %v3566
  %v3599 = vtanh.pop %v3567
  %v3600 = vtanh.pop %v3568
  %v3601 = vtanh.pop %v3569
  %v3602 = vmul.f32 %v3570, 1.7159
  %v3603 = vmul.f32 %v3571, 1.7159
  %v3604 = vmul.f32 %v3572, 1.7159
  %v3605 = vmul.f32 %v3573, 1.7159
  %v3606 = vmul.f32 %v3574, 1.7159
  %v3607 = vmul.f32 %v3575, 1.7159
  %v3608 = vmul.f32 %v3576, 1.7159
  %v3609 = vmul.f32 %v3577, 1.7159
  %v3610 = vmul.f32 %v3578, 1.7159
  %v3611 = vmul.f32 %v3579, 1.7159
  %v3612 = vmul.f32 %v3580, 1.7159
  %v3613 = vmul.f32 %v3581, 1.7159
  %v3614 = vmul.f32 %v3582, 1.7159
  %v3615 = vmul.f32 %v3583, 1.7159
  %v3616 = vmul.f32 %v3584, 1.7159
  %v3617 = vmul.f32 %v3585, 1.7159
  %v3618 = vmul.f32 %v3586, 1.7159
  %v3619 = vmul.f32 %v3587, 1.7159
  %v3620 = vmul.f32 %v3588, 1.7159
  %v3621 = vmul.f32 %v3589, 1.7159
  %v3622 = vmul.f32 %v3590, 1.7159
  %v3623 = vmul.f32 %v3591, 1.7159
  %v3624 = vmul.f32 %v3592, 1.7159
  %v3625 = vmul.f32 %v3593, 1.7159
  %v3626 = vmul.f32 %v3594, 1.7159
  %v3627 = vmul.f32 %v3595, 1.7159
  %v3628 = vmul.f32 %v3596, 1.7159
  %v3629 = vmul.f32 %v3597, 1.7159
  %v3630 = vmul.f32 %v3598, 1.7159
  %v3631 = vmul.f32 %v3599, 1.7159
  %v3632 = vmul.f32 %v3600, 1.7159
  %v3633 = vmul.f32 %v3601, 1.7159
  %v3634 = vadd.f32 %v3602, %v3603
  %v3635 = vadd.f32 %v3604, %v3605
  %v3636 = vadd.f32 %v3606, %v3607
  %v3637 = vadd.f32 %v3608, %v3609
  %v3638 = vadd.f32 %v3610, %v3611
  %v3639 = vadd.f32 %v3612, %v3613
  %v3640 = vadd.f32 %v3614, %v3615
  %v3641 = vadd.f32 %v3616, %v3617
  %v3642 = vadd.f32 %v3618, %v3619
  %v3643 = vadd.f32 %v3620, %v3621
  %v3644 = vadd.f32 %v3622, %v3623
  %v3645 = vadd.f32 %v3624, %v3625
  %v3646 = vadd.f32 %v3626, %v3627
  %v3647 = vadd.f32 %v3628, %v3629
  %v3648 = vadd.f32 %v3630, %v3631
  %v3649 = vadd.f32 %v3632, %v3633
  %3650 = vst [vmem:[#allocation2] sm:$0xff] %v3634
  %3651 = vst [vmem:[#allocation2 + $0x8] sm:$0xff] %v3635
  %3652 = vst [vmem:[#allocation2 + $0x10] sm:$0xff] %v3636
  %3653 = vst [vmem:[#allocation2 + $0x18] sm:$0xff] %v3637
  %3654 = vst [vmem:[#allocation2 + $0x20] sm:$0xff] %v3638
  %3655 = vst [vmem:[#allocation2 + $0x28] sm:$0xff] %v3639
  %3656 = vst [vmem:[#allocation2 + $0x30] sm:$0xff] %v3640
  %3657 = vst [vmem:[#allocation2 + $0x38] sm:$0xff] %v3641
  %3658 = vst [vmem:[#allocation2 + $0x40] sm:$0xff] %v3642
  %3659 = vst [vmem:[#allocation2 + $0x48] sm:$0xff] %v3643
  %3660 = vst [vmem:[#allocation2 + $0x50] sm:$0xff] %v3644
  %3661 = vst [vmem:[#allocation2 + $0x58] sm:$0xff] %v3645
  %3662 = vst [vmem:[#allocation2 + $0x60] sm:$0xff] %v3646
  %3663 = vst [vmem:[#allocation2 + $0x68] sm:$0xff] %v3647
  %3664 = vst [vmem:[#allocation2 + $0x70] sm:$0xff] %v3648
  %3665 = vst [vmem:[#allocation2 + $0x78] sm:$0xf] %v3649
  %v3666 = vld [vmem:[#allocation2] ss:$2 sm:$0xff]
  %s3667 = scalar_lea.vmem [#allocation2], 16
  %v3668 = vld [vmem:[%s3667] ss:$2 sm:$0xff]
  %s3669 = scalar_lea.vmem [#allocation2], 32
  %v3670 = vld [vmem:[%s3669] ss:$2 sm:$0xff]
  %s3671 = scalar_lea.vmem [#allocation2], 48
  %v3672 = vld [vmem:[%s3671] ss:$2 sm:$0xff]
  %s3673 = scalar_lea.vmem [#allocation2], 64
  %v3674 = vld [vmem:[%s3673] ss:$2 sm:$0xff]
  %s3675 = scalar_lea.vmem [#allocation2], 80
  %v3676 = vld [vmem:[%s3675] ss:$2 sm:$0xff]
  %s3677 = scalar_lea.vmem [#allocation2], 96
  %v3678 = vld [vmem:[%s3677] ss:$2 sm:$0xff]
  %s3679 = scalar_lea.vmem [#allocation2], 112
  %v3680 = vld [vmem:[%s3679] ss:$2 sm:$0xff]
  %v3681 = vld [vmem:[%s2165] ss:$2 sm:$0xff]
  %v3682 = vld [vmem:[%s2167] ss:$2 sm:$0xff]
  %v3683 = vld [vmem:[%s2169] ss:$2 sm:$0xff]
  %v3684 = vld [vmem:[%s2171] ss:$2 sm:$0xff]
  %v3685 = vld [vmem:[%s2173] ss:$2 sm:$0xff]
  %v3686 = vld [vmem:[%s2175] ss:$2 sm:$0xff]
  %v3687 = vld [vmem:[%s2177] ss:$2 sm:$0xff]
  %v3688 = vld [vmem:[%s2179] ss:$2 sm:$0xff]
  %v3689 = vadd.f32 %v3666, %v3681
  %v3690 = vadd.f32 %v3668, %v3682
  %v3691 = vadd.f32 %v3670, %v3683
  %v3692 = vadd.f32 %v3672, %v3684
  %v3693 = vadd.f32 %v3674, %v3685
  %v3694 = vadd.f32 %v3676, %v3686
  %v3695 = vadd.f32 %v3678, %v3687
  %v3696 = vadd.f32 %v3680, %v3688
  %3697 = vst [vmem:[#allocation4] sm:$0xff] %v3689
  %3698 = vst [vmem:[#allocation4 + $0x8] sm:$0xff] %v3690
  %3699 = vst [vmem:[#allocation4 + $0x10] sm:$0xff] %v3691
  %3700 = vst [vmem:[#allocation4 + $0x18] sm:$0xff] %v3692
  %3701 = vst [vmem:[#allocation4 + $0x20] sm:$0xff] %v3693
  %3702 = vst [vmem:[#allocation4 + $0x28] sm:$0xff] %v3694
  %3703 = vst [vmem:[#allocation4 + $0x30] sm:$0xff] %v3695
  %3704 = vst [vmem:[#allocation4 + $0x38] sm:$0xff] %v3696
  %v3705 = vld [vmem:[#allocation4] ss:$8 sm:$0xf]
  %v3706 = vld [vmem:[#allocation4] ss:$8 sm:$0xf0]
  %v3707 = vor.u32 %v3705, %v3706
  %v3708 = vpack.c.bf16 %v3707, %v3707
  %v3709 = vld [vmem:[%s5] sm:$0xf]
  %v3710 = vld [vmem:[%s5 + $0x4] sm:$0xf]
  %v3711 = vld [vmem:[%s5 + $0x8] sm:$0xf]
  %v3712 = vld [vmem:[%s5 + $0xc] sm:$0xf]
  %v3713 = vld [vmem:[%s5 + $0x10] sm:$0xf]
  %v3714 = vld [vmem:[%s5 + $0x14] sm:$0xf]
  %v3715 = vld [vmem:[%s5 + $0x18] sm:$0xf]
  %v3716 = vld [vmem:[%s5 + $0x1c] sm:$0xf]
  %v3717 = vld [vmem:[%s5 + $0x20] sm:$0xf]
  %v3718 = vld [vmem:[%s5 + $0x24] sm:$0xf]
  %v3719 = vld [vmem:[%s5 + $0x28] sm:$0xf]
  %v3720 = vld [vmem:[%s5 + $0x2c] sm:$0xf]
  %v3721 = vld [vmem:[%s5 + $0x30] sm:$0xf]
  %v3722 = vld [vmem:[%s5 + $0x34] sm:$0xf]
  %v3723 = vld [vmem:[%s5 + $0x38] sm:$0xf]
  %v3724 = vld [vmem:[%s5 + $0x3c] sm:$0xf]
  %s3725 = scalar_lea.vmem [#allocation4], 1
  %v3726 = vld [vmem:[%s3725] ss:$8 sm:$0xf]
  %v3727 = vld [vmem:[%s3725] ss:$8 sm:$0xf0]
  %v3728 = vor.u32 %v3726, %v3727
  %v3729 = vpack.c.bf16 %v3728, %v3728
  %s3730 = scalar_lea.vmem %s5, 64
  %v3731 = vld [vmem:[%s3730] sm:$0xf]
  %v3732 = vld [vmem:[%s3730 + $0x4] sm:$0xf]
  %v3733 = vld [vmem:[%s3730 + $0x8] sm:$0xf]
  %v3734 = vld [vmem:[%s3730 + $0xc] sm:$0xf]
  %v3735 = vld [vmem:[%s3730 + $0x10] sm:$0xf]
  %v3736 = vld [vmem:[%s3730 + $0x14] sm:$0xf]
  %v3737 = vld [vmem:[%s3730 + $0x18] sm:$0xf]
  %v3738 = vld [vmem:[%s3730 + $0x1c] sm:$0xf]
  %v3739 = vld [vmem:[%s3730 + $0x20] sm:$0xf]
  %v3740 = vld [vmem:[%s3730 + $0x24] sm:$0xf]
  %v3741 = vld [vmem:[%s3730 + $0x28] sm:$0xf]
  %v3742 = vld [vmem:[%s3730 + $0x2c] sm:$0xf]
  %v3743 = vld [vmem:[%s3730 + $0x30] sm:$0xf]
  %v3744 = vld [vmem:[%s3730 + $0x34] sm:$0xf]
  %v3745 = vld [vmem:[%s3730 + $0x38] sm:$0xf]
  %v3746 = vld [vmem:[%s3730 + $0x3c] sm:$0xf]
  %v3763 = vunpack.c.l.b16 %v3731
  %v3764 = vunpack.c.l.b16 %v3732
  %v3765 = vunpack.c.l.b16 %v3733
  %v3766 = vunpack.c.l.b16 %v3734
  %v3767 = vunpack.c.l.b16 %v3735
  %v3768 = vunpack.c.l.b16 %v3736
  %v3769 = vunpack.c.l.b16 %v3737
  %v3770 = vunpack.c.l.b16 %v3738
  %v3771 = vunpack.c.l.b16 %v3739
  %v3772 = vunpack.c.l.b16 %v3740
  %v3773 = vunpack.c.l.b16 %v3741
  %v3774 = vunpack.c.l.b16 %v3742
  %v3775 = vunpack.c.l.b16 %v3743
  %v3776 = vunpack.c.l.b16 %v3744
  %v3777 = vunpack.c.l.b16 %v3745
  %v3778 = vunpack.c.l.b16 %v3746
  %v3779 = vpack.c.b16 %v3764, %v3763
  %v3780 = vpack.c.b16 %v3766, %v3765
  %v3781 = vpack.c.b16 %v3768, %v3767
  %v3782 = vpack.c.b16 %v3770, %v3769
  %v3783 = vpack.c.b16 %v3772, %v3771
  %v3784 = vpack.c.b16 %v3774, %v3773
  %v3785 = vpack.c.b16 %v3776, %v3775
  %v3786 = vpack.c.b16 %v3778, %v3777
  %3795 = vmatprep.subr.bf16.mxu0 0
  %3796 = vmatpush1.bf16.msra.mxu0 %v3779
  %3797 = vmatprep.subr.bf16.mxu0 0
  %3798 = vmatpush1.bf16.msra.mxu0 %v3780
  %3799 = vmatprep.subr.bf16.mxu0 0
  %3800 = vmatpush1.bf16.msra.mxu0 %v3781
  %3801 = vmatprep.subr.bf16.mxu0 0
  %3802 = vmatpush1.bf16.msra.mxu0 %v3782
  %3803 = vmatprep.subr.bf16.mxu0 0
  %3804 = vmatpush1.bf16.msra.mxu0 %v3783
  %3805 = vmatprep.subr.bf16.mxu0 0
  %3806 = vmatpush1.bf16.msra.mxu0 %v3784
  %3807 = vmatprep.subr.bf16.mxu0 0
  %3808 = vmatpush1.bf16.msra.mxu0 %v3785
  %3809 = vmatprep.subr.bf16.mxu0 0
  %3810 = vmatpush1.bf16.msra.mxu0 %v3786
  %3811 = vmatprep.subr.bf16.mxu0 0
  %3812 = vmatpush1.bf16.msra.mxu0 0
  %3813 = vmatprep.subr.bf16.mxu0 0
  %3814 = vmatpush1.bf16.msra.mxu0 0
  %3815 = vmatprep.subr.bf16.mxu0 0
  %3816 = vmatpush1.bf16.msra.mxu0 0
  %3817 = vmatprep.subr.bf16.mxu0 0
  %3818 = vmatpush1.bf16.msra.mxu0 0
  %3819 = vmatprep.subr.bf16.mxu0 0
  %3820 = vmatpush1.bf16.msra.mxu0 0
  %3821 = vmatprep.subr.bf16.mxu0 0
  %3822 = vmatpush1.bf16.msra.mxu0 0
  %3823 = vmatprep.subr.bf16.mxu0 0
  %3824 = vmatpush1.bf16.msra.mxu0 0
  %3825 = vmatprep.subr.bf16.mxu0 0
  %3826 = vmatpush1.bf16.msra.mxu0 0
  %3827 = vmatprep.mubr.bf16.mxu0 0
  %3828 = vmatmul.mubr.bf16.gmra.mrb[0].mxu0 %v3729
  %v3829 = vpop.f32.mrb[0].mxu0
  %v3830 = vadd.f32 0.0, %v3829
  %v3831 = vpop.f32.mrb[0].mxu0
  %v3832 = vpop.f32.mrb[0].mxu0
  %v3833 = vpop.f32.mrb[0].mxu0
  %3834 = vdwg.mxu0
  %v3851 = vunpack.c.l.b16 %v3709
  %v3852 = vunpack.c.l.b16 %v3710
  %v3853 = vunpack.c.l.b16 %v3711
  %v3854 = vunpack.c.l.b16 %v3712
  %v3855 = vunpack.c.l.b16 %v3713
  %v3856 = vunpack.c.l.b16 %v3714
  %v3857 = vunpack.c.l.b16 %v3715
  %v3858 = vunpack.c.l.b16 %v3716
  %v3859 = vunpack.c.l.b16 %v3717
  %v3860 = vunpack.c.l.b16 %v3718
  %v3861 = vunpack.c.l.b16 %v3719
  %v3862 = vunpack.c.l.b16 %v3720
  %v3863 = vunpack.c.l.b16 %v3721
  %v3864 = vunpack.c.l.b16 %v3722
  %v3865 = vunpack.c.l.b16 %v3723
  %v3866 = vunpack.c.l.b16 %v3724
  %v3867 = vpack.c.b16 %v3852, %v3851
  %v3868 = vpack.c.b16 %v3854, %v3853
  %v3869 = vpack.c.b16 %v3856, %v3855
  %v3870 = vpack.c.b16 %v3858, %v3857
  %v3871 = vpack.c.b16 %v3860, %v3859
  %v3872 = vpack.c.b16 %v3862, %v3861
  %v3873 = vpack.c.b16 %v3864, %v3863
  %v3874 = vpack.c.b16 %v3866, %v3865
  %3883 = vmatprep.subr.bf16.mxu0 0
  %3884 = vmatpush1.bf16.msra.mxu0 %v3867
  %3885 = vmatprep.subr.bf16.mxu0 0
  %3886 = vmatpush1.bf16.msra.mxu0 %v3868
  %3887 = vmatprep.subr.bf16.mxu0 0
  %3888 = vmatpush1.bf16.msra.mxu0 %v3869
  %3889 = vmatprep.subr.bf16.mxu0 0
  %3890 = vmatpush1.bf16.msra.mxu0 %v3870
  %3891 = vmatprep.subr.bf16.mxu0 0
  %3892 = vmatpush1.bf16.msra.mxu0 %v3871
  %3893 = vmatprep.subr.bf16.mxu0 0
  %3894 = vmatpush1.bf16.msra.mxu0 %v3872
  %3895 = vmatprep.subr.bf16.mxu0 0
  %3896 = vmatpush1.bf16.msra.mxu0 %v3873
  %3897 = vmatprep.subr.bf16.mxu0 0
  %3898 = vmatpush1.bf16.msra.mxu0 %v3874
  %3899 = vmatprep.subr.bf16.mxu0 0
  %3900 = vmatpush1.bf16.msra.mxu0 0
  %3901 = vmatprep.subr.bf16.mxu0 0
  %3902 = vmatpush1.bf16.msra.mxu0 0
  %3903 = vmatprep.subr.bf16.mxu0 0
  %3904 = vmatpush1.bf16.msra.mxu0 0
  %3905 = vmatprep.subr.bf16.mxu0 0
  %3906 = vmatpush1.bf16.msra.mxu0 0
  %3907 = vmatprep.subr.bf16.mxu0 0
  %3908 = vmatpush1.bf16.msra.mxu0 0
  %3909 = vmatprep.subr.bf16.mxu0 0
  %3910 = vmatpush1.bf16.msra.mxu0 0
  %3911 = vmatprep.subr.bf16.mxu0 0
  %3912 = vmatpush1.bf16.msra.mxu0 0
  %3913 = vmatprep.subr.bf16.mxu0 0
  %3914 = vmatpush1.bf16.msra.mxu0 0
  %3915 = vmatprep.mubr.bf16.mxu0 0
  %3916 = vmatmul.mubr.bf16.gmra.mrb[0].mxu0 %v3708
  %v3917 = vpop.f32.mrb[0].mxu0
  %v3918 = vadd.f32 %v3830, %v3917
  %v3919 = vpop.f32.mrb[0].mxu0
  %v3920 = vpop.f32.mrb[0].mxu0
  %v3921 = vpop.f32.mrb[0].mxu0
  %3922 = vdwg.mxu0
  %s3923 = scalar_lea.vmem [#allocation4], 2
  %v3924 = vld [vmem:[%s3923] ss:$8 sm:$0xf]
  %v3925 = vld [vmem:[%s3923] ss:$8 sm:$0xf0]
  %v3926 = vor.u32 %v3924, %v3925
  %v3927 = vpack.c.bf16 %v3926, %v3926
  %s3928 = scalar_lea.vmem %s5, 128
  %v3929 = vld [vmem:[%s3928] sm:$0xf]
  %v3930 = vld [vmem:[%s3928 + $0x4] sm:$0xf]
  %v3931 = vld [vmem:[%s3928 + $0x8] sm:$0xf]
  %v3932 = vld [vmem:[%s3928 + $0xc] sm:$0xf]
  %v3933 = vld [vmem:[%s3928 + $0x10] sm:$0xf]
  %v3934 = vld [vmem:[%s3928 + $0x14] sm:$0xf]
  %v3935 = vld [vmem:[%s3928 + $0x18] sm:$0xf]
  %v3936 = vld [vmem:[%s3928 + $0x1c] sm:$0xf]
  %v3937 = vld [vmem:[%s3928 + $0x20] sm:$0xf]
  %v3938 = vld [vmem:[%s3928 + $0x24] sm:$0xf]
  %v3939 = vld [vmem:[%s3928 + $0x28] sm:$0xf]
  %v3940 = vld [vmem:[%s3928 + $0x2c] sm:$0xf]
  %v3941 = vld [vmem:[%s3928 + $0x30] sm:$0xf]
  %v3942 = vld [vmem:[%s3928 + $0x34] sm:$0xf]
  %v3943 = vld [vmem:[%s3928 + $0x38] sm:$0xf]
  %v3944 = vld [vmem:[%s3928 + $0x3c] sm:$0xf]
  %v3961 = vunpack.c.l.b16 %v3929
  %v3962 = vunpack.c.l.b16 %v3930
  %v3963 = vunpack.c.l.b16 %v3931
  %v3964 = vunpack.c.l.b16 %v3932
  %v3965 = vunpack.c.l.b16 %v3933
  %v3966 = vunpack.c.l.b16 %v3934
  %v3967 = vunpack.c.l.b16 %v3935
  %v3968 = vunpack.c.l.b16 %v3936
  %v3969 = vunpack.c.l.b16 %v3937
  %v3970 = vunpack.c.l.b16 %v3938
  %v3971 = vunpack.c.l.b16 %v3939
  %v3972 = vunpack.c.l.b16 %v3940
  %v3973 = vunpack.c.l.b16 %v3941
  %v3974 = vunpack.c.l.b16 %v3942
  %v3975 = vunpack.c.l.b16 %v3943
  %v3976 = vunpack.c.l.b16 %v3944
  %v3977 = vpack.c.b16 %v3962, %v3961
  %v3978 = vpack.c.b16 %v3964, %v3963
  %v3979 = vpack.c.b16 %v3966, %v3965
  %v3980 = vpack.c.b16 %v3968, %v3967
  %v3981 = vpack.c.b16 %v3970, %v3969
  %v3982 = vpack.c.b16 %v3972, %v3971
  %v3983 = vpack.c.b16 %v3974, %v3973
  %v3984 = vpack.c.b16 %v3976, %v3975
  %3993 = vmatprep.subr.bf16.mxu0 0
  %3994 = vmatpush1.bf16.msra.mxu0 %v3977
  %3995 = vmatprep.subr.bf16.mxu0 0
  %3996 = vmatpush1.bf16.msra.mxu0 %v3978
  %3997 = vmatprep.subr.bf16.mxu0 0
  %3998 = vmatpush1.bf16.msra.mxu0 %v3979
  %3999 = vmatprep.subr.bf16.mxu0 0
  %4000 = vmatpush1.bf16.msra.mxu0 %v3980
  %4001 = vmatprep.subr.bf16.mxu0 0
  %4002 = vmatpush1.bf16.msra.mxu0 %v3981
  %4003 = vmatprep.subr.bf16.mxu0 0
  %4004 = vmatpush1.bf16.msra.mxu0 %v3982
  %4005 = vmatprep.subr.bf16.mxu0 0
  %4006 = vmatpush1.bf16.msra.mxu0 %v3983
  %4007 = vmatprep.subr.bf16.mxu0 0
  %4008 = vmatpush1.bf16.msra.mxu0 %v3984
  %4009 = vmatprep.subr.bf16.mxu0 0
  %4010 = vmatpush1.bf16.msra.mxu0 0
  %4011 = vmatprep.subr.bf16.mxu0 0
  %4012 = vmatpush1.bf16.msra.mxu0 0
  %4013 = vmatprep.subr.bf16.mxu0 0
  %4014 = vmatpush1.bf16.msra.mxu0 0
  %4015 = vmatprep.subr.bf16.mxu0 0
  %4016 = vmatpush1.bf16.msra.mxu0 0
  %4017 = vmatprep.subr.bf16.mxu0 0
  %4018 = vmatpush1.bf16.msra.mxu0 0
  %4019 = vmatprep.subr.bf16.mxu0 0
  %4020 = vmatpush1.bf16.msra.mxu0 0
  %4021 = vmatprep.subr.bf16.mxu0 0
  %4022 = vmatpush1.bf16.msra.mxu0 0
  %4023 = vmatprep.subr.bf16.mxu0 0
  %4024 = vmatpush1.bf16.msra.mxu0 0
  %4025 = vmatprep.mubr.bf16.mxu0 0
  %4026 = vmatmul.mubr.bf16.gmra.mrb[0].mxu0 %v3927
  %v4027 = vpop.f32.mrb[0].mxu0
  %v4028 = vadd.f32 0.0, %v4027
  %v4029 = vpop.f32.mrb[0].mxu0
  %v4030 = vpop.f32.mrb[0].mxu0
  %v4031 = vpop.f32.mrb[0].mxu0
  %4032 = vdwg.mxu0
  %v4033 = vadd.f32 %v3918, %v4028
  %s4034 = scalar_lea.vmem [#allocation4], 3
  %v4035 = vld [vmem:[%s4034] ss:$8 sm:$0xf]
  %v4036 = vld [vmem:[%s4034] ss:$8 sm:$0xf0]
  %v4037 = vor.u32 %v4035, %v4036
  %v4038 = vpack.c.bf16 %v4037, %v4037
  %s4039 = scalar_lea.vmem %s5, 192
  %v4040 = vld [vmem:[%s4039] sm:$0xf]
  %v4041 = vld [vmem:[%s4039 + $0x4] sm:$0xf]
  %v4042 = vld [vmem:[%s4039 + $0x8] sm:$0xf]
  %v4043 = vld [vmem:[%s4039 + $0xc] sm:$0xf]
  %v4044 = vld [vmem:[%s4039 + $0x10] sm:$0xf]
  %v4045 = vld [vmem:[%s4039 + $0x14] sm:$0xf]
  %v4046 = vld [vmem:[%s4039 + $0x18] sm:$0xf]
  %v4047 = vld [vmem:[%s4039 + $0x1c] sm:$0xf]
  %v4048 = vld [vmem:[%s4039 + $0x20] sm:$0xf]
  %v4049 = vld [vmem:[%s4039 + $0x24] sm:$0xf]
  %v4050 = vld [vmem:[%s4039 + $0x28] sm:$0xf]
  %v4051 = vld [vmem:[%s4039 + $0x2c] sm:$0xf]
  %v4052 = vld [vmem:[%s4039 + $0x30] sm:$0xf]
  %v4053 = vld [vmem:[%s4039 + $0x34] sm:$0xf]
  %v4054 = vld [vmem:[%s4039 + $0x38] sm:$0xf]
  %v4055 = vld [vmem:[%s4039 + $0x3c] sm:$0xf]
  %v4072 = vunpack.c.l.b16 %v4040
  %v4073 = vunpack.c.l.b16 %v4041
  %v4074 = vunpack.c.l.b16 %v4042
  %v4075 = vunpack.c.l.b16 %v4043
  %v4076 = vunpack.c.l.b16 %v4044
  %v4077 = vunpack.c.l.b16 %v4045
  %v4078 = vunpack.c.l.b16 %v4046
  %v4079 = vunpack.c.l.b16 %v4047
  %v4080 = vunpack.c.l.b16 %v4048
  %v4081 = vunpack.c.l.b16 %v4049
  %v4082 = vunpack.c.l.b16 %v4050
  %v4083 = vunpack.c.l.b16 %v4051
  %v4084 = vunpack.c.l.b16 %v4052
  %v4085 = vunpack.c.l.b16 %v4053
  %v4086 = vunpack.c.l.b16 %v4054
  %v4087 = vunpack.c.l.b16 %v4055
  %v4088 = vpack.c.b16 %v4073, %v4072
  %v4089 = vpack.c.b16 %v4075, %v4074
  %v4090 = vpack.c.b16 %v4077, %v4076
  %v4091 = vpack.c.b16 %v4079, %v4078
  %v4092 = vpack.c.b16 %v4081, %v4080
  %v4093 = vpack.c.b16 %v4083, %v4082
  %v4094 = vpack.c.b16 %v4085, %v4084
  %v4095 = vpack.c.b16 %v4087, %v4086
  %4104 = vmatprep.subr.bf16.mxu0 0
  %4105 = vmatpush1.bf16.msra.mxu0 %v4088
  %4106 = vmatprep.subr.bf16.mxu0 0
  %4107 = vmatpush1.bf16.msra.mxu0 %v4089
  %4108 = vmatprep.subr.bf16.mxu0 0
  %4109 = vmatpush1.bf16.msra.mxu0 %v4090
  %4110 = vmatprep.subr.bf16.mxu0 0
  %4111 = vmatpush1.bf16.msra.mxu0 %v4091
  %4112 = vmatprep.subr.bf16.mxu0 0
  %4113 = vmatpush1.bf16.msra.mxu0 %v4092
  %4114 = vmatprep.subr.bf16.mxu0 0
  %4115 = vmatpush1.bf16.msra.mxu0 %v4093
  %4116 = vmatprep.subr.bf16.mxu0 0
  %4117 = vmatpush1.bf16.msra.mxu0 %v4094
  %4118 = vmatprep.subr.bf16.mxu0 0
  %4119 = vmatpush1.bf16.msra.mxu0 %v4095
  %4120 = vmatprep.subr.bf16.mxu0 0
  %4121 = vmatpush1.bf16.msra.mxu0 0
  %4122 = vmatprep.subr.bf16.mxu0 0
  %4123 = vmatpush1.bf16.msra.mxu0 0
  %4124 = vmatprep.subr.bf16.mxu0 0
  %4125 = vmatpush1.bf16.msra.mxu0 0
  %4126 = vmatprep.subr.bf16.mxu0 0
  %4127 = vmatpush1.bf16.msra.mxu0 0
  %4128 = vmatprep.subr.bf16.mxu0 0
  %4129 = vmatpush1.bf16.msra.mxu0 0
  %4130 = vmatprep.subr.bf16.mxu0 0
  %4131 = vmatpush1.bf16.msra.mxu0 0
  %4132 = vmatprep.subr.bf16.mxu0 0
  %4133 = vmatpush1.bf16.msra.mxu0 0
  %4134 = vmatprep.subr.bf16.mxu0 0
  %4135 = vmatpush1.bf16.msra.mxu0 0
  %4136 = vmatprep.mubr.bf16.mxu0 0
  %4137 = vmatmul.mubr.bf16.gmra.mrb[0].mxu0 %v4038
  %v4138 = vpop.f32.mrb[0].mxu0
  %v4139 = vadd.f32 0.0, %v4138
  %v4140 = vpop.f32.mrb[0].mxu0
  %v4141 = vpop.f32.mrb[0].mxu0
  %v4142 = vpop.f32.mrb[0].mxu0
  %4143 = vdwg.mxu0
  %v4144 = vadd.f32 %v4033, %v4139
  %s4145 = scalar_lea.vmem [#allocation4], 4
  %v4146 = vld [vmem:[%s4145] ss:$8 sm:$0xf]
  %v4147 = vld [vmem:[%s4145] ss:$8 sm:$0xf0]
  %v4148 = vor.u32 %v4146, %v4147
  %v4149 = vpack.c.bf16 %v4148, %v4148
  %s4150 = scalar_lea.vmem %s5, 256
  %v4151 = vld [vmem:[%s4150] sm:$0xf]
  %v4152 = vld [vmem:[%s4150 + $0x4] sm:$0xf]
  %v4153 = vld [vmem:[%s4150 + $0x8] sm:$0xf]
  %v4154 = vld [vmem:[%s4150 + $0xc] sm:$0xf]
  %v4155 = vld [vmem:[%s4150 + $0x10] sm:$0xf]
  %v4156 = vld [vmem:[%s4150 + $0x14] sm:$0xf]
  %v4157 = vld [vmem:[%s4150 + $0x18] sm:$0xf]
  %v4158 = vld [vmem:[%s4150 + $0x1c] sm:$0xf]
  %v4159 = vld [vmem:[%s4150 + $0x20] sm:$0xf]
  %v4160 = vld [vmem:[%s4150 + $0x24] sm:$0xf]
  %v4161 = vld [vmem:[%s4150 + $0x28] sm:$0xf]
  %v4162 = vld [vmem:[%s4150 + $0x2c] sm:$0xf]
  %v4163 = vld [vmem:[%s4150 + $0x30] sm:$0xf]
  %v4164 = vld [vmem:[%s4150 + $0x34] sm:$0xf]
  %v4165 = vld [vmem:[%s4150 + $0x38] sm:$0xf]
  %v4166 = vld [vmem:[%s4150 + $0x3c] sm:$0xf]
  %v4183 = vunpack.c.l.b16 %v4151
  %v4184 = vunpack.c.l.b16 %v4152
  %v4185 = vunpack.c.l.b16 %v4153
  %v4186 = vunpack.c.l.b16 %v4154
  %v4187 = vunpack.c.l.b16 %v4155
  %v4188 = vunpack.c.l.b16 %v4156
  %v4189 = vunpack.c.l.b16 %v4157
  %v4190 = vunpack.c.l.b16 %v4158
  %v4191 = vunpack.c.l.b16 %v4159
  %v4192 = vunpack.c.l.b16 %v4160
  %v4193 = vunpack.c.l.b16 %v4161
  %v4194 = vunpack.c.l.b16 %v4162
  %v4195 = vunpack.c.l.b16 %v4163
  %v4196 = vunpack.c.l.b16 %v4164
  %v4197 = vunpack.c.l.b16 %v4165
  %v4198 = vunpack.c.l.b16 %v4166
  %v4199 = vpack.c.b16 %v4184, %v4183
  %v4200 = vpack.c.b16 %v4186, %v4185
  %v4201 = vpack.c.b16 %v4188, %v4187
  %v4202 = vpack.c.b16 %v4190, %v4189
  %v4203 = vpack.c.b16 %v4192, %v4191
  %v4204 = vpack.c.b16 %v4194, %v4193
  %v4205 = vpack.c.b16 %v4196, %v4195
  %v4206 = vpack.c.b16 %v4198, %v4197
  %4215 = vmatprep.subr.bf16.mxu0 0
  %4216 = vmatpush1.bf16.msra.mxu0 %v4199
  %4217 = vmatprep.subr.bf16.mxu0 0
  %4218 = vmatpush1.bf16.msra.mxu0 %v4200
  %4219 = vmatprep.subr.bf16.mxu0 0
  %4220 = vmatpush1.bf16.msra.mxu0 %v4201
  %4221 = vmatprep.subr.bf16.mxu0 0
  %4222 = vmatpush1.bf16.msra.mxu0 %v4202
  %4223 = vmatprep.subr.bf16.mxu0 0
  %4224 = vmatpush1.bf16.msra.mxu0 %v4203
  %4225 = vmatprep.subr.bf16.mxu0 0
  %4226 = vmatpush1.bf16.msra.mxu0 %v4204
  %4227 = vmatprep.subr.bf16.mxu0 0
  %4228 = vmatpush1.bf16.msra.mxu0 %v4205
  %4229 = vmatprep.subr.bf16.mxu0 0
  %4230 = vmatpush1.bf16.msra.mxu0 %v4206
  %4231 = vmatprep.subr.bf16.mxu0 0
  %4232 = vmatpush1.bf16.msra.mxu0 0
  %4233 = vmatprep.subr.bf16.mxu0 0
  %4234 = vmatpush1.bf16.msra.mxu0 0
  %4235 = vmatprep.subr.bf16.mxu0 0
  %4236 = vmatpush1.bf16.msra.mxu0 0
  %4237 = vmatprep.subr.bf16.mxu0 0
  %4238 = vmatpush1.bf16.msra.mxu0 0
  %4239 = vmatprep.subr.bf16.mxu0 0
  %4240 = vmatpush1.bf16.msra.mxu0 0
  %4241 = vmatprep.subr.bf16.mxu0 0
  %4242 = vmatpush1.bf16.msra.mxu0 0
  %4243 = vmatprep.subr.bf16.mxu0 0
  %4244 = vmatpush1.bf16.msra.mxu0 0
  %4245 = vmatprep.subr.bf16.mxu0 0
  %4246 = vmatpush1.bf16.msra.mxu0 0
  %4247 = vmatprep.mubr.bf16.mxu0 0
  %4248 = vmatmul.mubr.bf16.gmra.mrb[0].mxu0 %v4149
  %v4249 = vpop.f32.mrb[0].mxu0
  %v4250 = vadd.f32 0.0, %v4249
  %v4251 = vpop.f32.mrb[0].mxu0
  %v4252 = vpop.f32.mrb[0].mxu0
  %v4253 = vpop.f32.mrb[0].mxu0
  %4254 = vdwg.mxu0
  %v4255 = vadd.f32 %v4144, %v4250
  %v4256 = vld [vmem:[%s6] sm:$0x1]
  %v4258 = vlaneseq
  %v4259 = vshrl.u32 %v4258, 7
  %v4260 = vsub.s32 0, %v4259
  %v4261 = vrot.slane %v4256, %v4260
  %v4263 = vadd.f32 %v4255, %v4261
  %v4264 = vmul.f32 %v4263, 0.6666667
  %v4265 = vtanh.pop %v4264
  %v4266 = vmul.f32 %v4265, 1.7159
  %v4267 = vpack.c.bf16 %v4266, %v4266
  %v4268 = vld [vmem:[%s7] sm:$0xf]
  %v4269 = vld [vmem:[%s7 + $0x4] sm:$0xf]
  %v4270 = vld [vmem:[%s7 + $0x8] sm:$0xf]
  %v4271 = vld [vmem:[%s7 + $0xc] sm:$0xf]
  %v4272 = vld [vmem:[%s7 + $0x10] sm:$0xf]
  %v4273 = vld [vmem:[%s7 + $0x14] sm:$0xf]
  %v4274 = vld [vmem:[%s7 + $0x18] sm:$0xf]
  %v4275 = vld [vmem:[%s7 + $0x1c] sm:$0xf]
  %v4276 = vld [vmem:[%s7 + $0x20] sm:$0xf]
  %v4277 = vld [vmem:[%s7 + $0x24] sm:$0xf]
  %v4278 = vld [vmem:[%s7 + $0x28] sm:$0xf]
  %v4279 = vld [vmem:[%s7 + $0x2c] sm:$0xf]
  %v4280 = vld [vmem:[%s7 + $0x30] sm:$0xf]
  %v4281 = vld [vmem:[%s7 + $0x34] sm:$0xf]
  %v4282 = vld [vmem:[%s7 + $0x38] sm:$0xf]
  %v4283 = vld [vmem:[%s8] sm:$0x1]
  %v4285 = vlaneseq
  %v4286 = vshrl.u32 %v4285, 7
  %v4287 = vsub.s32 0, %v4286
  %v4288 = vrot.slane %v4283, %v4287
  %v4305 = vunpack.c.l.b16 %v4268
  %v4306 = vunpack.c.l.b16 %v4269
  %v4307 = vunpack.c.l.b16 %v4270
  %v4308 = vunpack.c.l.b16 %v4271
  %v4309 = vunpack.c.l.b16 %v4272
  %v4310 = vunpack.c.l.b16 %v4273
  %v4311 = vunpack.c.l.b16 %v4274
  %v4312 = vunpack.c.l.b16 %v4275
  %v4313 = vunpack.c.l.b16 %v4276
  %v4314 = vunpack.c.l.b16 %v4277
  %v4315 = vunpack.c.l.b16 %v4278
  %v4316 = vunpack.c.l.b16 %v4279
  %v4317 = vunpack.c.l.b16 %v4280
  %v4318 = vunpack.c.l.b16 %v4281
  %v4319 = vunpack.c.l.b16 %v4282
  %v4320 = vpack.c.b16 %v4306, %v4305
  %v4321 = vpack.c.b16 %v4308, %v4307
  %v4322 = vpack.c.b16 %v4310, %v4309
  %v4323 = vpack.c.b16 %v4312, %v4311
  %v4324 = vpack.c.b16 %v4314, %v4313
  %v4325 = vpack.c.b16 %v4316, %v4315
  %v4326 = vpack.c.b16 %v4318, %v4317
  %v4327 = vpack.c.b16 %v4319, %v4319
  %vm4335 = vcmask 982016
  %v4337 = vsel %vm4335, %v4267, 0
  %vm4339 = vcmask 1043456
  %v4341 = vsel %vm4339, %v4327, 0
  %4343 = vmatprep.subr.bf16.mxu0 0
  %4344 = vmatpush1.bf16.msra.mxu0 %v4320
  %4345 = vmatprep.subr.bf16.mxu0 0
  %4346 = vmatpush1.bf16.msra.mxu0 %v4321
  %4347 = vmatprep.subr.bf16.mxu0 0
  %4348 = vmatpush1.bf16.msra.mxu0 %v4322
  %4349 = vmatprep.subr.bf16.mxu0 0
  %4350 = vmatpush1.bf16.msra.mxu0 %v4323
  %4351 = vmatprep.subr.bf16.mxu0 0
  %4352 = vmatpush1.bf16.msra.mxu0 %v4324
  %4353 = vmatprep.subr.bf16.mxu0 0
  %4354 = vmatpush1.bf16.msra.mxu0 %v4325
  %4355 = vmatprep.subr.bf16.mxu0 0
  %4356 = vmatpush1.bf16.msra.mxu0 %v4326
  %4357 = vmatprep.subr.bf16.mxu0 0
  %4358 = vmatpush1.bf16.msra.mxu0 %v4341
  %4359 = vmatprep.subr.bf16.mxu0 0
  %4360 = vmatpush1.bf16.msra.mxu0 0
  %4361 = vmatprep.subr.bf16.mxu0 0
  %4362 = vmatpush1.bf16.msra.mxu0 0
  %4363 = vmatprep.subr.bf16.mxu0 0
  %4364 = vmatpush1.bf16.msra.mxu0 0
  %4365 = vmatprep.subr.bf16.mxu0 0
  %4366 = vmatpush1.bf16.msra.mxu0 0
  %4367 = vmatprep.subr.bf16.mxu0 0
  %4368 = vmatpush1.bf16.msra.mxu0 0
  %4369 = vmatprep.subr.bf16.mxu0 0
  %4370 = vmatpush1.bf16.msra.mxu0 0
  %4371 = vmatprep.subr.bf16.mxu0 0
  %4372 = vmatpush1.bf16.msra.mxu0 0
  %4373 = vmatprep.subr.bf16.mxu0 0
  %4374 = vmatpush1.bf16.msra.mxu0 0
  %4375 = vmatprep.mubr.bf16.mxu0 0
  %4376 = vmatmul.mubr.bf16.gmra.mrb[0].mxu0 %v4337
  %v4377 = vpop.f32.mrb[0].mxu0
  %v4378 = vadd.f32 %v4288, %v4377
  %v4379 = vpop.f32.mrb[0].mxu0
  %v4380 = vpop.f32.mrb[0].mxu0
  %v4381 = vpop.f32.mrb[0].mxu0
  %4382 = vdwg.mxu0
  %v4383 = vmul.f32 %v4378, 0.6666667
  %v4384 = vtanh.pop %v4383
  %v4385 = vmul.f32 %v4384, 1.7159
  %v4386 = vld [vmem:[%s9] sm:$0xff]
  %v4387 = vld [vmem:[%s9 + $0x8] sm:$0xff]
  %v4388 = vld [vmem:[%s9 + $0x10] sm:$0xff]
  %v4389 = vld [vmem:[%s9 + $0x18] sm:$0xff]
  %v4390 = vld [vmem:[%s9 + $0x20] sm:$0xff]
  %v4391 = vld [vmem:[%s9 + $0x28] sm:$0xff]
  %v4392 = vld [vmem:[%s9 + $0x30] sm:$0xff]
  %v4393 = vld [vmem:[%s9 + $0x38] sm:$0xff]
  %v4394 = vld [vmem:[%s9 + $0x40] sm:$0xff]
  %v4395 = vld [vmem:[%s9 + $0x48] sm:$0xff]
  %v4396 = vld [vmem:[%s9 + $0x50] sm:$0xf]
  %vm4397 = vcmask 687104
  %v4399 = vsel %vm4397, %v4385, 0
  %v4402 = vsel %vm4339, %v4396, 0
  %4404 = vmatprep.subr.mxu0 0.0
  %4405 = vmatpush1.msra.mxu0 %v4386
  %4406 = vmatprep.subr.mxu0 0.0
  %4407 = vmatpush1.msra.mxu0 %v4387
  %4408 = vmatprep.subr.mxu0 0.0
  %4409 = vmatpush1.msra.mxu0 %v4388
  %4410 = vmatprep.subr.mxu0 0.0
  %4411 = vmatpush1.msra.mxu0 %v4389
  %4412 = vmatprep.subr.mxu0 0.0
  %4413 = vmatpush1.msra.mxu0 %v4390
  %4414 = vmatprep.subr.mxu0 0.0
  %4415 = vmatpush1.msra.mxu0 %v4391
  %4416 = vmatprep.subr.mxu0 0.0
  %4417 = vmatpush1.msra.mxu0 %v4392
  %4418 = vmatprep.subr.mxu0 0.0
  %4419 = vmatpush1.msra.mxu0 %v4393
  %4420 = vmatprep.subr.mxu0 0.0
  %4421 = vmatpush1.msra.mxu0 %v4394
  %4422 = vmatprep.subr.mxu0 0.0
  %4423 = vmatpush1.msra.mxu0 %v4395
  %4424 = vmatprep.subr.mxu0 0.0
  %4425 = vmatpush1.msra.mxu0 %v4402
  %4426 = vmatprep.subr.mxu0 0.0
  %4427 = vmatpush1.msra.mxu0 0.0
  %4428 = vmatprep.subr.mxu0 0.0
  %4429 = vmatpush1.msra.mxu0 0.0
  %4430 = vmatprep.subr.mxu0 0.0
  %4431 = vmatpush1.msra.mxu0 0.0
  %4432 = vmatprep.subr.mxu0 0.0
  %4433 = vmatpush1.msra.mxu0 0.0
  %4434 = vmatprep.subr.mxu0 0.0
  %4435 = vmatpush1.msra.mxu0 0.0
  %4436 = vmatprep.subr.mxu0 0.0
  %4437 = vmatpush1.msra.mxu0 0.0
  %4438 = vmatprep.subr.mxu0 0.0
  %4439 = vmatpush1.msra.mxu0 0.0
  %4440 = vmatprep.subr.mxu0 0.0
  %4441 = vmatpush1.msra.mxu0 0.0
  %4442 = vmatprep.subr.mxu0 0.0
  %4443 = vmatpush1.msra.mxu0 0.0
  %4444 = vmatprep.subr.mxu0 0.0
  %4445 = vmatpush1.msra.mxu0 0.0
  %4446 = vmatprep.subr.mxu0 0.0
  %4447 = vmatpush1.msra.mxu0 0.0
  %4448 = vmatprep.subr.mxu0 0.0
  %4449 = vmatpush1.msra.mxu0 0.0
  %4450 = vmatprep.subr.mxu0 0.0
  %4451 = vmatpush1.msra.mxu0 0.0
  %4452 = vmatprep.subr.mxu0 0.0
  %4453 = vmatpush1.msra.mxu0 0.0
  %4454 = vmatprep.subr.mxu0 0.0
  %4455 = vmatpush1.msra.mxu0 0.0
  %4456 = vmatprep.subr.mxu0 0.0
  %4457 = vmatpush1.msra.mxu0 0.0
  %4458 = vmatprep.subr.mxu0 0.0
  %4459 = vmatpush1.msra.mxu0 0.0
  %4460 = vmatprep.subr.mxu0 0.0
  %4461 = vmatpush1.msra.mxu0 0.0
  %4462 = vmatprep.subr.mxu0 0.0
  %4463 = vmatpush1.msra.mxu0 0.0
  %4464 = vmatprep.subr.mxu0 0.0
  %4465 = vmatpush1.msra.mxu0 0.0
  %4466 = vmatprep.subr.mxu0 0.0
  %4467 = vmatpush1.msra.mxu0 0.0
  %4468 = vmatprep.mubr.f32.mxu0 0.0
  %4469 = vmatmul.mubr.f32.gmra.mrb[0].mxu0 %v4399
  %v4470 = vpop.f32.mrb[0].mxu0
  %v4471 = vadd.f32 0.0, %v4470
  %v4472 = vpop.f32.mrb[0].mxu0
  %4473 = vdwg.mxu0
  %v4474 = vmul.f32 %v4385, %v4385
  %v4475 = vsel %vm4397, %v4474, 0.0
  %4476 = vadd.xlane.f32.xlu0 %v4475
  %v4477 = vpop.xlane.xlu0 %4476
  %v4478 = vmul.f32 %v4471, 2.0
  %v4479 = vsub.f32 %v4477, %v4478
  %v4480 = vld [vmem:[%s10] sm:$0x1]
  %v4482 = vlaneseq
  %v4483 = vshrl.u32 %v4482, 7
  %v4484 = vsub.s32 0, %v4483
  %v4485 = vrot.slane %v4480, %v4484
  %v4487 = vadd.f32 %v4479, %v4485
  %vm4488 = vcmask 80896
  %4489 = vst.msk [vmem:[%s11] sm:$0xff] %vm4488, %v4487
  // Predicated region
  $region46: #{lenet5_forward.1} parent=0 // pred_check
    _
  $region47: #{lenet5_forward.1} parent=0 // pred_check_branch
    %4491 = sbr.rel (0) target = $region49
  $region48: #{lenet5_forward.1} parent=0 // pred_region
    _
  $region49: #{lenet5_forward.1} parent=0 // pred_fallthru
    _
  // Predicated region
  $region50: #{lenet5_forward.1} parent=0 // pred_check
    _
  $region51: #{lenet5_forward.1} parent=0 // pred_check_branch
    %4493 = sbr.rel (0) target = $region53
  $region52: #{lenet5_forward.1} parent=0 // pred_region
    _
  $region53: #{lenet5_forward.1} parent=0 // pred_fallthru
    _

</llo_original>
